<compile_context>
chip_gen: v5e
topology: v5e:2x2
jax: 0.10.0
libtpu: 0.0.40
codegen_flags: <defaults>
</compile_context>

<pallas_src>
import functools
import math

import jax
import jax.numpy as jnp
from jax.experimental import pallas as pl
from jax.experimental.pallas import tpu as pltpu

# ----------------------------- model config ---------------------------------
VOCAB = 33                      # ESM alphabet size
D = 32                          # hidden size
H = 4                           # attention heads
DH = D // H                     # head dim
FFN = 64                        # feed-forward dim
LAYERS = 2                      # transformer layers (stand-in for 30)
MASK_RATIO_TRAIN = 0.15 * 0.8   # ESM2 token_dropout eval rescale factor
NEG_INF = -1e30


# --------------------------- in-kernel helpers --------------------------------
def _layernorm(x, g, b):
    mu = jnp.mean(x, axis=-1, keepdims=True)
    xc = x - mu
    var = jnp.mean(xc * xc, axis=-1, keepdims=True)
    return xc * jax.lax.rsqrt(var + 1e-5) * g + b


def _softmax_lane(x):
    m = jnp.max(x, axis=-1, keepdims=True)
    e = jnp.exp(x - m)
    return e * pl.reciprocal(jnp.sum(e, axis=-1, keepdims=True), approx=True)


def _gelu(x):
    # tanh-approx GELU.
    # TODO(synk): ESM2 uses erf-GELU; tanh approximation introduces small drift.
    return 0.5 * x * (1.0 + jnp.tanh(0.7978845608028654 * (x + 0.044715 * x * x * x)))


# ------------------------------ fused kernel ----------------------------------
def _esm_stack_kernel(x0_ref, cos3_ref, sin3_ref, rot_ref,
                      ln1g_ref, ln1b_ref, wqkv_ref, bqkv_ref,
                      wo_ref, bo_ref, ln2g_ref, ln2b_ref,
                      w1_ref, b1_ref, w2_ref, b2_ref,
                      lnfg_ref, lnfb_ref,
                      attn_ref, emb_ref,
                      x_sc, qkv_sc, ctx_sc, p_sc, xn_sc,
                      *, bsz, lp, l_valid, max_len):
    """One grid step == one transformer layer; residual stream lives in x_sc."""
    li = pl.program_id(0)
    rows = bsz * lp
    lc = l_valid - 2                      # length after dropping BOS/EOS

    @pl.when(li == 0)
    def _():
        x_sc[...] = x0_ref[...]           # load the embedded tokens once

    x = x_sc[...]                         # [B, LP, D] residual (VMEM-resident)

    # ---------------- self-attention block (pre-LN) ----------------
    h = _layernorm(x.reshape(rows, D), ln1g_ref[0], ln1b_ref[0])
    qkv = jnp.dot(h, wqkv_ref[0], preferred_element_type=jnp.float32) + bqkv_ref[0]

    # Rotary + query scaling fused over the packed [q|k|v] lanes:
    #   rope(x) = x * cos + (x @ R) * sin   (R = rotate-half permutation, block
    #   diagonal per head over the q/k lanes, zero over the v lanes).
    rot = jnp.dot(qkv, rot_ref[...], preferred_element_type=jnp.float32)
    qkv_sc[...] = (qkv * cos3_ref[...] + rot * sin3_ref[...]).reshape(bsz, lp, 3 * D)

    # key-padding mask: padded positions (>= l_valid) are never attended to,
    # so valid-token results are identical to the unpadded computation.
    kid = jax.lax.broadcasted_iota(jnp.int32, (lp, lp), 1)
    kmask = jnp.where(kid < l_valid, 0.0, NEG_INF)          # [LP, LP]

    # probs land directly in their final cropped + zero-padded layout
    attn_ref[...] = jnp.zeros((bsz, H, max_len, max_len), jnp.float32)

    for hh in range(H):                   # unrolled: all heads in one grid step
        qh = qkv_sc[:, :, hh * DH:(hh + 1) * DH]                    # [B, LP, DH]
        kh = qkv_sc[:, :, D + hh * DH:D + (hh + 1) * DH]
        vh = qkv_sc[:, :, 2 * D + hh * DH:2 * D + (hh + 1) * DH]
        s = jnp.einsum('bqd,bkd->bqk', qh, kh,
                       preferred_element_type=jnp.float32)          # [B, LP, LP]
        p = _softmax_lane(s + kmask[None])
        p_sc[...] = p
        # fused BOS/EOS crop + pad: copy the valid window into the output block
        attn_ref[:, hh, 0:lc, 0:lc] = p_sc[:, 1:l_valid - 1, 1:l_valid - 1]
        ctx_sc[:, :, hh * DH:(hh + 1) * DH] = jnp.einsum(
            'bqk,bkd->bqd', p, vh, preferred_element_type=jnp.float32)

    ctx = ctx_sc[...].reshape(rows, D)
    attn_out = jnp.dot(ctx, wo_ref[0], preferred_element_type=jnp.float32) + bo_ref[0]
    x = x + attn_out.reshape(bsz, lp, D)

    # ---------------- feed-forward block (pre-LN) ----------------
    h2 = _layernorm(x.reshape(rows, D), ln2g_ref[0], ln2b_ref[0])
    h2 = _gelu(jnp.dot(h2, w1_ref[0], preferred_element_type=jnp.float32) + b1_ref[0])
    h2 = jnp.dot(h2, w2_ref[0], preferred_element_type=jnp.float32) + b2_ref[0]
    x = x + h2.reshape(bsz, lp, D)
    x_sc[...] = x

    # ---- last layer: emb_layer_norm_after + BOS/EOS crop + pad + softmax ----
    @pl.when(li == pl.num_programs(0) - 1)
    def _():
        xn = _layernorm(x.reshape(rows, D), lnfg_ref[...], lnfb_ref[...])
        xn_sc[...] = xn.reshape(bsz, lp, D)
        emb_ref[:, 0:lc, :] = _softmax_lane(xn_sc[:, 1:l_valid - 1, :])
        if lc < max_len:
            # zero-padded rows softmaxed over the hidden dim -> uniform 1/D,
            # matching F.softmax applied after torch.cat with zeros.
            emb_ref[:, lc:, :] = jnp.full((bsz, max_len - lc, D), 1.0 / D, jnp.float32)


# ----------------------------- plain-JAX glue ---------------------------------
def _rotary_tables(lp):
    """cos/sin tables over the packed [q|k|v] lanes + rotate-half matrix."""
    half = DH // 2
    inv_freq = 1.0 / (10000.0 ** (jnp.arange(0, DH, 2, dtype=jnp.float32) / DH))
    t = jnp.arange(lp, dtype=jnp.float32)
    freqs = t[:, None] * inv_freq[None, :]                 # [lp, DH/2]
    ang = jnp.concatenate([freqs, freqs], axis=-1)         # [lp, DH]
    cos, sin = jnp.cos(ang), jnp.sin(ang)

    scale = DH ** -0.5                                     # folded into q's lanes
    ones = jnp.ones((lp, D), jnp.float32)
    zeros = jnp.zeros((lp, D), jnp.float32)
    cos3 = jnp.concatenate([jnp.tile(cos, (1, H)) * scale, jnp.tile(cos, (1, H)), ones], axis=1)
    sin3 = jnp.concatenate([jnp.tile(sin, (1, H)) * scale, jnp.tile(sin, (1, H)), zeros], axis=1)

    # rotate_half(x) == x @ r_head, per head:  r_head = [[0, I], [-I, 0]]
    ih = jnp.eye(half, dtype=jnp.float32)
    zh = jnp.zeros((half, half), jnp.float32)
    r_head = jnp.concatenate([jnp.concatenate([zh, ih], axis=1),
                              jnp.concatenate([-ih, zh], axis=1)], axis=0)   # [DH, DH]
    rot = jnp.zeros((3 * D, 3 * D), jnp.float32)
    rot = rot.at[:2 * D, :2 * D].set(jnp.kron(jnp.eye(2 * H, dtype=jnp.float32), r_head))
    return cos3, sin3, rot


def init_params(key):
    ks = jax.random.split(key, 5)

    def w(k, shape, fan_in):
        return jax.random.normal(k, shape, jnp.float32) / math.sqrt(fan_in)

    # biases / LN params stored pre-reshaped ([*, 1, N]) so no per-call reshape
    return {
        "embed": jax.random.normal(ks[0], (VOCAB, D), jnp.float32) * 0.02,
        "ln1_g": jnp.ones((LAYERS, 1, D), jnp.float32),
        "ln1_b": jnp.zeros((LAYERS, 1, D), jnp.float32),
        "wqkv": w(ks[1], (LAYERS, D, 3 * D), D),          # fused Wq|Wk|Wv
        "bqkv": jnp.zeros((LAYERS, 1, 3 * D), jnp.float32),
        "wo": w(ks[2], (LAYERS, D, D), D),
        "bo": jnp.zeros((LAYERS, 1, D), jnp.float32),
        "ln2_g": jnp.ones((LAYERS, 1, D), jnp.float32),
        "ln2_b": jnp.zeros((LAYERS, 1, D), jnp.float32),
        "w1": w(ks[3], (LAYERS, D, FFN), D),
        "b1": jnp.zeros((LAYERS, 1, FFN), jnp.float32),
        "w2": w(ks[4], (LAYERS, FFN, D), FFN),
        "b2": jnp.zeros((LAYERS, 1, D), jnp.float32),
        "lnf_g": jnp.ones((1, D), jnp.float32),
        "lnf_b": jnp.zeros((1, D), jnp.float32),
    }


def rna_esm2_forward(params, tokens, max_len=16):
    """Mirrors RNAESM2.forward: returns {'embedding', 'attention'}."""
    B, L = tokens.shape                       # L includes BOS + EOS
    assert max_len >= L, "max_len must cover BOS + sequence + EOS"
    lp = max_len                              # pad seq to max_len (sublane aligned)

    # TODO(synk): Vocab.encode tokenization and torch checkpoint loading are
    # host-side and have no Pallas equivalent; tokens are taken as ids directly.
    if lp > L:
        tok = jnp.concatenate([tokens, jnp.full((B, lp - L), 1, jnp.int32)], axis=1)
    else:
        tok = tokens
    # token embedding + ESM2 eval-time token_dropout rescale (no <mask> in input)
    x0 = params["embed"][tok] * (1.0 - MASK_RATIO_TRAIN)          # [B, lp, D]

    cos3, sin3, rot = _rotary_tables(lp)
    cos3 = jnp.tile(cos3, (B, 1))             # [B*lp, 3D]
    sin3 = jnp.tile(sin3, (B, 1))

    resident = lambda shape: pl.BlockSpec(shape, lambda l, _s=len(shape): (0,) * _s)
    per_layer = lambda a, b: pl.BlockSpec((1, a, b), lambda l: (l, 0, 0))

    kern = functools.partial(_esm_stack_kernel, bsz=B, lp=lp, l_valid=L, max_len=max_len)

    attn, emb = pl.pallas_call(
        kern,
        out_shape=(jax.ShapeDtypeStruct((B, LAYERS * H, max_len, max_len), jnp.float32),
                   jax.ShapeDtypeStruct((B, max_len, D), jnp.float32)),
        grid=(LAYERS,),
        in_specs=[
            resident((B, lp, D)),                         # x0 (resident across layers)
            resident((B * lp, 3 * D)),                    # cos table (packed q|k|v)
            resident((B * lp, 3 * D)),                    # sin table
            resident((3 * D, 3 * D)),                     # rotate-half matrix
            per_layer(1, D), per_layer(1, D),             # ln1 gamma / beta
            per_layer(D, 3 * D), per_layer(1, 3 * D),     # fused Wqkv / bqkv
            per_layer(D, D), per_layer(1, D),             # Wo / bo
            per_layer(1, D), per_layer(1, D),             # ln2 gamma / beta
            per_layer(D, FFN), per_layer(1, FFN),         # W1 / b1
            per_layer(FFN, D), per_layer(1, D),           # W2 / b2
            resident((1, D)), resident((1, D)),           # final LN gamma / beta
        ],
        out_specs=(
            # layer-major, head-minor: layer li fills heads [li*H, (li+1)*H)
            pl.BlockSpec((B, H, max_len, max_len), lambda l: (0, l, 0, 0)),
            pl.BlockSpec((B, max_len, D), lambda l: (0, 0, 0)),
        ),
        scratch_shapes=[
            pltpu.VMEM((B, lp, D), jnp.float32),          # residual stream
            pltpu.VMEM((B, lp, 3 * D), jnp.float32),      # roped q|k|v
            pltpu.VMEM((B, lp, D), jnp.float32),          # ctx (head merge)
            pltpu.VMEM((B, lp, lp), jnp.float32),         # per-head probs staging
            pltpu.VMEM((B, lp, D), jnp.float32),          # final-LN staging
        ],
        compiler_params=pltpu.CompilerParams(
            dimension_semantics=("arbitrary",)),          # layer axis is sequential
    )(x0, cos3, sin3, rot,
      params["ln1_g"], params["ln1_b"], params["wqkv"], params["bqkv"],
      params["wo"], params["bo"], params["ln2_g"], params["ln2_b"],
      params["w1"], params["b1"], params["w2"], params["b2"],
      params["lnf_g"], params["lnf_b"])

    return {"embedding": emb, "attention": attn}


# ------------------------------------ main ------------------------------------
if __name__ == "__main__":
    key = jax.random.PRNGKey(0)
    k_tok, k_par = jax.random.split(key)

    B, SEQ, MAX_LEN = 2, 8, 16
    # synthetic RNA token ids (A/C/G/U -> ids 4..7), with <cls>=0 and <eos>=2
    raw = jax.random.randint(k_tok, (B, SEQ), 4, 8, dtype=jnp.int32)
    bos = jnp.zeros((B, 1), jnp.int32)
    eos = jnp.full((B, 1), 2, jnp.int32)
    tokens = jnp.concatenate([bos, raw, eos], axis=1)     # [B, L=10]

    params = init_params(k_par)
    fwd = jax.jit(functools.partial(rna_esm2_forward, max_len=MAX_LEN))
    out = fwd(params, tokens)
    out = jax.block_until_ready(out)

    assert out["embedding"].shape == (B, MAX_LEN, D)
    assert out["attention"].shape == (B, LAYERS * H, MAX_LEN, MAX_LEN)
    # softmax over the hidden dim: every row (incl. zero-padded -> uniform 1/D)
    # sums to ~1 (approx reciprocal -> slightly relaxed tolerance)
    assert bool(jnp.allclose(jnp.sum(out["embedding"], axis=-1), 1.0, atol=1e-2))
    # attention crop/pad: the padded region must be exactly zero, probs in [0, 1]
    assert bool(jnp.all(out["attention"][:, :, SEQ:, :] == 0.0))
    assert bool(jnp.all(out["attention"][:, :, :, SEQ:] == 0.0))
    assert bool(jnp.all(out["attention"] >= 0.0)) and bool(jnp.all(out["attention"] <= 1.0 + 1e-5))

    print("KERNEL_OK")
</pallas_src>

<mosaic_0001>
module attributes {stable_mosaic.version = 11 : i64} {
  func.func @_esm_stack_kernel(%arg0: i32, %arg1: memref<2x16x32xf32, #tpu.memory_space<vmem>>, %arg2: memref<32x96xf32, #tpu.memory_space<vmem>>, %arg3: memref<32x96xf32, #tpu.memory_space<vmem>>, %arg4: memref<96x96xf32, #tpu.memory_space<vmem>>, %arg5: memref<1x1x32xf32, #tpu.memory_space<vmem>>, %arg6: memref<1x1x32xf32, #tpu.memory_space<vmem>>, %arg7: memref<1x32x96xf32, #tpu.memory_space<vmem>>, %arg8: memref<1x1x96xf32, #tpu.memory_space<vmem>>, %arg9: memref<1x32x32xf32, #tpu.memory_space<vmem>>, %arg10: memref<1x1x32xf32, #tpu.memory_space<vmem>>, %arg11: memref<1x1x32xf32, #tpu.memory_space<vmem>>, %arg12: memref<1x1x32xf32, #tpu.memory_space<vmem>>, %arg13: memref<1x32x64xf32, #tpu.memory_space<vmem>>, %arg14: memref<1x1x64xf32, #tpu.memory_space<vmem>>, %arg15: memref<1x64x32xf32, #tpu.memory_space<vmem>>, %arg16: memref<1x1x32xf32, #tpu.memory_space<vmem>>, %arg17: memref<1x32xf32, #tpu.memory_space<vmem>>, %arg18: memref<1x32xf32, #tpu.memory_space<vmem>>, %arg19: memref<2x4x16x16xf32, #tpu.memory_space<vmem>>, %arg20: memref<2x16x32xf32, #tpu.memory_space<vmem>>, %arg21: memref<2x16x32xf32, #tpu.memory_space<vmem>>, %arg22: memref<2x16x96xf32, #tpu.memory_space<vmem>>, %arg23: memref<2x16x32xf32, #tpu.memory_space<vmem>>, %arg24: memref<2x16x16xf32, #tpu.memory_space<vmem>>, %arg25: memref<2x16x32xf32, #tpu.memory_space<vmem>>) attributes {dimension_semantics = [#tpu.dimension_semantics<arbitrary>], iteration_bounds = array<i64: 2>, scalar_prefetch = 0 : i64, scratch_operands = 5 : i64, tpu.core_type = #tpu.core_type<tc>, window_params = [{pipeline_mode = #tpu.pipeline_mode<synchronous>, transform_indices = @transform_0, window_bounds = array<i64: 2, 16, 32>}, {pipeline_mode = #tpu.pipeline_mode<synchronous>, transform_indices = @transform_1, window_bounds = array<i64: 32, 96>}, {pipeline_mode = #tpu.pipeline_mode<synchronous>, transform_indices = @transform_2, window_bounds = array<i64: 32, 96>}, {pipeline_mode = #tpu.pipeline_mode<synchronous>, transform_indices = @transform_3, window_bounds = array<i64: 96, 96>}, {transform_indices = @transform_4, window_bounds = array<i64: 1, 1, 32>}, {transform_indices = @transform_5, window_bounds = array<i64: 1, 1, 32>}, {transform_indices = @transform_6, window_bounds = array<i64: 1, 32, 96>}, {transform_indices = @transform_7, window_bounds = array<i64: 1, 1, 96>}, {transform_indices = @transform_8, window_bounds = array<i64: 1, 32, 32>}, {transform_indices = @transform_9, window_bounds = array<i64: 1, 1, 32>}, {transform_indices = @transform_10, window_bounds = array<i64: 1, 1, 32>}, {transform_indices = @transform_11, window_bounds = array<i64: 1, 1, 32>}, {transform_indices = @transform_12, window_bounds = array<i64: 1, 32, 64>}, {transform_indices = @transform_13, window_bounds = array<i64: 1, 1, 64>}, {transform_indices = @transform_14, window_bounds = array<i64: 1, 64, 32>}, {transform_indices = @transform_15, window_bounds = array<i64: 1, 1, 32>}, {pipeline_mode = #tpu.pipeline_mode<synchronous>, transform_indices = @transform_16, window_bounds = array<i64: 1, 32>}, {pipeline_mode = #tpu.pipeline_mode<synchronous>, transform_indices = @transform_17, window_bounds = array<i64: 1, 32>}, {transform_indices = @transform_18, window_bounds = array<i64: 2, 4, 16, 16>}, {pipeline_mode = #tpu.pipeline_mode<synchronous>, transform_indices = @transform_19, window_bounds = array<i64: 2, 16, 32>}]} {
    %c0_i32 = arith.constant 0 : i32
    %0 = arith.cmpi eq, %arg0, %c0_i32 : i32
    %1 = arith.extui %0 : i1 to i32
    %c0_i32_0 = arith.constant 0 : i32
    %2 = arith.cmpi ne, %1, %c0_i32_0 : i32
    scf.if %2 {
      %c0_170 = arith.constant 0 : index
      %c0_171 = arith.constant 0 : index
      %c0_172 = arith.constant 0 : index
      %218 = vector.load %arg1[%c0_170, %c0_171, %c0_172] : memref<2x16x32xf32, #tpu.memory_space<vmem>>, vector<2x16x32xf32>
      %c0_173 = arith.constant 0 : index
      %c0_174 = arith.constant 0 : index
      %c0_175 = arith.constant 0 : index
      %219 = vector.load %arg21[%c0_173, %c0_174, %c0_175] : memref<2x16x32xf32, #tpu.memory_space<vmem>>, vector<2x16x32xf32>
      tpu.vector_store %arg21[%c0_173, %c0_174, %c0_175], %218 {strides = array<i32>} : memref<2x16x32xf32, #tpu.memory_space<vmem>>, vector<2x16x32xf32>,
    } else {
    }
    %c0 = arith.constant 0 : index
    %c0_1 = arith.constant 0 : index
    %c0_2 = arith.constant 0 : index
    %3 = vector.load %arg21[%c0, %c0_1, %c0_2] : memref<2x16x32xf32, #tpu.memory_space<vmem>>, vector<2x16x32xf32>
    %4 = vector.shape_cast %3 : vector<2x16x32xf32> to vector<32x32xf32>
    %c0_3 = arith.constant 0 : index
    %c0_4 = arith.constant 0 : index
    %c0_5 = arith.constant 0 : index
    %5 = vector.load %arg5[%c0_3, %c0_4, %c0_5] : memref<1x1x32xf32, #tpu.memory_space<vmem>>, vector<1x1x32xf32>
    %6 = vector.shape_cast %5 : vector<1x1x32xf32> to vector<1x32xf32>
    %c0_6 = arith.constant 0 : index
    %c0_7 = arith.constant 0 : index
    %c0_8 = arith.constant 0 : index
    %7 = vector.load %arg6[%c0_6, %c0_7, %c0_8] : memref<1x1x32xf32, #tpu.memory_space<vmem>>, vector<1x1x32xf32>
    %8 = vector.shape_cast %7 : vector<1x1x32xf32> to vector<1x32xf32>
    %cst = arith.constant dense<0.000000e+00> : vector<32xf32>
    %9 = vector.multi_reduction <add>, %4, %cst [1] : vector<32x32xf32> to vector<32xf32>
    %10 = vector.shape_cast %9 : vector<32xf32> to vector<32x1xf32>
    %cst_9 = arith.constant 3.200000e+01 : f32
    %11 = vector.broadcast %cst_9 : f32 to vector<32x1xf32>
    %12 = arith.divf %10, %11 : vector<32x1xf32>
    %13 = vector.broadcast %12 : vector<32x1xf32> to vector<32x32xf32>
    %14 = arith.subf %4, %13 : vector<32x32xf32>
    %15 = arith.mulf %14, %14 : vector<32x32xf32>
    %cst_10 = arith.constant dense<0.000000e+00> : vector<32xf32>
    %16 = vector.multi_reduction <add>, %15, %cst_10 [1] : vector<32x32xf32> to vector<32xf32>
    %17 = vector.shape_cast %16 : vector<32xf32> to vector<32x1xf32>
    %cst_11 = arith.constant 3.200000e+01 : f32
    %18 = vector.broadcast %cst_11 : f32 to vector<32x1xf32>
    %19 = arith.divf %17, %18 : vector<32x1xf32>
    %cst_12 = arith.constant 9.99999974E-6 : f32
    %20 = vector.broadcast %cst_12 : f32 to vector<32x1xf32>
    %21 = arith.addf %19, %20 : vector<32x1xf32>
    %22 = math.rsqrt %21 : vector<32x1xf32>
    %23 = vector.broadcast %22 : vector<32x1xf32> to vector<32x32xf32>
    %24 = arith.mulf %14, %23 : vector<32x32xf32>
    %25 = vector.broadcast %6 : vector<1x32xf32> to vector<32x32xf32>
    %26 = arith.mulf %24, %25 : vector<32x32xf32>
    %27 = vector.broadcast %8 : vector<1x32xf32> to vector<32x32xf32>
    %28 = arith.addf %26, %27 : vector<32x32xf32>
    %c0_13 = arith.constant 0 : index
    %c0_14 = arith.constant 0 : index
    %c0_15 = arith.constant 0 : index
    %29 = vector.load %arg7[%c0_13, %c0_14, %c0_15] : memref<1x32x96xf32, #tpu.memory_space<vmem>>, vector<1x32x96xf32>
    %30 = vector.shape_cast %29 : vector<1x32x96xf32> to vector<32x96xf32>
    %cst_16 = arith.constant dense<0.000000e+00> : vector<32x96xf32>
    %31 = tpu.matmul %28, %30, %cst_16 {dimension_numbers = #tpu.dot_dimension_numbers<[1], [0], [0], [1], [0, 0, 1, 1], [], []>} : vector<32x32xf32>, vector<32x96xf32>, vector<32x96xf32> -> vector<32x96xf32>
    %c0_17 = arith.constant 0 : index
    %c0_18 = arith.constant 0 : index
    %c0_19 = arith.constant 0 : index
    %32 = vector.load %arg8[%c0_17, %c0_18, %c0_19] : memref<1x1x96xf32, #tpu.memory_space<vmem>>, vector<1x1x96xf32>
    %33 = vector.shape_cast %32 : vector<1x1x96xf32> to vector<1x96xf32>
    %34 = vector.broadcast %33 : vector<1x96xf32> to vector<32x96xf32>
    %35 = arith.addf %31, %34 : vector<32x96xf32>
    %c0_20 = arith.constant 0 : index
    %c0_21 = arith.constant 0 : index
    %36 = vector.load %arg4[%c0_20, %c0_21] : memref<96x96xf32, #tpu.memory_space<vmem>>, vector<96x96xf32>
    %cst_22 = arith.constant dense<0.000000e+00> : vector<32x96xf32>
    %37 = tpu.matmul %35, %36, %cst_22 {dimension_numbers = #tpu.dot_dimension_numbers<[1], [0], [0], [1], [0, 0, 1, 1], [], []>} : vector<32x96xf32>, vector<96x96xf32>, vector<32x96xf32> -> vector<32x96xf32>
    %c0_23 = arith.constant 0 : index
    %c0_24 = arith.constant 0 : index
    %38 = vector.load %arg2[%c0_23, %c0_24] : memref<32x96xf32, #tpu.memory_space<vmem>>, vector<32x96xf32>
    %39 = arith.mulf %35, %38 : vector<32x96xf32>
    %c0_25 = arith.constant 0 : index
    %c0_26 = arith.constant 0 : index
    %40 = vector.load %arg3[%c0_25, %c0_26] : memref<32x96xf32, #tpu.memory_space<vmem>>, vector<32x96xf32>
    %41 = arith.mulf %37, %40 : vector<32x96xf32>
    %42 = arith.addf %39, %41 : vector<32x96xf32>
    %43 = vector.shape_cast %42 : vector<32x96xf32> to vector<2x16x96xf32>
    %c0_27 = arith.constant 0 : index
    %c0_28 = arith.constant 0 : index
    %c0_29 = arith.constant 0 : index
    %44 = vector.load %arg22[%c0_27, %c0_28, %c0_29] : memref<2x16x96xf32, #tpu.memory_space<vmem>>, vector<2x16x96xf32>
    tpu.vector_store %arg22[%c0_27, %c0_28, %c0_29], %43 {strides = array<i32>} : memref<2x16x96xf32, #tpu.memory_space<vmem>>, vector<2x16x96xf32>,
    %45 = tpu.iota {dimensions = array<i32: 1>} : vector<16x16xi32>
    %c10_i32 = arith.constant 10 : i32
    %46 = vector.broadcast %c10_i32 : i32 to vector<16x16xi32>
    %47 = arith.cmpi slt, %45, %46 : vector<16x16xi32>
    %cst_30 = arith.constant 0.000000e+00 : f32
    %cst_31 = arith.constant -1.000000e+30 : f32
    %48 = vector.broadcast %cst_30 : f32 to vector<16x16xf32>
    %49 = vector.broadcast %cst_31 : f32 to vector<16x16xf32>
    %50 = arith.select %47, %48, %49 : vector<16x16xi1>, vector<16x16xf32>
    %cst_32 = arith.constant 0.000000e+00 : f32
    %51 = vector.broadcast %cst_32 : f32 to vector<2x4x16x16xf32>
    %c0_33 = arith.constant 0 : index
    %c0_34 = arith.constant 0 : index
    %c0_35 = arith.constant 0 : index
    %c0_36 = arith.constant 0 : index
    %52 = vector.load %arg19[%c0_33, %c0_34, %c0_35, %c0_36] : memref<2x4x16x16xf32, #tpu.memory_space<vmem>>, vector<2x4x16x16xf32>
    tpu.vector_store %arg19[%c0_33, %c0_34, %c0_35, %c0_36], %51 {strides = array<i32>} : memref<2x4x16x16xf32, #tpu.memory_space<vmem>>, vector<2x4x16x16xf32>,
    %c0_37 = arith.constant 0 : index
    %c0_38 = arith.constant 0 : index
    %c0_39 = arith.constant 0 : index
    %53 = vector.load %arg22[%c0_37, %c0_38, %c0_39] : memref<2x16x96xf32, #tpu.memory_space<vmem>>, vector<2x16x8xf32>
    %c0_40 = arith.constant 0 : index
    %c0_41 = arith.constant 0 : index
    %c32 = arith.constant 32 : index
    %54 = vector.load %arg22[%c0_40, %c0_41, %c32] : memref<2x16x96xf32, #tpu.memory_space<vmem>>, vector<2x16x8xf32>
    %c0_42 = arith.constant 0 : index
    %c0_43 = arith.constant 0 : index
    %c64 = arith.constant 64 : index
    %55 = vector.load %arg22[%c0_42, %c0_43, %c64] : memref<2x16x96xf32, #tpu.memory_space<vmem>>, vector<2x16x8xf32>
    "tpu.trace_start"() <{level = 10 : i32, message = "bqd,bkd->bqk"}> : () -> ()
    %cst_44 = arith.constant dense<0.000000e+00> : vector<2x16x16xf32>
    %56 = tpu.matmul %53, %54, %cst_44 {dimension_numbers = #tpu.dot_dimension_numbers<[2], [2], [1], [1], [0, 0, 0, 1, 1, 1], [0], [0]>} : vector<2x16x8xf32>, vector<2x16x8xf32>, vector<2x16x16xf32> -> vector<2x16x16xf32>
    "tpu.trace_stop"() : () -> ()
    %57 = vector.shape_cast %50 : vector<16x16xf32> to vector<1x16x16xf32>
    %58 = vector.broadcast %57 : vector<1x16x16xf32> to vector<2x16x16xf32>
    %59 = arith.addf %56, %58 : vector<2x16x16xf32>
    %cst_45 = arith.constant dense<0xFF800000> : vector<2x16xf32>
    %60 = vector.multi_reduction <maximumf>, %59, %cst_45 [2] : vector<2x16x16xf32> to vector<2x16xf32>
    %61 = vector.shape_cast %60 : vector<2x16xf32> to vector<2x16x1xf32>
    %62 = vector.broadcast %61 : vector<2x16x1xf32> to vector<2x16x16xf32>
    %63 = arith.subf %59, %62 : vector<2x16x16xf32>
    %64 = math.exp %63 : vector<2x16x16xf32>
    %cst_46 = arith.constant dense<0.000000e+00> : vector<2x16xf32>
    %65 = vector.multi_reduction <add>, %64, %cst_46 [2] : vector<2x16x16xf32> to vector<2x16xf32>
    %66 = vector.shape_cast %65 : vector<2x16xf32> to vector<2x16x1xf32>
    %67 = tpu.reciprocal %66 {approx = true} : vector<2x16x1xf32> -> vector<2x16x1xf32>
    %68 = vector.broadcast %67 : vector<2x16x1xf32> to vector<2x16x16xf32>
    %69 = arith.mulf %64, %68 : vector<2x16x16xf32>
    %c0_47 = arith.constant 0 : index
    %c0_48 = arith.constant 0 : index
    %c0_49 = arith.constant 0 : index
    %70 = vector.load %arg24[%c0_47, %c0_48, %c0_49] : memref<2x16x16xf32, #tpu.memory_space<vmem>>, vector<2x16x16xf32>
    tpu.vector_store %arg24[%c0_47, %c0_48, %c0_49], %69 {strides = array<i32>} : memref<2x16x16xf32, #tpu.memory_space<vmem>>, vector<2x16x16xf32>,
    %c0_50 = arith.constant 0 : index
    %c1 = arith.constant 1 : index
    %c1_51 = arith.constant 1 : index
    %71 = vector.load %arg24[%c0_50, %c1, %c1_51] : memref<2x16x16xf32, #tpu.memory_space<vmem>>, vector<2x8x8xf32>
    %c0_52 = arith.constant 0 : index
    %c0_53 = arith.constant 0 : index
    %c0_54 = arith.constant 0 : index
    %c0_55 = arith.constant 0 : index
    %72 = vector.load %arg19[%c0_52, %c0_53, %c0_54, %c0_55] : memref<2x4x16x16xf32, #tpu.memory_space<vmem>>, vector<2x1x8x8xf32>
    %73 = vector.shape_cast %72 : vector<2x1x8x8xf32> to vector<2x8x8xf32>
    %74 = vector.shape_cast %71 : vector<2x8x8xf32> to vector<2x1x8x8xf32>
    tpu.vector_store %arg19[%c0_52, %c0_53, %c0_54, %c0_55], %74 {strides = array<i32>} : memref<2x4x16x16xf32, #tpu.memory_space<vmem>>, vector<2x1x8x8xf32>,
    "tpu.trace_start"() <{level = 10 : i32, message = "bqk,bkd->bqd"}> : () -> ()
    %cst_56 = arith.constant dense<0.000000e+00> : vector<2x16x8xf32>
    %75 = tpu.matmul %69, %55, %cst_56 {dimension_numbers = #tpu.dot_dimension_numbers<[2], [1], [1], [2], [0, 0, 0, 1, 1, 2], [0], [0]>} : vector<2x16x16xf32>, vector<2x16x8xf32>, vector<2x16x8xf32> -> vector<2x16x8xf32>
    "tpu.trace_stop"() : () -> ()
    %c0_57 = arith.constant 0 : index
    %c0_58 = arith.constant 0 : index
    %c0_59 = arith.constant 0 : index
    %76 = vector.load %arg23[%c0_57, %c0_58, %c0_59] : memref<2x16x32xf32, #tpu.memory_space<vmem>>, vector<2x16x8xf32>
    tpu.vector_store %arg23[%c0_57, %c0_58, %c0_59], %75 {strides = array<i32>} : memref<2x16x32xf32, #tpu.memory_space<vmem>>, vector<2x16x8xf32>,
    %c0_60 = arith.constant 0 : index
    %c0_61 = arith.constant 0 : index
    %c8 = arith.constant 8 : index
    %77 = vector.load %arg22[%c0_60, %c0_61, %c8] : memref<2x16x96xf32, #tpu.memory_space<vmem>>, vector<2x16x8xf32>
    %c0_62 = arith.constant 0 : index
    %c0_63 = arith.constant 0 : index
    %c40 = arith.constant 40 : index
    %78 = vector.load %arg22[%c0_62, %c0_63, %c40] : memref<2x16x96xf32, #tpu.memory_space<vmem>>, vector<2x16x8xf32>
    %c0_64 = arith.constant 0 : index
    %c0_65 = arith.constant 0 : index
    %c72 = arith.constant 72 : index
    %79 = vector.load %arg22[%c0_64, %c0_65, %c72] : memref<2x16x96xf32, #tpu.memory_space<vmem>>, vector<2x16x8xf32>
    "tpu.trace_start"() <{level = 10 : i32, message = "bqd,bkd->bqk"}> : () -> ()
    %cst_66 = arith.constant dense<0.000000e+00> : vector<2x16x16xf32>
    %80 = tpu.matmul %77, %78, %cst_66 {dimension_numbers = #tpu.dot_dimension_numbers<[2], [2], [1], [1], [0, 0, 0, 1, 1, 1], [0], [0]>} : vector<2x16x8xf32>, vector<2x16x8xf32>, vector<2x16x16xf32> -> vector<2x16x16xf32>
    "tpu.trace_stop"() : () -> ()
    %81 = vector.shape_cast %50 : vector<16x16xf32> to vector<1x16x16xf32>
    %82 = vector.broadcast %81 : vector<1x16x16xf32> to vector<2x16x16xf32>
    %83 = arith.addf %80, %82 : vector<2x16x16xf32>
    %cst_67 = arith.constant dense<0xFF800000> : vector<2x16xf32>
    %84 = vector.multi_reduction <maximumf>, %83, %cst_67 [2] : vector<2x16x16xf32> to vector<2x16xf32>
    %85 = vector.shape_cast %84 : vector<2x16xf32> to vector<2x16x1xf32>
    %86 = vector.broadcast %85 : vector<2x16x1xf32> to vector<2x16x16xf32>
    %87 = arith.subf %83, %86 : vector<2x16x16xf32>
    %88 = math.exp %87 : vector<2x16x16xf32>
    %cst_68 = arith.constant dense<0.000000e+00> : vector<2x16xf32>
    %89 = vector.multi_reduction <add>, %88, %cst_68 [2] : vector<2x16x16xf32> to vector<2x16xf32>
    %90 = vector.shape_cast %89 : vector<2x16xf32> to vector<2x16x1xf32>
    %91 = tpu.reciprocal %90 {approx = true} : vector<2x16x1xf32> -> vector<2x16x1xf32>
    %92 = vector.broadcast %91 : vector<2x16x1xf32> to vector<2x16x16xf32>
    %93 = arith.mulf %88, %92 : vector<2x16x16xf32>
    %c0_69 = arith.constant 0 : index
    %c0_70 = arith.constant 0 : index
    %c0_71 = arith.constant 0 : index
    %94 = vector.load %arg24[%c0_69, %c0_70, %c0_71] : memref<2x16x16xf32, #tpu.memory_space<vmem>>, vector<2x16x16xf32>
    tpu.vector_store %arg24[%c0_69, %c0_70, %c0_71], %93 {strides = array<i32>} : memref<2x16x16xf32, #tpu.memory_space<vmem>>, vector<2x16x16xf32>,
    %c0_72 = arith.constant 0 : index
    %c1_73 = arith.constant 1 : index
    %c1_74 = arith.constant 1 : index
    %95 = vector.load %arg24[%c0_72, %c1_73, %c1_74] : memref<2x16x16xf32, #tpu.memory_space<vmem>>, vector<2x8x8xf32>
    %c0_75 = arith.constant 0 : index
    %c1_76 = arith.constant 1 : index
    %c0_77 = arith.constant 0 : index
    %c0_78 = arith.constant 0 : index
    %96 = vector.load %arg19[%c0_75, %c1_76, %c0_77, %c0_78] : memref<2x4x16x16xf32, #tpu.memory_space<vmem>>, vector<2x1x8x8xf32>
    %97 = vector.shape_cast %96 : vector<2x1x8x8xf32> to vector<2x8x8xf32>
    %98 = vector.shape_cast %95 : vector<2x8x8xf32> to vector<2x1x8x8xf32>
    tpu.vector_store %arg19[%c0_75, %c1_76, %c0_77, %c0_78], %98 {strides = array<i32>} : memref<2x4x16x16xf32, #tpu.memory_space<vmem>>, vector<2x1x8x8xf32>,
    "tpu.trace_start"() <{level = 10 : i32, message = "bqk,bkd->bqd"}> : () -> ()
    %cst_79 = arith.constant dense<0.000000e+00> : vector<2x16x8xf32>
    %99 = tpu.matmul %93, %79, %cst_79 {dimension_numbers = #tpu.dot_dimension_numbers<[2], [1], [1], [2], [0, 0, 0, 1, 1, 2], [0], [0]>} : vector<2x16x16xf32>, vector<2x16x8xf32>, vector<2x16x8xf32> -> vector<2x16x8xf32>
    "tpu.trace_stop"() : () -> ()
    %c0_80 = arith.constant 0 : index
    %c0_81 = arith.constant 0 : index
    %c8_82 = arith.constant 8 : index
    %100 = vector.load %arg23[%c0_80, %c0_81, %c8_82] : memref<2x16x32xf32, #tpu.memory_space<vmem>>, vector<2x16x8xf32>
    tpu.vector_store %arg23[%c0_80, %c0_81, %c8_82], %99 {strides = array<i32>} : memref<2x16x32xf32, #tpu.memory_space<vmem>>, vector<2x16x8xf32>,
    %c0_83 = arith.constant 0 : index
    %c0_84 = arith.constant 0 : index
    %c16 = arith.constant 16 : index
    %101 = vector.load %arg22[%c0_83, %c0_84, %c16] : memref<2x16x96xf32, #tpu.memory_space<vmem>>, vector<2x16x8xf32>
    %c0_85 = arith.constant 0 : index
    %c0_86 = arith.constant 0 : index
    %c48 = arith.constant 48 : index
    %102 = vector.load %arg22[%c0_85, %c0_86, %c48] : memref<2x16x96xf32, #tpu.memory_space<vmem>>, vector<2x16x8xf32>
    %c0_87 = arith.constant 0 : index
    %c0_88 = arith.constant 0 : index
    %c80 = arith.constant 80 : index
    %103 = vector.load %arg22[%c0_87, %c0_88, %c80] : memref<2x16x96xf32, #tpu.memory_space<vmem>>, vector<2x16x8xf32>
    "tpu.trace_start"() <{level = 10 : i32, message = "bqd,bkd->bqk"}> : () -> ()
    %cst_89 = arith.constant dense<0.000000e+00> : vector<2x16x16xf32>
    %104 = tpu.matmul %101, %102, %cst_89 {dimension_numbers = #tpu.dot_dimension_numbers<[2], [2], [1], [1], [0, 0, 0, 1, 1, 1], [0], [0]>} : vector<2x16x8xf32>, vector<2x16x8xf32>, vector<2x16x16xf32> -> vector<2x16x16xf32>
    "tpu.trace_stop"() : () -> ()
    %105 = vector.shape_cast %50 : vector<16x16xf32> to vector<1x16x16xf32>
    %106 = vector.broadcast %105 : vector<1x16x16xf32> to vector<2x16x16xf32>
    %107 = arith.addf %104, %106 : vector<2x16x16xf32>
    %cst_90 = arith.constant dense<0xFF800000> : vector<2x16xf32>
    %108 = vector.multi_reduction <maximumf>, %107, %cst_90 [2] : vector<2x16x16xf32> to vector<2x16xf32>
    %109 = vector.shape_cast %108 : vector<2x16xf32> to vector<2x16x1xf32>
    %110 = vector.broadcast %109 : vector<2x16x1xf32> to vector<2x16x16xf32>
    %111 = arith.subf %107, %110 : vector<2x16x16xf32>
    %112 = math.exp %111 : vector<2x16x16xf32>
    %cst_91 = arith.constant dense<0.000000e+00> : vector<2x16xf32>
    %113 = vector.multi_reduction <add>, %112, %cst_91 [2] : vector<2x16x16xf32> to vector<2x16xf32>
    %114 = vector.shape_cast %113 : vector<2x16xf32> to vector<2x16x1xf32>
    %115 = tpu.reciprocal %114 {approx = true} : vector<2x16x1xf32> -> vector<2x16x1xf32>
    %116 = vector.broadcast %115 : vector<2x16x1xf32> to vector<2x16x16xf32>
    %117 = arith.mulf %112, %116 : vector<2x16x16xf32>
    %c0_92 = arith.constant 0 : index
    %c0_93 = arith.constant 0 : index
    %c0_94 = arith.constant 0 : index
    %118 = vector.load %arg24[%c0_92, %c0_93, %c0_94] : memref<2x16x16xf32, #tpu.memory_space<vmem>>, vector<2x16x16xf32>
    tpu.vector_store %arg24[%c0_92, %c0_93, %c0_94], %117 {strides = array<i32>} : memref<2x16x16xf32, #tpu.memory_space<vmem>>, vector<2x16x16xf32>,
    %c0_95 = arith.constant 0 : index
    %c1_96 = arith.constant 1 : index
    %c1_97 = arith.constant 1 : index
    %119 = vector.load %arg24[%c0_95, %c1_96, %c1_97] : memref<2x16x16xf32, #tpu.memory_space<vmem>>, vector<2x8x8xf32>
    %c0_98 = arith.constant 0 : index
    %c2 = arith.constant 2 : index
    %c0_99 = arith.constant 0 : index
    %c0_100 = arith.constant 0 : index
    %120 = vector.load %arg19[%c0_98, %c2, %c0_99, %c0_100] : memref<2x4x16x16xf32, #tpu.memory_space<vmem>>, vector<2x1x8x8xf32>
    %121 = vector.shape_cast %120 : vector<2x1x8x8xf32> to vector<2x8x8xf32>
    %122 = vector.shape_cast %119 : vector<2x8x8xf32> to vector<2x1x8x8xf32>
    tpu.vector_store %arg19[%c0_98, %c2, %c0_99, %c0_100], %122 {strides = array<i32>} : memref<2x4x16x16xf32, #tpu.memory_space<vmem>>, vector<2x1x8x8xf32>,
    "tpu.trace_start"() <{level = 10 : i32, message = "bqk,bkd->bqd"}> : () -> ()
    %cst_101 = arith.constant dense<0.000000e+00> : vector<2x16x8xf32>
    %123 = tpu.matmul %117, %103, %cst_101 {dimension_numbers = #tpu.dot_dimension_numbers<[2], [1], [1], [2], [0, 0, 0, 1, 1, 2], [0], [0]>} : vector<2x16x16xf32>, vector<2x16x8xf32>, vector<2x16x8xf32> -> vector<2x16x8xf32>
    "tpu.trace_stop"() : () -> ()
    %c0_102 = arith.constant 0 : index
    %c0_103 = arith.constant 0 : index
    %c16_104 = arith.constant 16 : index
    %124 = vector.load %arg23[%c0_102, %c0_103, %c16_104] : memref<2x16x32xf32, #tpu.memory_space<vmem>>, vector<2x16x8xf32>
    tpu.vector_store %arg23[%c0_102, %c0_103, %c16_104], %123 {strides = array<i32>} : memref<2x16x32xf32, #tpu.memory_space<vmem>>, vector<2x16x8xf32>,
    %c0_105 = arith.constant 0 : index
    %c0_106 = arith.constant 0 : index
    %c24 = arith.constant 24 : index
    %125 = vector.load %arg22[%c0_105, %c0_106, %c24] : memref<2x16x96xf32, #tpu.memory_space<vmem>>, vector<2x16x8xf32>
    %c0_107 = arith.constant 0 : index
    %c0_108 = arith.constant 0 : index
    %c56 = arith.constant 56 : index
    %126 = vector.load %arg22[%c0_107, %c0_108, %c56] : memref<2x16x96xf32, #tpu.memory_space<vmem>>, vector<2x16x8xf32>
    %c0_109 = arith.constant 0 : index
    %c0_110 = arith.constant 0 : index
    %c88 = arith.constant 88 : index
    %127 = vector.load %arg22[%c0_109, %c0_110, %c88] : memref<2x16x96xf32, #tpu.memory_space<vmem>>, vector<2x16x8xf32>
    "tpu.trace_start"() <{level = 10 : i32, message = "bqd,bkd->bqk"}> : () -> ()
    %cst_111 = arith.constant dense<0.000000e+00> : vector<2x16x16xf32>
    %128 = tpu.matmul %125, %126, %cst_111 {dimension_numbers = #tpu.dot_dimension_numbers<[2], [2], [1], [1], [0, 0, 0, 1, 1, 1], [0], [0]>} : vector<2x16x8xf32>, vector<2x16x8xf32>, vector<2x16x16xf32> -> vector<2x16x16xf32>
    "tpu.trace_stop"() : () -> ()
    %129 = vector.shape_cast %50 : vector<16x16xf32> to vector<1x16x16xf32>
    %130 = vector.broadcast %129 : vector<1x16x16xf32> to vector<2x16x16xf32>
    %131 = arith.addf %128, %130 : vector<2x16x16xf32>
    %cst_112 = arith.constant dense<0xFF800000> : vector<2x16xf32>
    %132 = vector.multi_reduction <maximumf>, %131, %cst_112 [2] : vector<2x16x16xf32> to vector<2x16xf32>
    %133 = vector.shape_cast %132 : vector<2x16xf32> to vector<2x16x1xf32>
    %134 = vector.broadcast %133 : vector<2x16x1xf32> to vector<2x16x16xf32>
    %135 = arith.subf %131, %134 : vector<2x16x16xf32>
    %136 = math.exp %135 : vector<2x16x16xf32>
    %cst_113 = arith.constant dense<0.000000e+00> : vector<2x16xf32>
    %137 = vector.multi_reduction <add>, %136, %cst_113 [2] : vector<2x16x16xf32> to vector<2x16xf32>
    %138 = vector.shape_cast %137 : vector<2x16xf32> to vector<2x16x1xf32>
    %139 = tpu.reciprocal %138 {approx = true} : vector<2x16x1xf32> -> vector<2x16x1xf32>
    %140 = vector.broadcast %139 : vector<2x16x1xf32> to vector<2x16x16xf32>
    %141 = arith.mulf %136, %140 : vector<2x16x16xf32>
    %c0_114 = arith.constant 0 : index
    %c0_115 = arith.constant 0 : index
    %c0_116 = arith.constant 0 : index
    %142 = vector.load %arg24[%c0_114, %c0_115, %c0_116] : memref<2x16x16xf32, #tpu.memory_space<vmem>>, vector<2x16x16xf32>
    tpu.vector_store %arg24[%c0_114, %c0_115, %c0_116], %141 {strides = array<i32>} : memref<2x16x16xf32, #tpu.memory_space<vmem>>, vector<2x16x16xf32>,
    %c0_117 = arith.constant 0 : index
    %c1_118 = arith.constant 1 : index
    %c1_119 = arith.constant 1 : index
    %143 = vector.load %arg24[%c0_117, %c1_118, %c1_119] : memref<2x16x16xf32, #tpu.memory_space<vmem>>, vector<2x8x8xf32>
    %c0_120 = arith.constant 0 : index
    %c3 = arith.constant 3 : index
    %c0_121 = arith.constant 0 : index
    %c0_122 = arith.constant 0 : index
    %144 = vector.load %arg19[%c0_120, %c3, %c0_121, %c0_122] : memref<2x4x16x16xf32, #tpu.memory_space<vmem>>, vector<2x1x8x8xf32>
    %145 = vector.shape_cast %144 : vector<2x1x8x8xf32> to vector<2x8x8xf32>
    %146 = vector.shape_cast %143 : vector<2x8x8xf32> to vector<2x1x8x8xf32>
    tpu.vector_store %arg19[%c0_120, %c3, %c0_121, %c0_122], %146 {strides = array<i32>} : memref<2x4x16x16xf32, #tpu.memory_space<vmem>>, vector<2x1x8x8xf32>,
    "tpu.trace_start"() <{level = 10 : i32, message = "bqk,bkd->bqd"}> : () -> ()
    %cst_123 = arith.constant dense<0.000000e+00> : vector<2x16x8xf32>
    %147 = tpu.matmul %141, %127, %cst_123 {dimension_numbers = #tpu.dot_dimension_numbers<[2], [1], [1], [2], [0, 0, 0, 1, 1, 2], [0], [0]>} : vector<2x16x16xf32>, vector<2x16x8xf32>, vector<2x16x8xf32> -> vector<2x16x8xf32>
    "tpu.trace_stop"() : () -> ()
    %c0_124 = arith.constant 0 : index
    %c0_125 = arith.constant 0 : index
    %c24_126 = arith.constant 24 : index
    %148 = vector.load %arg23[%c0_124, %c0_125, %c24_126] : memref<2x16x32xf32, #tpu.memory_space<vmem>>, vector<2x16x8xf32>
    tpu.vector_store %arg23[%c0_124, %c0_125, %c24_126], %147 {strides = array<i32>} : memref<2x16x32xf32, #tpu.memory_space<vmem>>, vector<2x16x8xf32>,
    %c0_127 = arith.constant 0 : index
    %c0_128 = arith.constant 0 : index
    %c0_129 = arith.constant 0 : index
    %149 = vector.load %arg23[%c0_127, %c0_128, %c0_129] : memref<2x16x32xf32, #tpu.memory_space<vmem>>, vector<2x16x32xf32>
    %150 = vector.shape_cast %149 : vector<2x16x32xf32> to vector<32x32xf32>
    %c0_130 = arith.constant 0 : index
    %c0_131 = arith.constant 0 : index
    %c0_132 = arith.constant 0 : index
    %151 = vector.load %arg9[%c0_130, %c0_131, %c0_132] : memref<1x32x32xf32, #tpu.memory_space<vmem>>, vector<1x32x32xf32>
    %152 = vector.shape_cast %151 : vector<1x32x32xf32> to vector<32x32xf32>
    %cst_133 = arith.constant dense<0.000000e+00> : vector<32x32xf32>
    %153 = tpu.matmul %150, %152, %cst_133 {dimension_numbers = #tpu.dot_dimension_numbers<[1], [0], [0], [1], [0, 0, 1, 1], [], []>} : vector<32x32xf32>, vector<32x32xf32>, vector<32x32xf32> -> vector<32x32xf32>
    %c0_134 = arith.constant 0 : index
    %c0_135 = arith.constant 0 : index
    %c0_136 = arith.constant 0 : index
    %154 = vector.load %arg10[%c0_134, %c0_135, %c0_136] : memref<1x1x32xf32, #tpu.memory_space<vmem>>, vector<1x1x32xf32>
    %155 = vector.shape_cast %154 : vector<1x1x32xf32> to vector<1x32xf32>
    %156 = vector.broadcast %155 : vector<1x32xf32> to vector<32x32xf32>
    %157 = arith.addf %153, %156 : vector<32x32xf32>
    %158 = vector.shape_cast %157 : vector<32x32xf32> to vector<2x16x32xf32>
    %159 = arith.addf %3, %158 : vector<2x16x32xf32>
    %160 = vector.shape_cast %159 : vector<2x16x32xf32> to vector<32x32xf32>
    %c0_137 = arith.constant 0 : index
    %c0_138 = arith.constant 0 : index
    %c0_139 = arith.constant 0 : index
    %161 = vector.load %arg11[%c0_137, %c0_138, %c0_139] : memref<1x1x32xf32, #tpu.memory_space<vmem>>, vector<1x1x32xf32>
    %162 = vector.shape_cast %161 : vector<1x1x32xf32> to vector<1x32xf32>
    %c0_140 = arith.constant 0 : index
    %c0_141 = arith.constant 0 : index
    %c0_142 = arith.constant 0 : index
    %163 = vector.load %arg12[%c0_140, %c0_141, %c0_142] : memref<1x1x32xf32, #tpu.memory_space<vmem>>, vector<1x1x32xf32>
    %164 = vector.shape_cast %163 : vector<1x1x32xf32> to vector<1x32xf32>
    %cst_143 = arith.constant dense<0.000000e+00> : vector<32xf32>
    %165 = vector.multi_reduction <add>, %160, %cst_143 [1] : vector<32x32xf32> to vector<32xf32>
    %166 = vector.shape_cast %165 : vector<32xf32> to vector<32x1xf32>
    %cst_144 = arith.constant 3.200000e+01 : f32
    %167 = vector.broadcast %cst_144 : f32 to vector<32x1xf32>
    %168 = arith.divf %166, %167 : vector<32x1xf32>
    %169 = vector.broadcast %168 : vector<32x1xf32> to vector<32x32xf32>
    %170 = arith.subf %160, %169 : vector<32x32xf32>
    %171 = arith.mulf %170, %170 : vector<32x32xf32>
    %cst_145 = arith.constant dense<0.000000e+00> : vector<32xf32>
    %172 = vector.multi_reduction <add>, %171, %cst_145 [1] : vector<32x32xf32> to vector<32xf32>
    %173 = vector.shape_cast %172 : vector<32xf32> to vector<32x1xf32>
    %cst_146 = arith.constant 3.200000e+01 : f32
    %174 = vector.broadcast %cst_146 : f32 to vector<32x1xf32>
    %175 = arith.divf %173, %174 : vector<32x1xf32>
    %cst_147 = arith.constant 9.99999974E-6 : f32
    %176 = vector.broadcast %cst_147 : f32 to vector<32x1xf32>
    %177 = arith.addf %175, %176 : vector<32x1xf32>
    %178 = math.rsqrt %177 : vector<32x1xf32>
    %179 = vector.broadcast %178 : vector<32x1xf32> to vector<32x32xf32>
    %180 = arith.mulf %170, %179 : vector<32x32xf32>
    %181 = vector.broadcast %162 : vector<1x32xf32> to vector<32x32xf32>
    %182 = arith.mulf %180, %181 : vector<32x32xf32>
    %183 = vector.broadcast %164 : vector<1x32xf32> to vector<32x32xf32>
    %184 = arith.addf %182, %183 : vector<32x32xf32>
    %c0_148 = arith.constant 0 : index
    %c0_149 = arith.constant 0 : index
    %c0_150 = arith.constant 0 : index
    %185 = vector.load %arg13[%c0_148, %c0_149, %c0_150] : memref<1x32x64xf32, #tpu.memory_space<vmem>>, vector<1x32x64xf32>
    %186 = vector.shape_cast %185 : vector<1x32x64xf32> to vector<32x64xf32>
    %cst_151 = arith.constant dense<0.000000e+00> : vector<32x64xf32>
    %187 = tpu.matmul %184, %186, %cst_151 {dimension_numbers = #tpu.dot_dimension_numbers<[1], [0], [0], [1], [0, 0, 1, 1], [], []>} : vector<32x32xf32>, vector<32x64xf32>, vector<32x64xf32> -> vector<32x64xf32>
    %c0_152 = arith.constant 0 : index
    %c0_153 = arith.constant 0 : index
    %c0_154 = arith.constant 0 : index
    %188 = vector.load %arg14[%c0_152, %c0_153, %c0_154] : memref<1x1x64xf32, #tpu.memory_space<vmem>>, vector<1x1x64xf32>
    %189 = vector.shape_cast %188 : vector<1x1x64xf32> to vector<1x64xf32>
    %190 = vector.broadcast %189 : vector<1x64xf32> to vector<32x64xf32>
    %191 = arith.addf %187, %190 : vector<32x64xf32>
    %cst_155 = arith.constant 5.000000e-01 : f32
    %192 = vector.broadcast %cst_155 : f32 to vector<32x64xf32>
    %193 = arith.mulf %192, %191 : vector<32x64xf32>
    %cst_156 = arith.constant 4.471500e-02 : f32
    %194 = vector.broadcast %cst_156 : f32 to vector<32x64xf32>
    %195 = arith.mulf %194, %191 : vector<32x64xf32>
    %196 = arith.mulf %195, %191 : vector<32x64xf32>
    %197 = arith.mulf %196, %191 : vector<32x64xf32>
    %198 = arith.addf %191, %197 : vector<32x64xf32>
    %cst_157 = arith.constant 0.797884583 : f32
    %199 = vector.broadcast %cst_157 : f32 to vector<32x64xf32>
    %200 = arith.mulf %199, %198 : vector<32x64xf32>
    %201 = math.tanh %200 : vector<32x64xf32>
    %cst_158 = arith.constant 1.000000e+00 : f32
    %202 = vector.broadcast %cst_158 : f32 to vector<32x64xf32>
    %203 = arith.addf %202, %201 : vector<32x64xf32>
    %204 = arith.mulf %193, %203 : vector<32x64xf32>
    %c0_159 = arith.constant 0 : index
    %c0_160 = arith.constant 0 : index
    %c0_161 = arith.constant 0 : index
    %205 = vector.load %arg15[%c0_159, %c0_160, %c0_161] : memref<1x64x32xf32, #tpu.memory_space<vmem>>, vector<1x64x32xf32>
    %206 = vector.shape_cast %205 : vector<1x64x32xf32> to vector<64x32xf32>
    %cst_162 = arith.constant dense<0.000000e+00> : vector<32x32xf32>
    %207 = tpu.matmul %204, %206, %cst_162 {dimension_numbers = #tpu.dot_dimension_numbers<[1], [0], [0], [1], [0, 0, 1, 1], [], []>} : vector<32x64xf32>, vector<64x32xf32>, vector<32x32xf32> -> vector<32x32xf32>
    %c0_163 = arith.constant 0 : index
    %c0_164 = arith.constant 0 : index
    %c0_165 = arith.constant 0 : index
    %208 = vector.load %arg16[%c0_163, %c0_164, %c0_165] : memref<1x1x32xf32, #tpu.memory_space<vmem>>, vector<1x1x32xf32>
    %209 = vector.shape_cast %208 : vector<1x1x32xf32> to vector<1x32xf32>
    %210 = vector.broadcast %209 : vector<1x32xf32> to vector<32x32xf32>
    %211 = arith.addf %207, %210 : vector<32x32xf32>
    %212 = vector.shape_cast %211 : vector<32x32xf32> to vector<2x16x32xf32>
    %213 = arith.addf %159, %212 : vector<2x16x32xf32>
    %c0_166 = arith.constant 0 : index
    %c0_167 = arith.constant 0 : index
    %c0_168 = arith.constant 0 : index
    %214 = vector.load %arg21[%c0_166, %c0_167, %c0_168] : memref<2x16x32xf32, #tpu.memory_space<vmem>>, vector<2x16x32xf32>
    tpu.vector_store %arg21[%c0_166, %c0_167, %c0_168], %213 {strides = array<i32>} : memref<2x16x32xf32, #tpu.memory_space<vmem>>, vector<2x16x32xf32>,
    %c1_i32 = arith.constant 1 : i32
    %215 = arith.cmpi eq, %arg0, %c1_i32 : i32
    %216 = arith.extui %215 : i1 to i32
    %c0_i32_169 = arith.constant 0 : i32
    %217 = arith.cmpi ne, %216, %c0_i32_169 : i32
    scf.if %217 {
      %218 = vector.shape_cast %213 : vector<2x16x32xf32> to vector<32x32xf32>
      %c0_170 = arith.constant 0 : index
      %c0_171 = arith.constant 0 : index
      %219 = vector.load %arg17[%c0_170, %c0_171] : memref<1x32xf32, #tpu.memory_space<vmem>>, vector<1x32xf32>
      %c0_172 = arith.constant 0 : index
      %c0_173 = arith.constant 0 : index
      %220 = vector.load %arg18[%c0_172, %c0_173] : memref<1x32xf32, #tpu.memory_space<vmem>>, vector<1x32xf32>
      %cst_174 = arith.constant dense<0.000000e+00> : vector<32xf32>
      %221 = vector.multi_reduction <add>, %218, %cst_174 [1] : vector<32x32xf32> to vector<32xf32>
      %222 = vector.shape_cast %221 : vector<32xf32> to vector<32x1xf32>
      %cst_175 = arith.constant 3.200000e+01 : f32
      %223 = vector.broadcast %cst_175 : f32 to vector<32x1xf32>
      %224 = arith.divf %222, %223 : vector<32x1xf32>
      %225 = vector.broadcast %224 : vector<32x1xf32> to vector<32x32xf32>
      %226 = arith.subf %218, %225 : vector<32x32xf32>
      %227 = arith.mulf %226, %226 : vector<32x32xf32>
      %cst_176 = arith.constant dense<0.000000e+00> : vector<32xf32>
      %228 = vector.multi_reduction <add>, %227, %cst_176 [1] : vector<32x32xf32> to vector<32xf32>
      %229 = vector.shape_cast %228 : vector<32xf32> to vector<32x1xf32>
      %cst_177 = arith.constant 3.200000e+01 : f32
      %230 = vector.broadcast %cst_177 : f32 to vector<32x1xf32>
      %231 = arith.divf %229, %230 : vector<32x1xf32>
      %cst_178 = arith.constant 9.99999974E-6 : f32
      %232 = vector.broadcast %cst_178 : f32 to vector<32x1xf32>
      %233 = arith.addf %231, %232 : vector<32x1xf32>
      %234 = math.rsqrt %233 : vector<32x1xf32>
      %235 = vector.broadcast %234 : vector<32x1xf32> to vector<32x32xf32>
      %236 = arith.mulf %226, %235 : vector<32x32xf32>
      %237 = vector.broadcast %219 : vector<1x32xf32> to vector<32x32xf32>
      %238 = arith.mulf %236, %237 : vector<32x32xf32>
      %239 = vector.broadcast %220 : vector<1x32xf32> to vector<32x32xf32>
      %240 = arith.addf %238, %239 : vector<32x32xf32>
      %241 = vector.shape_cast %240 : vector<32x32xf32> to vector<2x16x32xf32>
      %c0_179 = arith.constant 0 : index
      %c0_180 = arith.constant 0 : index
      %c0_181 = arith.constant 0 : index
      %242 = vector.load %arg25[%c0_179, %c0_180, %c0_181] : memref<2x16x32xf32, #tpu.memory_space<vmem>>, vector<2x16x32xf32>
      tpu.vector_store %arg25[%c0_179, %c0_180, %c0_181], %241 {strides = array<i32>} : memref<2x16x32xf32, #tpu.memory_space<vmem>>, vector<2x16x32xf32>,
      %c0_182 = arith.constant 0 : index
      %c1_183 = arith.constant 1 : index
      %c0_184 = arith.constant 0 : index
      %243 = vector.load %arg25[%c0_182, %c1_183, %c0_184] : memref<2x16x32xf32, #tpu.memory_space<vmem>>, vector<2x8x32xf32>
      %cst_185 = arith.constant dense<0xFF800000> : vector<2x8xf32>
      %244 = vector.multi_reduction <maximumf>, %243, %cst_185 [2] : vector<2x8x32xf32> to vector<2x8xf32>
      %245 = vector.shape_cast %244 : vector<2x8xf32> to vector<2x8x1xf32>
      %246 = vector.broadcast %245 : vector<2x8x1xf32> to vector<2x8x32xf32>
      %247 = arith.subf %243, %246 : vector<2x8x32xf32>
      %248 = math.exp %247 : vector<2x8x32xf32>
      %cst_186 = arith.constant dense<0.000000e+00> : vector<2x8xf32>
      %249 = vector.multi_reduction <add>, %248, %cst_186 [2] : vector<2x8x32xf32> to vector<2x8xf32>
      %250 = vector.shape_cast %249 : vector<2x8xf32> to vector<2x8x1xf32>
      %251 = tpu.reciprocal %250 {approx = true} : vector<2x8x1xf32> -> vector<2x8x1xf32>
      %252 = vector.broadcast %251 : vector<2x8x1xf32> to vector<2x8x32xf32>
      %253 = arith.mulf %248, %252 : vector<2x8x32xf32>
      %c0_187 = arith.constant 0 : index
      %c0_188 = arith.constant 0 : index
      %c0_189 = arith.constant 0 : index
      %254 = vector.load %arg20[%c0_187, %c0_188, %c0_189] : memref<2x16x32xf32, #tpu.memory_space<vmem>>, vector<2x8x32xf32>
      tpu.vector_store %arg20[%c0_187, %c0_188, %c0_189], %253 {strides = array<i32>} : memref<2x16x32xf32, #tpu.memory_space<vmem>>, vector<2x8x32xf32>,
      %cst_190 = arith.constant 3.125000e-02 : f32
      %255 = vector.broadcast %cst_190 : f32 to vector<2x8x32xf32>
      %c0_191 = arith.constant 0 : index
      %c8_192 = arith.constant 8 : index
      %c0_193 = arith.constant 0 : index
      %256 = vector.load %arg20[%c0_191, %c8_192, %c0_193] : memref<2x16x32xf32, #tpu.memory_space<vmem>>, vector<2x8x32xf32>
      tpu.vector_store %arg20[%c0_191, %c8_192, %c0_193], %255 {strides = array<i32>} : memref<2x16x32xf32, #tpu.memory_space<vmem>>, vector<2x8x32xf32>,
    } else {
    }
    return
  }
  func.func @transform_0(%arg0: i32) -> (i32, i32, i32) {
    %c0_i32 = arith.constant 0 : i32
    %c0_i32_0 = arith.constant 0 : i32
    %c0_i32_1 = arith.constant 0 : i32
    %c0_i32_2 = arith.constant 0 : i32
    return %c0_i32, %c0_i32_0, %c0_i32_1 : i32, i32, i32
  }
  func.func @transform_1(%arg0: i32) -> (i32, i32) {
    %c0_i32 = arith.constant 0 : i32
    %c0_i32_0 = arith.constant 0 : i32
    %c0_i32_1 = arith.constant 0 : i32
    return %c0_i32, %c0_i32_0 : i32, i32
  }
  func.func @transform_2(%arg0: i32) -> (i32, i32) {
    %c0_i32 = arith.constant 0 : i32
    %c0_i32_0 = arith.constant 0 : i32
    %c0_i32_1 = arith.constant 0 : i32
    return %c0_i32, %c0_i32_0 : i32, i32
  }
  func.func @transform_3(%arg0: i32) -> (i32, i32) {
    %c0_i32 = arith.constant 0 : i32
    %c0_i32_0 = arith.constant 0 : i32
    %c0_i32_1 = arith.constant 0 : i32
    return %c0_i32, %c0_i32_0 : i32, i32
  }
  func.func @transform_4(%arg0: i32) -> (i32, i32, i32) {
    %c0_i32 = arith.constant 0 : i32
    %c0_i32_0 = arith.constant 0 : i32
    %c0_i32_1 = arith.constant 0 : i32
    return %arg0, %c0_i32, %c0_i32_0 : i32, i32, i32
  }
  func.func @transform_5(%arg0: i32) -> (i32, i32, i32) {
    %c0_i32 = arith.constant 0 : i32
    %c0_i32_0 = arith.constant 0 : i32
    %c0_i32_1 = arith.constant 0 : i32
    return %arg0, %c0_i32, %c0_i32_0 : i32, i32, i32
  }
  func.func @transform_6(%arg0: i32) -> (i32, i32, i32) {
    %c0_i32 = arith.constant 0 : i32
    %c0_i32_0 = arith.constant 0 : i32
    %c0_i32_1 = arith.constant 0 : i32
    return %arg0, %c0_i32, %c0_i32_0 : i32, i32, i32
  }
  func.func @transform_7(%arg0: i32) -> (i32, i32, i32) {
    %c0_i32 = arith.constant 0 : i32
    %c0_i32_0 = arith.constant 0 : i32
    %c0_i32_1 = arith.constant 0 : i32
    return %arg0, %c0_i32, %c0_i32_0 : i32, i32, i32
  }
  func.func @transform_8(%arg0: i32) -> (i32, i32, i32) {
    %c0_i32 = arith.constant 0 : i32
    %c0_i32_0 = arith.constant 0 : i32
    %c0_i32_1 = arith.constant 0 : i32
    return %arg0, %c0_i32, %c0_i32_0 : i32, i32, i32
  }
  func.func @transform_9(%arg0: i32) -> (i32, i32, i32) {
    %c0_i32 = arith.constant 0 : i32
    %c0_i32_0 = arith.constant 0 : i32
    %c0_i32_1 = arith.constant 0 : i32
    return %arg0, %c0_i32, %c0_i32_0 : i32, i32, i32
  }
  func.func @transform_10(%arg0: i32) -> (i32, i32, i32) {
    %c0_i32 = arith.constant 0 : i32
    %c0_i32_0 = arith.constant 0 : i32
    %c0_i32_1 = arith.constant 0 : i32
    return %arg0, %c0_i32, %c0_i32_0 : i32, i32, i32
  }
  func.func @transform_11(%arg0: i32) -> (i32, i32, i32) {
    %c0_i32 = arith.constant 0 : i32
    %c0_i32_0 = arith.constant 0 : i32
    %c0_i32_1 = arith.constant 0 : i32
    return %arg0, %c0_i32, %c0_i32_0 : i32, i32, i32
  }
  func.func @transform_12(%arg0: i32) -> (i32, i32, i32) {
    %c0_i32 = arith.constant 0 : i32
    %c0_i32_0 = arith.constant 0 : i32
    %c0_i32_1 = arith.constant 0 : i32
    return %arg0, %c0_i32, %c0_i32_0 : i32, i32, i32
  }
  func.func @transform_13(%arg0: i32) -> (i32, i32, i32) {
    %c0_i32 = arith.constant 0 : i32
    %c0_i32_0 = arith.constant 0 : i32
    %c0_i32_1 = arith.constant 0 : i32
    return %arg0, %c0_i32, %c0_i32_0 : i32, i32, i32
  }
  func.func @transform_14(%arg0: i32) -> (i32, i32, i32) {
    %c0_i32 = arith.constant 0 : i32
    %c0_i32_0 = arith.constant 0 : i32
    %c0_i32_1 = arith.constant 0 : i32
    return %arg0, %c0_i32, %c0_i32_0 : i32, i32, i32
  }
  func.func @transform_15(%arg0: i32) -> (i32, i32, i32) {
    %c0_i32 = arith.constant 0 : i32
    %c0_i32_0 = arith.constant 0 : i32
    %c0_i32_1 = arith.constant 0 : i32
    return %arg0, %c0_i32, %c0_i32_0 : i32, i32, i32
  }
  func.func @transform_16(%arg0: i32) -> (i32, i32) {
    %c0_i32 = arith.constant 0 : i32
    %c0_i32_0 = arith.constant 0 : i32
    %c0_i32_1 = arith.constant 0 : i32
    return %c0_i32, %c0_i32_0 : i32, i32
  }
  func.func @transform_17(%arg0: i32) -> (i32, i32) {
    %c0_i32 = arith.constant 0 : i32
    %c0_i32_0 = arith.constant 0 : i32
    %c0_i32_1 = arith.constant 0 : i32
    return %c0_i32, %c0_i32_0 : i32, i32
  }
  func.func @transform_18(%arg0: i32) -> (i32, i32, i32, i32) {
    %c0_i32 = arith.constant 0 : i32
    %c0_i32_0 = arith.constant 0 : i32
    %c0_i32_1 = arith.constant 0 : i32
    %c0_i32_2 = arith.constant 0 : i32
    return %c0_i32, %arg0, %c0_i32_0, %c0_i32_1 : i32, i32, i32, i32
  }
  func.func @transform_19(%arg0: i32) -> (i32, i32, i32) {
    %c0_i32 = arith.constant 0 : i32
    %c0_i32_0 = arith.constant 0 : i32
    %c0_i32_1 = arith.constant 0 : i32
    %c0_i32_2 = arith.constant 0 : i32
    return %c0_i32, %c0_i32_0, %c0_i32_1 : i32, i32, i32
  }
}

</mosaic_0001>

<llo_original>
// kernel: rna_esm2_forward.1
$region0: #{rna_esm2_forward.1}
  #allocation0 [shape = 'u32[]', space=smem, size = 0x4, offset = 0x4, fixed_abs, tag = 'smem constant byte address 0x4 - core index']
  #allocation1 [shape = 'u32[72,128]{1,0:T(1,128)}', space=vmem, size = 0x9000, scoped, tag = 'internal scratch']
  #allocation2 [shape = 'f32[2,16,32]{2,1,0:T(8,128)}', space=vmem, size = 0x4000, scoped, tag = 'scratch operand']
  #allocation3 [shape = 'f32[2,16,96]{2,1,0:T(8,128)}', space=vmem, size = 0x4000, scoped, tag = 'scratch operand']
  #allocation4 [shape = 'f32[2,16,32]{2,1,0:T(8,128)}', space=vmem, size = 0x4000, scoped, tag = 'scratch operand']
  #allocation5 [shape = 'f32[2,16,16]{2,1,0:T(8,128)}', space=vmem, size = 0x4000, scoped, tag = 'scratch operand']
  #allocation6 [shape = 'f32[2,16,32]{2,1,0:T(8,128)}', space=vmem, size = 0x4000, scoped, tag = 'scratch operand']
  #allocation11 [shape = 's32[]', space=sflag, size = 0x4, offset = 0, fixed_abs, tag = 'sflag constant byte address 0x0 - dummy sync flag']
  %s0 = inlined_call_operand.vmem [shape: f32[2,16,32], index: 0, kind: input, shape index: {}]
  %s1 = inlined_call_operand.vmem [shape: f32[32,96], index: 1, kind: input, shape index: {}]
  %s2 = inlined_call_operand.vmem [shape: f32[32,96], index: 2, kind: input, shape index: {}]
  %s3 = inlined_call_operand.vmem [shape: f32[96,96], index: 3, kind: input, shape index: {}]
  %s4 = inlined_call_operand.vmem [shape: f32[2,1,32], index: 4, kind: input, shape index: {}]
  %s5 = inlined_call_operand.vmem [shape: f32[2,1,32], index: 5, kind: input, shape index: {}]
  %s6 = inlined_call_operand.vmem [shape: f32[2,32,96], index: 6, kind: input, shape index: {}]
  %s7 = inlined_call_operand.vmem [shape: f32[2,1,96], index: 7, kind: input, shape index: {}]
  %s8 = inlined_call_operand.vmem [shape: f32[2,32,32], index: 8, kind: input, shape index: {}]
  %s9 = inlined_call_operand.vmem [shape: f32[2,1,32], index: 9, kind: input, shape index: {}]
  %s10 = inlined_call_operand.vmem [shape: f32[2,1,32], index: 10, kind: input, shape index: {}]
  %s11 = inlined_call_operand.vmem [shape: f32[2,1,32], index: 11, kind: input, shape index: {}]
  %s12 = inlined_call_operand.vmem [shape: f32[2,32,64], index: 12, kind: input, shape index: {}]
  %s13 = inlined_call_operand.vmem [shape: f32[2,1,64], index: 13, kind: input, shape index: {}]
  %s14 = inlined_call_operand.vmem [shape: f32[2,64,32], index: 14, kind: input, shape index: {}]
  %s15 = inlined_call_operand.vmem [shape: f32[2,1,32], index: 15, kind: input, shape index: {}]
  %s16 = inlined_call_operand.vmem [shape: f32[1,32], index: 16, kind: input, shape index: {}]
  %s17 = inlined_call_operand.vmem [shape: f32[1,32], index: 17, kind: input, shape index: {}]
  %s18 = inlined_call_operand.hbm [shape: f32[2,8,16,16], index: 18, kind: output, shape index: {0}]
  %s19 = inlined_call_operand.hbm [shape: f32[2,16,32], index: 19, kind: output, shape index: {1}]
  %20 = xla_tuple %s18, %s19
  %s21 = sld [smem:[#allocation0]]
  $region121: #{rna_esm2_forward.1} parent=0
    _
  %s23 = ssub.s32 1, %s21
  %s24 = scalar_select 0, %s23, %s21
  $region1: #{rna_esm2_forward.1} parent=0
    #allocation7 [shape = 'u8[131072]{0}', space=vmem, size = 0x20000, scoped, tag = 'output window, operand 0']
    #allocation8 [shape = 's32[2]{0}', space=sflag, size = 0x8, scoped, tag = 'scoped memory for rna_esm2_forward.1']
    #allocation9 [shape = 'u8[16384]{0}', space=vmem, size = 0x4000, scoped, tag = 'output window, operand 1, single buffered']
    #allocation10 [shape = 's32[1]{0}', space=sflag, size = 0x4, scoped, tag = 'scoped memory for rna_esm2_forward.1']
    %25 = vsyncpa [#allocation8], 0
    %s26 = scalar_lea.sflag [#allocation8], 1
    %27 = vsyncpa %s26, 0
    %28 = vsyncpa [#allocation10], 0
    loop: start=0, step=1, limit=4
    $region2: #{rna_esm2_forward.1} parent=1 // loop_pre_header
      _
    $region3: #{rna_esm2_forward.1} parent=1 // loop_header
      %s30 = sphi 0, %s34
      %p31 = scmp.ge.s32.totalorder %s30, 4
      %s38 = sphi 0, %s38
      %s40 = sphi 0, %s38
      %s41 = sphi 0, %s40
      %s55 = sphi 0, %s41
      %s59 = sphi 0, %s59
      %s61 = sphi 0, %s59
      %s62 = sphi 0, %s61
      %s76 = sphi 0, %s62
      %s80 = sphi 0, %s80
      %s82 = sphi 0, %s80
      %s83 = sphi 0, %s82
      %s97 = sphi 0, %s83
      %s101 = sphi 0, %s101
      %s103 = sphi 0, %s101
      %s104 = sphi 0, %s103
      %s118 = sphi 0, %s104
      %s124 = sphi 0, %s126
      %s127 = sphi 0, %s124
      %s128 = sphi 0, %s127
      %s144 = sphi 0, %s128
      %s150 = sphi 0, %s152
      %s153 = sphi 0, %s150
      %s154 = sphi 0, %s153
      %s170 = sphi 0, %s154
      %s176 = sphi 0, %s178
      %s179 = sphi 0, %s176
      %s180 = sphi 0, %s179
      %s196 = sphi 0, %s180
      %s202 = sphi 0, %s204
      %s205 = sphi 0, %s202
      %s206 = sphi 0, %s205
      %s222 = sphi 0, %s206
      %s228 = sphi 0, %s230
      %s231 = sphi 0, %s228
      %s232 = sphi 0, %s231
      %s248 = sphi 0, %s232
      %s254 = sphi 0, %s256
      %s257 = sphi 0, %s254
      %s258 = sphi 0, %s257
      %s274 = sphi 0, %s258
      %s280 = sphi 0, %s282
      %s283 = sphi 0, %s280
      %s284 = sphi 0, %s283
      %s300 = sphi 0, %s284
      %s306 = sphi 0, %s308
      %s309 = sphi 0, %s306
      %s310 = sphi 0, %s309
      %s326 = sphi 0, %s310
      %s332 = sphi 0, %s334
      %s335 = sphi 0, %s332
      %s336 = sphi 0, %s335
      %s352 = sphi 0, %s336
      %s358 = sphi 0, %s360
      %s361 = sphi 0, %s358
      %s362 = sphi 0, %s361
      %s378 = sphi 0, %s362
      %s384 = sphi 0, %s386
      %s387 = sphi 0, %s384
      %s388 = sphi 0, %s387
      %s404 = sphi 0, %s388
      %s410 = sphi 0, %s412
      %s413 = sphi 0, %s410
      %s414 = sphi 0, %s413
      %s430 = sphi 0, %s414
      %s434 = sphi 0, %s434
      %s436 = sphi 0, %s434
      %s437 = sphi 0, %s436
      %s451 = sphi 0, %s437
      %s455 = sphi 0, %s455
      %s457 = sphi 0, %s455
      %s458 = sphi 0, %s457
      %s472 = sphi 0, %s458
      %s478 = sphi 0, %s480
      %s481 = sphi 0, %s478
      %s482 = sphi 0, %s481
      %s498 = sphi 0, %s482
      %s502 = sphi 0, %s502
      %s504 = sphi 0, %s502
      %s505 = sphi 0, %s504
      %s519 = sphi 0, %s505
    $region4: #{rna_esm2_forward.1} parent=1 // loop_header_branch
      %33 = sbr.rel (%p31) target = $region8
    $region5: #{rna_esm2_forward.1} parent=1 // loop_body
      %s35 = ssub.s32 %s30, 1
      %s36 = ssub.s32 %s30, 2
      %s37 = sadd.s32 %s30, 1
      %s39 = sadd.s32 %s38, 1
      %p42 = scmp.eq.s32.totalorder %s30, 1
      %p43 = scmp.ne.s32.totalorder %s38, %s40
      %p44 = scmp.eq.s32.totalorder %s30, 0
      %p45 = por %p43, %p44
      %p46 = scmp.ne.s32.totalorder %s38, %s40
      %p47 = scmp.eq.s32.totalorder %s35, 1
      %p48 = por %p46, %p47
      %p49 = scmp.ne.s32.totalorder %s40, %s41
      %p50 = scmp.eq.s32.totalorder %s35, 0
      %p51 = por %p49, %p50
      %p52 = scmp.ne.s32.totalorder %s40, %s41
      %p53 = scmp.eq.s32.totalorder %s36, 1
      %p54 = por %p52, %p53
      %p56 = scmp.ne.s32.totalorder %s41, %s55
      %p57 = scmp.eq.s32.totalorder %s36, 0
      %p58 = por %p56, %p57
      %s60 = sadd.s32 %s59, 1
      %p63 = scmp.eq.s32.totalorder %s30, 1
      %p64 = scmp.ne.s32.totalorder %s59, %s61
      %p65 = scmp.eq.s32.totalorder %s30, 0
      %p66 = por %p64, %p65
      %p67 = scmp.ne.s32.totalorder %s59, %s61
      %p68 = scmp.eq.s32.totalorder %s35, 1
      %p69 = por %p67, %p68
      %p70 = scmp.ne.s32.totalorder %s61, %s62
      %p71 = scmp.eq.s32.totalorder %s35, 0
      %p72 = por %p70, %p71
      %p73 = scmp.ne.s32.totalorder %s61, %s62
      %p74 = scmp.eq.s32.totalorder %s36, 1
      %p75 = por %p73, %p74
      %p77 = scmp.ne.s32.totalorder %s62, %s76
      %p78 = scmp.eq.s32.totalorder %s36, 0
      %p79 = por %p77, %p78
      %s81 = sadd.s32 %s80, 1
      %p84 = scmp.eq.s32.totalorder %s30, 1
      %p85 = scmp.ne.s32.totalorder %s80, %s82
      %p86 = scmp.eq.s32.totalorder %s30, 0
      %p87 = por %p85, %p86
      %p88 = scmp.ne.s32.totalorder %s80, %s82
      %p89 = scmp.eq.s32.totalorder %s35, 1
      %p90 = por %p88, %p89
      %p91 = scmp.ne.s32.totalorder %s82, %s83
      %p92 = scmp.eq.s32.totalorder %s35, 0
      %p93 = por %p91, %p92
      %p94 = scmp.ne.s32.totalorder %s82, %s83
      %p95 = scmp.eq.s32.totalorder %s36, 1
      %p96 = por %p94, %p95
      %p98 = scmp.ne.s32.totalorder %s83, %s97
      %p99 = scmp.eq.s32.totalorder %s36, 0
      %p100 = por %p98, %p99
      %s102 = sadd.s32 %s101, 1
      %p105 = scmp.eq.s32.totalorder %s30, 1
      %p106 = scmp.ne.s32.totalorder %s101, %s103
      %p107 = scmp.eq.s32.totalorder %s30, 0
      %p108 = por %p106, %p107
      %p109 = scmp.ne.s32.totalorder %s101, %s103
      %p110 = scmp.eq.s32.totalorder %s35, 1
      %p111 = por %p109, %p110
      %p112 = scmp.ne.s32.totalorder %s103, %s104
      %p113 = scmp.eq.s32.totalorder %s35, 0
      %p114 = por %p112, %p113
      %p115 = scmp.ne.s32.totalorder %s103, %s104
      %p116 = scmp.eq.s32.totalorder %s36, 1
      %p117 = por %p115, %p116
      %p119 = scmp.ne.s32.totalorder %s104, %s118
      %p120 = scmp.eq.s32.totalorder %s36, 0
      %p121 = por %p119, %p120
      %s122 = ssub.s32 %s30, %s37
      %p123 = scmp.eq.s32.totalorder %s122, 0
      %s125 = sadd.s32 %s124, 1
      %s126 = scalar_select %p123, %s124, %s125
      %p129 = pneg %p123
      %p130 = scmp.eq.s32.totalorder %s30, 1
      %p131 = por %p129, %p130
      %p132 = scmp.ne.s32.totalorder %s124, %s127
      %p133 = scmp.eq.s32.totalorder %s30, 0
      %p134 = por %p132, %p133
      %p135 = scmp.ne.s32.totalorder %s124, %s127
      %p136 = scmp.eq.s32.totalorder %s35, 1
      %p137 = por %p135, %p136
      %p138 = scmp.ne.s32.totalorder %s127, %s128
      %p139 = scmp.eq.s32.totalorder %s35, 0
      %p140 = por %p138, %p139
      %p141 = scmp.ne.s32.totalorder %s127, %s128
      %p142 = scmp.eq.s32.totalorder %s36, 1
      %p143 = por %p141, %p142
      %p145 = scmp.ne.s32.totalorder %s128, %s144
      %p146 = scmp.eq.s32.totalorder %s36, 0
      %p147 = por %p145, %p146
      %s148 = ssub.s32 %s30, %s37
      %p149 = scmp.eq.s32.totalorder %s148, 0
      %s151 = sadd.s32 %s150, 1
      %s152 = scalar_select %p149, %s150, %s151
      %p155 = pneg %p149
      %p156 = scmp.eq.s32.totalorder %s30, 1
      %p157 = por %p155, %p156
      %p158 = scmp.ne.s32.totalorder %s150, %s153
      %p159 = scmp.eq.s32.totalorder %s30, 0
      %p160 = por %p158, %p159
      %p161 = scmp.ne.s32.totalorder %s150, %s153
      %p162 = scmp.eq.s32.totalorder %s35, 1
      %p163 = por %p161, %p162
      %p164 = scmp.ne.s32.totalorder %s153, %s154
      %p165 = scmp.eq.s32.totalorder %s35, 0
      %p166 = por %p164, %p165
      %p167 = scmp.ne.s32.totalorder %s153, %s154
      %p168 = scmp.eq.s32.totalorder %s36, 1
      %p169 = por %p167, %p168
      %p171 = scmp.ne.s32.totalorder %s154, %s170
      %p172 = scmp.eq.s32.totalorder %s36, 0
      %p173 = por %p171, %p172
      %s174 = ssub.s32 %s30, %s37
      %p175 = scmp.eq.s32.totalorder %s174, 0
      %s177 = sadd.s32 %s176, 1
      %s178 = scalar_select %p175, %s176, %s177
      %p181 = pneg %p175
      %p182 = scmp.eq.s32.totalorder %s30, 1
      %p183 = por %p181, %p182
      %p184 = scmp.ne.s32.totalorder %s176, %s179
      %p185 = scmp.eq.s32.totalorder %s30, 0
      %p186 = por %p184, %p185
      %p187 = scmp.ne.s32.totalorder %s176, %s179
      %p188 = scmp.eq.s32.totalorder %s35, 1
      %p189 = por %p187, %p188
      %p190 = scmp.ne.s32.totalorder %s179, %s180
      %p191 = scmp.eq.s32.totalorder %s35, 0
      %p192 = por %p190, %p191
      %p193 = scmp.ne.s32.totalorder %s179, %s180
      %p194 = scmp.eq.s32.totalorder %s36, 1
      %p195 = por %p193, %p194
      %p197 = scmp.ne.s32.totalorder %s180, %s196
      %p198 = scmp.eq.s32.totalorder %s36, 0
      %p199 = por %p197, %p198
      %s200 = ssub.s32 %s30, %s37
      %p201 = scmp.eq.s32.totalorder %s200, 0
      %s203 = sadd.s32 %s202, 1
      %s204 = scalar_select %p201, %s202, %s203
      %p207 = pneg %p201
      %p208 = scmp.eq.s32.totalorder %s30, 1
      %p209 = por %p207, %p208
      %p210 = scmp.ne.s32.totalorder %s202, %s205
      %p211 = scmp.eq.s32.totalorder %s30, 0
      %p212 = por %p210, %p211
      %p213 = scmp.ne.s32.totalorder %s202, %s205
      %p214 = scmp.eq.s32.totalorder %s35, 1
      %p215 = por %p213, %p214
      %p216 = scmp.ne.s32.totalorder %s205, %s206
      %p217 = scmp.eq.s32.totalorder %s35, 0
      %p218 = por %p216, %p217
      %p219 = scmp.ne.s32.totalorder %s205, %s206
      %p220 = scmp.eq.s32.totalorder %s36, 1
      %p221 = por %p219, %p220
      %p223 = scmp.ne.s32.totalorder %s206, %s222
      %p224 = scmp.eq.s32.totalorder %s36, 0
      %p225 = por %p223, %p224
      %s226 = ssub.s32 %s30, %s37
      %p227 = scmp.eq.s32.totalorder %s226, 0
      %s229 = sadd.s32 %s228, 1
      %s230 = scalar_select %p227, %s228, %s229
      %p233 = pneg %p227
      %p234 = scmp.eq.s32.totalorder %s30, 1
      %p235 = por %p233, %p234
      %p236 = scmp.ne.s32.totalorder %s228, %s231
      %p237 = scmp.eq.s32.totalorder %s30, 0
      %p238 = por %p236, %p237
      %p239 = scmp.ne.s32.totalorder %s228, %s231
      %p240 = scmp.eq.s32.totalorder %s35, 1
      %p241 = por %p239, %p240
      %p242 = scmp.ne.s32.totalorder %s231, %s232
      %p243 = scmp.eq.s32.totalorder %s35, 0
      %p244 = por %p242, %p243
      %p245 = scmp.ne.s32.totalorder %s231, %s232
      %p246 = scmp.eq.s32.totalorder %s36, 1
      %p247 = por %p245, %p246
      %p249 = scmp.ne.s32.totalorder %s232, %s248
      %p250 = scmp.eq.s32.totalorder %s36, 0
      %p251 = por %p249, %p250
      %s252 = ssub.s32 %s30, %s37
      %p253 = scmp.eq.s32.totalorder %s252, 0
      %s255 = sadd.s32 %s254, 1
      %s256 = scalar_select %p253, %s254, %s255
      %p259 = pneg %p253
      %p260 = scmp.eq.s32.totalorder %s30, 1
      %p261 = por %p259, %p260
      %p262 = scmp.ne.s32.totalorder %s254, %s257
      %p263 = scmp.eq.s32.totalorder %s30, 0
      %p264 = por %p262, %p263
      %p265 = scmp.ne.s32.totalorder %s254, %s257
      %p266 = scmp.eq.s32.totalorder %s35, 1
      %p267 = por %p265, %p266
      %p268 = scmp.ne.s32.totalorder %s257, %s258
      %p269 = scmp.eq.s32.totalorder %s35, 0
      %p270 = por %p268, %p269
      %p271 = scmp.ne.s32.totalorder %s257, %s258
      %p272 = scmp.eq.s32.totalorder %s36, 1
      %p273 = por %p271, %p272
      %p275 = scmp.ne.s32.totalorder %s258, %s274
      %p276 = scmp.eq.s32.totalorder %s36, 0
      %p277 = por %p275, %p276
      %s278 = ssub.s32 %s30, %s37
      %p279 = scmp.eq.s32.totalorder %s278, 0
      %s281 = sadd.s32 %s280, 1
      %s282 = scalar_select %p279, %s280, %s281
      %p285 = pneg %p279
      %p286 = scmp.eq.s32.totalorder %s30, 1
      %p287 = por %p285, %p286
      %p288 = scmp.ne.s32.totalorder %s280, %s283
      %p289 = scmp.eq.s32.totalorder %s30, 0
      %p290 = por %p288, %p289
      %p291 = scmp.ne.s32.totalorder %s280, %s283
      %p292 = scmp.eq.s32.totalorder %s35, 1
      %p293 = por %p291, %p292
      %p294 = scmp.ne.s32.totalorder %s283, %s284
      %p295 = scmp.eq.s32.totalorder %s35, 0
      %p296 = por %p294, %p295
      %p297 = scmp.ne.s32.totalorder %s283, %s284
      %p298 = scmp.eq.s32.totalorder %s36, 1
      %p299 = por %p297, %p298
      %p301 = scmp.ne.s32.totalorder %s284, %s300
      %p302 = scmp.eq.s32.totalorder %s36, 0
      %p303 = por %p301, %p302
      %s304 = ssub.s32 %s30, %s37
      %p305 = scmp.eq.s32.totalorder %s304, 0
      %s307 = sadd.s32 %s306, 1
      %s308 = scalar_select %p305, %s306, %s307
      %p311 = pneg %p305
      %p312 = scmp.eq.s32.totalorder %s30, 1
      %p313 = por %p311, %p312
      %p314 = scmp.ne.s32.totalorder %s306, %s309
      %p315 = scmp.eq.s32.totalorder %s30, 0
      %p316 = por %p314, %p315
      %p317 = scmp.ne.s32.totalorder %s306, %s309
      %p318 = scmp.eq.s32.totalorder %s35, 1
      %p319 = por %p317, %p318
      %p320 = scmp.ne.s32.totalorder %s309, %s310
      %p321 = scmp.eq.s32.totalorder %s35, 0
      %p322 = por %p320, %p321
      %p323 = scmp.ne.s32.totalorder %s309, %s310
      %p324 = scmp.eq.s32.totalorder %s36, 1
      %p325 = por %p323, %p324
      %p327 = scmp.ne.s32.totalorder %s310, %s326
      %p328 = scmp.eq.s32.totalorder %s36, 0
      %p329 = por %p327, %p328
      %s330 = ssub.s32 %s30, %s37
      %p331 = scmp.eq.s32.totalorder %s330, 0
      %s333 = sadd.s32 %s332, 1
      %s334 = scalar_select %p331, %s332, %s333
      %p337 = pneg %p331
      %p338 = scmp.eq.s32.totalorder %s30, 1
      %p339 = por %p337, %p338
      %p340 = scmp.ne.s32.totalorder %s332, %s335
      %p341 = scmp.eq.s32.totalorder %s30, 0
      %p342 = por %p340, %p341
      %p343 = scmp.ne.s32.totalorder %s332, %s335
      %p344 = scmp.eq.s32.totalorder %s35, 1
      %p345 = por %p343, %p344
      %p346 = scmp.ne.s32.totalorder %s335, %s336
      %p347 = scmp.eq.s32.totalorder %s35, 0
      %p348 = por %p346, %p347
      %p349 = scmp.ne.s32.totalorder %s335, %s336
      %p350 = scmp.eq.s32.totalorder %s36, 1
      %p351 = por %p349, %p350
      %p353 = scmp.ne.s32.totalorder %s336, %s352
      %p354 = scmp.eq.s32.totalorder %s36, 0
      %p355 = por %p353, %p354
      %s356 = ssub.s32 %s30, %s37
      %p357 = scmp.eq.s32.totalorder %s356, 0
      %s359 = sadd.s32 %s358, 1
      %s360 = scalar_select %p357, %s358, %s359
      %p363 = pneg %p357
      %p364 = scmp.eq.s32.totalorder %s30, 1
      %p365 = por %p363, %p364
      %p366 = scmp.ne.s32.totalorder %s358, %s361
      %p367 = scmp.eq.s32.totalorder %s30, 0
      %p368 = por %p366, %p367
      %p369 = scmp.ne.s32.totalorder %s358, %s361
      %p370 = scmp.eq.s32.totalorder %s35, 1
      %p371 = por %p369, %p370
      %p372 = scmp.ne.s32.totalorder %s361, %s362
      %p373 = scmp.eq.s32.totalorder %s35, 0
      %p374 = por %p372, %p373
      %p375 = scmp.ne.s32.totalorder %s361, %s362
      %p376 = scmp.eq.s32.totalorder %s36, 1
      %p377 = por %p375, %p376
      %p379 = scmp.ne.s32.totalorder %s362, %s378
      %p380 = scmp.eq.s32.totalorder %s36, 0
      %p381 = por %p379, %p380
      %s382 = ssub.s32 %s30, %s37
      %p383 = scmp.eq.s32.totalorder %s382, 0
      %s385 = sadd.s32 %s384, 1
      %s386 = scalar_select %p383, %s384, %s385
      %p389 = pneg %p383
      %p390 = scmp.eq.s32.totalorder %s30, 1
      %p391 = por %p389, %p390
      %p392 = scmp.ne.s32.totalorder %s384, %s387
      %p393 = scmp.eq.s32.totalorder %s30, 0
      %p394 = por %p392, %p393
      %p395 = scmp.ne.s32.totalorder %s384, %s387
      %p396 = scmp.eq.s32.totalorder %s35, 1
      %p397 = por %p395, %p396
      %p398 = scmp.ne.s32.totalorder %s387, %s388
      %p399 = scmp.eq.s32.totalorder %s35, 0
      %p400 = por %p398, %p399
      %p401 = scmp.ne.s32.totalorder %s387, %s388
      %p402 = scmp.eq.s32.totalorder %s36, 1
      %p403 = por %p401, %p402
      %p405 = scmp.ne.s32.totalorder %s388, %s404
      %p406 = scmp.eq.s32.totalorder %s36, 0
      %p407 = por %p405, %p406
      %s408 = ssub.s32 %s30, %s37
      %p409 = scmp.eq.s32.totalorder %s408, 0
      %s411 = sadd.s32 %s410, 1
      %s412 = scalar_select %p409, %s410, %s411
      %p415 = pneg %p409
      %p416 = scmp.eq.s32.totalorder %s30, 1
      %p417 = por %p415, %p416
      %p418 = scmp.ne.s32.totalorder %s410, %s413
      %p419 = scmp.eq.s32.totalorder %s30, 0
      %p420 = por %p418, %p419
      %p421 = scmp.ne.s32.totalorder %s410, %s413
      %p422 = scmp.eq.s32.totalorder %s35, 1
      %p423 = por %p421, %p422
      %p424 = scmp.ne.s32.totalorder %s413, %s414
      %p425 = scmp.eq.s32.totalorder %s35, 0
      %p426 = por %p424, %p425
      %p427 = scmp.ne.s32.totalorder %s413, %s414
      %p428 = scmp.eq.s32.totalorder %s36, 1
      %p429 = por %p427, %p428
      %p431 = scmp.ne.s32.totalorder %s414, %s430
      %p432 = scmp.eq.s32.totalorder %s36, 0
      %p433 = por %p431, %p432
      %s435 = sadd.s32 %s434, 1
      %p438 = scmp.eq.s32.totalorder %s30, 1
      %p439 = scmp.ne.s32.totalorder %s434, %s436
      %p440 = scmp.eq.s32.totalorder %s30, 0
      %p441 = por %p439, %p440
      %p442 = scmp.ne.s32.totalorder %s434, %s436
      %p443 = scmp.eq.s32.totalorder %s35, 1
      %p444 = por %p442, %p443
      %p445 = scmp.ne.s32.totalorder %s436, %s437
      %p446 = scmp.eq.s32.totalorder %s35, 0
      %p447 = por %p445, %p446
      %p448 = scmp.ne.s32.totalorder %s436, %s437
      %p449 = scmp.eq.s32.totalorder %s36, 1
      %p450 = por %p448, %p449
      %p452 = scmp.ne.s32.totalorder %s437, %s451
      %p453 = scmp.eq.s32.totalorder %s36, 0
      %p454 = por %p452, %p453
      %s456 = sadd.s32 %s455, 1
      %p459 = scmp.eq.s32.totalorder %s30, 1
      %p460 = scmp.ne.s32.totalorder %s455, %s457
      %p461 = scmp.eq.s32.totalorder %s30, 0
      %p462 = por %p460, %p461
      %p463 = scmp.ne.s32.totalorder %s455, %s457
      %p464 = scmp.eq.s32.totalorder %s35, 1
      %p465 = por %p463, %p464
      %p466 = scmp.ne.s32.totalorder %s457, %s458
      %p467 = scmp.eq.s32.totalorder %s35, 0
      %p468 = por %p466, %p467
      %p469 = scmp.ne.s32.totalorder %s457, %s458
      %p470 = scmp.eq.s32.totalorder %s36, 1
      %p471 = por %p469, %p470
      %p473 = scmp.ne.s32.totalorder %s458, %s472
      %p474 = scmp.eq.s32.totalorder %s36, 0
      %p475 = por %p473, %p474
      %s476 = ssub.s32 %s30, %s37
      %p477 = scmp.eq.s32.totalorder %s476, 0
      %s479 = sadd.s32 %s478, 1
      %s480 = scalar_select %p477, %s478, %s479
      %p483 = pneg %p477
      %p484 = scmp.eq.s32.totalorder %s30, 1
      %p485 = por %p483, %p484
      %p486 = scmp.ne.s32.totalorder %s478, %s481
      %p487 = scmp.eq.s32.totalorder %s30, 0
      %p488 = por %p486, %p487
      %p489 = scmp.ne.s32.totalorder %s478, %s481
      %p490 = scmp.eq.s32.totalorder %s35, 1
      %p491 = por %p489, %p490
      %p492 = scmp.ne.s32.totalorder %s481, %s482
      %p493 = scmp.eq.s32.totalorder %s35, 0
      %p494 = por %p492, %p493
      %p495 = scmp.ne.s32.totalorder %s481, %s482
      %p496 = scmp.eq.s32.totalorder %s36, 1
      %p497 = por %p495, %p496
      %p499 = scmp.ne.s32.totalorder %s482, %s498
      %p500 = scmp.eq.s32.totalorder %s36, 0
      %p501 = por %p499, %p500
      %s503 = sadd.s32 %s502, 1
      %p506 = scmp.eq.s32.totalorder %s30, 1
      %p507 = scmp.ne.s32.totalorder %s502, %s504
      %p508 = scmp.eq.s32.totalorder %s30, 0
      %p509 = por %p507, %p508
      %p510 = scmp.ne.s32.totalorder %s502, %s504
      %p511 = scmp.eq.s32.totalorder %s35, 1
      %p512 = por %p510, %p511
      %p513 = scmp.ne.s32.totalorder %s504, %s505
      %p514 = scmp.eq.s32.totalorder %s35, 0
      %p515 = por %p513, %p514
      %p516 = scmp.ne.s32.totalorder %s504, %s505
      %p517 = scmp.eq.s32.totalorder %s36, 1
      %p518 = por %p516, %p517
      %p520 = scmp.ne.s32.totalorder %s505, %s519
      %p521 = scmp.eq.s32.totalorder %s36, 0
      %p522 = por %p520, %p521
      %p523 = scmp.le.s32.totalorder 1, %s30
      %p524 = scmp.lt.s32.totalorder %s30, 3
      %p525 = pnand %p523, %p524
      %p526 = pneg %p525
      // Predicated region
      $region9: #{rna_esm2_forward.1} parent=5 // pred_check
        _
      $region10: #{rna_esm2_forward.1} parent=5 // pred_check_branch
        %528 = sbr.rel (%p525) target = $region12
      $region11: #{rna_esm2_forward.1} parent=5 // pred_region
        %s529 = ssub.s32 %s30, 1
        // Predicated region
        $region13: #{rna_esm2_forward.1} parent=11 // pred_check
          %p530 = pneg %p51
        $region14: #{rna_esm2_forward.1} parent=11 // pred_check_branch
          %532 = sbr.rel (%p530) target = $region16
        $region15: #{rna_esm2_forward.1} parent=11 // pred_region
          _
        $region16: #{rna_esm2_forward.1} parent=11 // pred_fallthru
          _
        // Predicated region
        $region17: #{rna_esm2_forward.1} parent=11 // pred_check
          %p533 = pneg %p72
        $region18: #{rna_esm2_forward.1} parent=11 // pred_check_branch
          %535 = sbr.rel (%p533) target = $region20
        $region19: #{rna_esm2_forward.1} parent=11 // pred_region
          _
        $region20: #{rna_esm2_forward.1} parent=11 // pred_fallthru
          _
        // Predicated region
        $region21: #{rna_esm2_forward.1} parent=11 // pred_check
          %p536 = pneg %p93
        $region22: #{rna_esm2_forward.1} parent=11 // pred_check_branch
          %538 = sbr.rel (%p536) target = $region24
        $region23: #{rna_esm2_forward.1} parent=11 // pred_region
          _
        $region24: #{rna_esm2_forward.1} parent=11 // pred_fallthru
          _
        // Predicated region
        $region25: #{rna_esm2_forward.1} parent=11 // pred_check
          %p539 = pneg %p114
        $region26: #{rna_esm2_forward.1} parent=11 // pred_check_branch
          %541 = sbr.rel (%p539) target = $region28
        $region27: #{rna_esm2_forward.1} parent=11 // pred_region
          _
        $region28: #{rna_esm2_forward.1} parent=11 // pred_fallthru
          _
        // Predicated region
        $region29: #{rna_esm2_forward.1} parent=11 // pred_check
          %p542 = pneg %p447
        $region30: #{rna_esm2_forward.1} parent=11 // pred_check_branch
          %544 = sbr.rel (%p542) target = $region32
        $region31: #{rna_esm2_forward.1} parent=11 // pred_region
          _
        $region32: #{rna_esm2_forward.1} parent=11 // pred_fallthru
          _
        // Predicated region
        $region33: #{rna_esm2_forward.1} parent=11 // pred_check
          %p545 = pneg %p468
        $region34: #{rna_esm2_forward.1} parent=11 // pred_check_branch
          %547 = sbr.rel (%p545) target = $region36
        $region35: #{rna_esm2_forward.1} parent=11 // pred_region
          _
        $region36: #{rna_esm2_forward.1} parent=11 // pred_fallthru
          _
      $region12: #{rna_esm2_forward.1} parent=5 // pred_fallthru
        _
      %p548 = scmp.lt.s32.totalorder %s30, 2
      // Predicated region
      $region37: #{rna_esm2_forward.1} parent=5 // pred_check
        %p549 = pneg %p548
      $region38: #{rna_esm2_forward.1} parent=5 // pred_check_branch
        %551 = sbr.rel (%p549) target = $region40
      $region39: #{rna_esm2_forward.1} parent=5 // pred_region
        // Predicated region
        $region41: #{rna_esm2_forward.1} parent=39 // pred_check
          %p552 = pneg %p134
        $region42: #{rna_esm2_forward.1} parent=39 // pred_check_branch
          %554 = sbr.rel (%p552) target = $region44
        $region43: #{rna_esm2_forward.1} parent=39 // pred_region
          %p555 = scmp.lt.s32.totalorder %s30, 1
          %s556 = scalar_select %p555, %s30, 1
          %s557 = scalar_lea.vmem %s4, %s556
        $region44: #{rna_esm2_forward.1} parent=39 // pred_fallthru
          _
        // Predicated region
        $region45: #{rna_esm2_forward.1} parent=39 // pred_check
          %p558 = pneg %p160
        $region46: #{rna_esm2_forward.1} parent=39 // pred_check_branch
          %560 = sbr.rel (%p558) target = $region48
        $region47: #{rna_esm2_forward.1} parent=39 // pred_region
          %p561 = scmp.lt.s32.totalorder %s30, 1
          %s562 = scalar_select %p561, %s30, 1
          %s563 = scalar_lea.vmem %s5, %s562
        $region48: #{rna_esm2_forward.1} parent=39 // pred_fallthru
          _
        // Predicated region
        $region49: #{rna_esm2_forward.1} parent=39 // pred_check
          %p564 = pneg %p186
        $region50: #{rna_esm2_forward.1} parent=39 // pred_check_branch
          %566 = sbr.rel (%p564) target = $region52
        $region51: #{rna_esm2_forward.1} parent=39 // pred_region
          %p567 = scmp.lt.s32.totalorder %s30, 1
          %s568 = scalar_select %p567, %s30, 1
          %s569 = smul.addr %s568, 4
          %s570 = smul.addr %s569, 8
          %s571 = scalar_lea.vmem %s6, %s570
        $region52: #{rna_esm2_forward.1} parent=39 // pred_fallthru
          _
        // Predicated region
        $region53: #{rna_esm2_forward.1} parent=39 // pred_check
          %p572 = pneg %p212
        $region54: #{rna_esm2_forward.1} parent=39 // pred_check_branch
          %574 = sbr.rel (%p572) target = $region56
        $region55: #{rna_esm2_forward.1} parent=39 // pred_region
          %p575 = scmp.lt.s32.totalorder %s30, 1
          %s576 = scalar_select %p575, %s30, 1
          %s577 = scalar_lea.vmem %s7, %s576
        $region56: #{rna_esm2_forward.1} parent=39 // pred_fallthru
          _
        // Predicated region
        $region57: #{rna_esm2_forward.1} parent=39 // pred_check
          %p578 = pneg %p238
        $region58: #{rna_esm2_forward.1} parent=39 // pred_check_branch
          %580 = sbr.rel (%p578) target = $region60
        $region59: #{rna_esm2_forward.1} parent=39 // pred_region
          %p581 = scmp.lt.s32.totalorder %s30, 1
          %s582 = scalar_select %p581, %s30, 1
          %s583 = smul.addr %s582, 4
          %s584 = smul.addr %s583, 8
          %s585 = scalar_lea.vmem %s8, %s584
        $region60: #{rna_esm2_forward.1} parent=39 // pred_fallthru
          _
        // Predicated region
        $region61: #{rna_esm2_forward.1} parent=39 // pred_check
          %p586 = pneg %p264
        $region62: #{rna_esm2_forward.1} parent=39 // pred_check_branch
          %588 = sbr.rel (%p586) target = $region64
        $region63: #{rna_esm2_forward.1} parent=39 // pred_region
          %p589 = scmp.lt.s32.totalorder %s30, 1
          %s590 = scalar_select %p589, %s30, 1
          %s591 = scalar_lea.vmem %s9, %s590
        $region64: #{rna_esm2_forward.1} parent=39 // pred_fallthru
          _
        // Predicated region
        $region65: #{rna_esm2_forward.1} parent=39 // pred_check
          %p592 = pneg %p290
        $region66: #{rna_esm2_forward.1} parent=39 // pred_check_branch
          %594 = sbr.rel (%p592) target = $region68
        $region67: #{rna_esm2_forward.1} parent=39 // pred_region
          %p595 = scmp.lt.s32.totalorder %s30, 1
          %s596 = scalar_select %p595, %s30, 1
          %s597 = scalar_lea.vmem %s10, %s596
        $region68: #{rna_esm2_forward.1} parent=39 // pred_fallthru
          _
        // Predicated region
        $region69: #{rna_esm2_forward.1} parent=39 // pred_check
          %p598 = pneg %p316
        $region70: #{rna_esm2_forward.1} parent=39 // pred_check_branch
          %600 = sbr.rel (%p598) target = $region72
        $region71: #{rna_esm2_forward.1} parent=39 // pred_region
          %p601 = scmp.lt.s32.totalorder %s30, 1
          %s602 = scalar_select %p601, %s30, 1
          %s603 = scalar_lea.vmem %s11, %s602
        $region72: #{rna_esm2_forward.1} parent=39 // pred_fallthru
          _
        // Predicated region
        $region73: #{rna_esm2_forward.1} parent=39 // pred_check
          %p604 = pneg %p342
        $region74: #{rna_esm2_forward.1} parent=39 // pred_check_branch
          %606 = sbr.rel (%p604) target = $region76
        $region75: #{rna_esm2_forward.1} parent=39 // pred_region
          %p607 = scmp.lt.s32.totalorder %s30, 1
          %s608 = scalar_select %p607, %s30, 1
          %s609 = smul.addr %s608, 4
          %s610 = smul.addr %s609, 8
          %s611 = scalar_lea.vmem %s12, %s610
        $region76: #{rna_esm2_forward.1} parent=39 // pred_fallthru
          _
        // Predicated region
        $region77: #{rna_esm2_forward.1} parent=39 // pred_check
          %p612 = pneg %p368
        $region78: #{rna_esm2_forward.1} parent=39 // pred_check_branch
          %614 = sbr.rel (%p612) target = $region80
        $region79: #{rna_esm2_forward.1} parent=39 // pred_region
          %p615 = scmp.lt.s32.totalorder %s30, 1
          %s616 = scalar_select %p615, %s30, 1
          %s617 = scalar_lea.vmem %s13, %s616
        $region80: #{rna_esm2_forward.1} parent=39 // pred_fallthru
          _
        // Predicated region
        $region81: #{rna_esm2_forward.1} parent=39 // pred_check
          %p618 = pneg %p394
        $region82: #{rna_esm2_forward.1} parent=39 // pred_check_branch
          %620 = sbr.rel (%p618) target = $region84
        $region83: #{rna_esm2_forward.1} parent=39 // pred_region
          %p621 = scmp.lt.s32.totalorder %s30, 1
          %s622 = scalar_select %p621, %s30, 1
          %s623 = smul.addr %s622, 8
          %s624 = smul.addr %s623, 8
          %s625 = scalar_lea.vmem %s14, %s624
        $region84: #{rna_esm2_forward.1} parent=39 // pred_fallthru
          _
        // Predicated region
        $region85: #{rna_esm2_forward.1} parent=39 // pred_check
          %p626 = pneg %p420
        $region86: #{rna_esm2_forward.1} parent=39 // pred_check_branch
          %628 = sbr.rel (%p626) target = $region88
        $region87: #{rna_esm2_forward.1} parent=39 // pred_region
          %p629 = scmp.lt.s32.totalorder %s30, 1
          %s630 = scalar_select %p629, %s30, 1
          %s631 = scalar_lea.vmem %s15, %s630
        $region88: #{rna_esm2_forward.1} parent=39 // pred_fallthru
          _
      $region40: #{rna_esm2_forward.1} parent=5 // pred_fallthru
        _
      %p632 = scmp.le.s32.totalorder 1, %s30
      %p633 = scmp.lt.s32.totalorder %s30, 3
      %p634 = pnand %p632, %p633
      %p635 = pneg %p634
      // Predicated region
      $region89: #{rna_esm2_forward.1} parent=5 // pred_check
        _
      $region90: #{rna_esm2_forward.1} parent=5 // pred_check_branch
        %637 = sbr.rel (%p634) target = $region92
      $region91: #{rna_esm2_forward.1} parent=5 // pred_region
        %s638 = ssub.s32 %s30, 1
        %p639 = pneg %p51
        %p640 = pneg %p48
        %p641 = pneg %p72
        %p642 = pneg %p69
        %p643 = pneg %p93
        %p644 = pneg %p90
        %p645 = pneg %p114
        %p646 = pneg %p111
        %p647 = scmp.lt.s32.totalorder %s35, 1
        %s648 = scalar_select %p647, %s35, 1
        %s649 = scalar_lea.vmem %s4, %s648
        %p650 = pneg %p140
        %p651 = pneg %p137
        %p652 = scmp.lt.s32.totalorder %s35, 1
        %s653 = scalar_select %p652, %s35, 1
        %s654 = scalar_lea.vmem %s5, %s653
        %p655 = pneg %p166
        %p656 = pneg %p163
        %p657 = scmp.lt.s32.totalorder %s35, 1
        %s658 = scalar_select %p657, %s35, 1
        %s659 = smul.addr %s658, 4
        %s660 = smul.addr %s659, 8
        %s661 = scalar_lea.vmem %s6, %s660
        %p662 = pneg %p192
        %p663 = pneg %p189
        %p664 = scmp.lt.s32.totalorder %s35, 1
        %s665 = scalar_select %p664, %s35, 1
        %s666 = scalar_lea.vmem %s7, %s665
        %p667 = pneg %p218
        %p668 = pneg %p215
        %p669 = scmp.lt.s32.totalorder %s35, 1
        %s670 = scalar_select %p669, %s35, 1
        %s671 = smul.addr %s670, 4
        %s672 = smul.addr %s671, 8
        %s673 = scalar_lea.vmem %s8, %s672
        %p674 = pneg %p244
        %p675 = pneg %p241
        %p676 = scmp.lt.s32.totalorder %s35, 1
        %s677 = scalar_select %p676, %s35, 1
        %s678 = scalar_lea.vmem %s9, %s677
        %p679 = pneg %p270
        %p680 = pneg %p267
        %p681 = scmp.lt.s32.totalorder %s35, 1
        %s682 = scalar_select %p681, %s35, 1
        %s683 = scalar_lea.vmem %s10, %s682
        %p684 = pneg %p296
        %p685 = pneg %p293
        %p686 = scmp.lt.s32.totalorder %s35, 1
        %s687 = scalar_select %p686, %s35, 1
        %s688 = scalar_lea.vmem %s11, %s687
        %p689 = pneg %p322
        %p690 = pneg %p319
        %p691 = scmp.lt.s32.totalorder %s35, 1
        %s692 = scalar_select %p691, %s35, 1
        %s693 = smul.addr %s692, 4
        %s694 = smul.addr %s693, 8
        %s695 = scalar_lea.vmem %s12, %s694
        %p696 = pneg %p348
        %p697 = pneg %p345
        %p698 = scmp.lt.s32.totalorder %s35, 1
        %s699 = scalar_select %p698, %s35, 1
        %s700 = scalar_lea.vmem %s13, %s699
        %p701 = pneg %p374
        %p702 = pneg %p371
        %p703 = scmp.lt.s32.totalorder %s35, 1
        %s704 = scalar_select %p703, %s35, 1
        %s705 = smul.addr %s704, 8
        %s706 = smul.addr %s705, 8
        %s707 = scalar_lea.vmem %s14, %s706
        %p708 = pneg %p400
        %p709 = pneg %p397
        %p710 = scmp.lt.s32.totalorder %s35, 1
        %s711 = scalar_select %p710, %s35, 1
        %s712 = scalar_lea.vmem %s15, %s711
        %p713 = pneg %p426
        %p714 = pneg %p423
        %p715 = pneg %p447
        %p716 = pneg %p444
        %p717 = pneg %p468
        %p718 = pneg %p465
        %p719 = pneg %p494
        %p720 = pneg %p491
        %s721 = sand.u32 %s481, 1
        %s722 = scalar_lea.sflag [#allocation8], %s721
        %s723 = sand.u32 %s481, 1
        %s724 = smul.addr %s723, 128
        %s725 = scalar_lea.vmem [#allocation7], %s724
        %p726 = pneg %p515
        %p727 = pneg %p512
        %p728 = scmp.lt.s32.totalorder %s35, 1
        %s729 = scalar_select %p728, %s35, 1
        %s730 = scalar_lea.vmem %s4, %s729
        %p731 = scmp.lt.s32.totalorder %s35, 1
        %s732 = scalar_select %p731, %s35, 1
        %s733 = scalar_lea.vmem %s5, %s732
        %p734 = scmp.lt.s32.totalorder %s35, 1
        %s735 = scalar_select %p734, %s35, 1
        %s736 = smul.addr %s735, 4
        %s737 = smul.addr %s736, 8
        %s738 = scalar_lea.vmem %s6, %s737
        %p739 = scmp.lt.s32.totalorder %s35, 1
        %s740 = scalar_select %p739, %s35, 1
        %s741 = scalar_lea.vmem %s7, %s740
        %p742 = scmp.lt.s32.totalorder %s35, 1
        %s743 = scalar_select %p742, %s35, 1
        %s744 = smul.addr %s743, 4
        %s745 = smul.addr %s744, 8
        %s746 = scalar_lea.vmem %s8, %s745
        %p747 = scmp.lt.s32.totalorder %s35, 1
        %s748 = scalar_select %p747, %s35, 1
        %s749 = scalar_lea.vmem %s9, %s748
        %p750 = scmp.lt.s32.totalorder %s35, 1
        %s751 = scalar_select %p750, %s35, 1
        %s752 = scalar_lea.vmem %s10, %s751
        %p753 = scmp.lt.s32.totalorder %s35, 1
        %s754 = scalar_select %p753, %s35, 1
        %s755 = scalar_lea.vmem %s11, %s754
        %p756 = scmp.lt.s32.totalorder %s35, 1
        %s757 = scalar_select %p756, %s35, 1
        %s758 = smul.addr %s757, 4
        %s759 = smul.addr %s758, 8
        %s760 = scalar_lea.vmem %s12, %s759
        %p761 = scmp.lt.s32.totalorder %s35, 1
        %s762 = scalar_select %p761, %s35, 1
        %s763 = scalar_lea.vmem %s13, %s762
        %p764 = scmp.lt.s32.totalorder %s35, 1
        %s765 = scalar_select %p764, %s35, 1
        %s766 = smul.addr %s765, 8
        %s767 = smul.addr %s766, 8
        %s768 = scalar_lea.vmem %s14, %s767
        %p769 = scmp.lt.s32.totalorder %s35, 1
        %s770 = scalar_select %p769, %s35, 1
        %s771 = scalar_lea.vmem %s15, %s770
        %s772 = smul.u32 4, %s35
        %p773 = scmp.eq.s32.totalorder %s35, 0
        // Predicated region
        $region93: #{rna_esm2_forward.1} parent=91 // pred_check
          %p774 = pneg %p773
        $region94: #{rna_esm2_forward.1} parent=91 // pred_check_branch
          %776 = sbr.rel (%p774) target = $region96
        $region95: #{rna_esm2_forward.1} parent=91 // pred_region
          %v777 = vld [vmem:[%s0] sm:$0xff]
          %v778 = vld [vmem:[%s0 + $0x8] sm:$0xff]
          %v779 = vld [vmem:[%s0 + $0x10] sm:$0xff]
          %v780 = vld [vmem:[%s0 + $0x18] sm:$0xff]
          %vm781 = vcmask 261120
          %782 = vst.msk [vmem:[#allocation2] sm:$0xff] %vm781, %v777
          %783 = vst.msk [vmem:[#allocation2 + $0x8] sm:$0xff] %vm781, %v778
          %784 = vst.msk [vmem:[#allocation2 + $0x10] sm:$0xff] %vm781, %v779
          %785 = vst.msk [vmem:[#allocation2 + $0x18] sm:$0xff] %vm781, %v780
        $region96: #{rna_esm2_forward.1} parent=91 // pred_fallthru
          _
        %v786 = vld [vmem:[#allocation2] sm:$0xff]
        %v787 = vld [vmem:[#allocation2 + $0x8] sm:$0xff]
        %v788 = vld [vmem:[#allocation2 + $0x10] sm:$0xff]
        %v789 = vld [vmem:[#allocation2 + $0x18] sm:$0xff]
        %v790 = vld [vmem:[%s730] sm:$0x1]
        %v791 = vld [vmem:[%s733] sm:$0x1]
        %vm792 = vcmask 261120
        %v793 = vsel %vm792, %v786, 0.0
        %794 = vadd.xlane.f32.xlu0 %v793
        %v795 = vpop.xlane.xlu0 %794
        %v796 = vsel %vm792, %v787, 0.0
        %797 = vadd.xlane.f32.xlu0 %v796
        %v798 = vpop.xlane.xlu0 %797
        %v799 = vsel %vm792, %v788, 0.0
        %800 = vadd.xlane.f32.xlu0 %v799
        %v801 = vpop.xlane.xlu0 %800
        %v802 = vsel %vm792, %v789, 0.0
        %803 = vadd.xlane.f32.xlu0 %v802
        %v804 = vpop.xlane.xlu0 %803
        %v805 = vrcp.pop 32.0
        %v806 = vmul.f32 32.0, %v805
        %v807 = vsub.f32 1.0, %v806
        %v808 = vmul.f32 %v805, %v807
        %v809 = vadd.f32 %v805, %v808
        %vm810 = vweird.f32 %v805
        %v811 = vsel %vm810, %v805, %v809
        %v812 = vmul.f32 %v795, %v811
        %v813 = vmul.f32 %v798, %v811
        %v814 = vmul.f32 %v801, %v811
        %v815 = vmul.f32 %v804, %v811
        %v816 = vsub.f32 %v786, %v812
        %v817 = vsub.f32 %v787, %v813
        %v818 = vsub.f32 %v788, %v814
        %v819 = vsub.f32 %v789, %v815
        %v820 = vmul.f32 %v816, %v816
        %v821 = vmul.f32 %v817, %v817
        %v822 = vmul.f32 %v818, %v818
        %v823 = vmul.f32 %v819, %v819
        %v824 = vsel %vm792, %v820, 0.0
        %825 = vadd.xlane.f32.xlu0 %v824
        %v826 = vpop.xlane.xlu0 %825
        %v827 = vsel %vm792, %v821, 0.0
        %828 = vadd.xlane.f32.xlu0 %v827
        %v829 = vpop.xlane.xlu0 %828
        %v830 = vsel %vm792, %v822, 0.0
        %831 = vadd.xlane.f32.xlu0 %v830
        %v832 = vpop.xlane.xlu0 %831
        %v833 = vsel %vm792, %v823, 0.0
        %834 = vadd.xlane.f32.xlu0 %v833
        %v835 = vpop.xlane.xlu0 %834
        %v836 = vmul.f32 %v826, %v811
        %v837 = vmul.f32 %v829, %v811
        %v838 = vmul.f32 %v832, %v811
        %v839 = vmul.f32 %v835, %v811
        %v840 = vadd.f32 %v836, 1e-05
        %v841 = vadd.f32 %v837, 1e-05
        %v842 = vadd.f32 %v838, 1e-05
        %v843 = vadd.f32 %v839, 1e-05
        %v844 = vrsqrt.pop %v840
        %v845 = vmul.f32 %v844, %v840
        %v846 = vmul.f32 %v845, %v844
        %v847 = vmul.f32 0.5, %v846
        %v848 = vsub.f32 1.5, %v847
        %v849 = vmul.f32 %v844, %v848
        %vm850 = vweird.f32 %v840
        %vm851 = vweird.f32 %v844
        %vm852 = vmor %vm850, %vm851
        %v853 = vsel %vm852, %v844, %v849
        %v854 = vrsqrt.pop %v841
        %v855 = vmul.f32 %v854, %v841
        %v856 = vmul.f32 %v855, %v854
        %v857 = vmul.f32 0.5, %v856
        %v858 = vsub.f32 1.5, %v857
        %v859 = vmul.f32 %v854, %v858
        %vm860 = vweird.f32 %v841
        %vm861 = vweird.f32 %v854
        %vm862 = vmor %vm860, %vm861
        %v863 = vsel %vm862, %v854, %v859
        %v864 = vrsqrt.pop %v842
        %v865 = vmul.f32 %v864, %v842
        %v866 = vmul.f32 %v865, %v864
        %v867 = vmul.f32 0.5, %v866
        %v868 = vsub.f32 1.5, %v867
        %v869 = vmul.f32 %v864, %v868
        %vm870 = vweird.f32 %v842
        %vm871 = vweird.f32 %v864
        %vm872 = vmor %vm870, %vm871
        %v873 = vsel %vm872, %v864, %v869
        %v874 = vrsqrt.pop %v843
        %v875 = vmul.f32 %v874, %v843
        %v876 = vmul.f32 %v875, %v874
        %v877 = vmul.f32 0.5, %v876
        %v878 = vsub.f32 1.5, %v877
        %v879 = vmul.f32 %v874, %v878
        %vm880 = vweird.f32 %v843
        %vm881 = vweird.f32 %v874
        %vm882 = vmor %vm880, %vm881
        %v883 = vsel %vm882, %v874, %v879
        %v884 = vmul.f32 %v816, %v853
        %v885 = vmul.f32 %v817, %v863
        %v886 = vmul.f32 %v818, %v873
        %v887 = vmul.f32 %v819, %v883
        %v889 = vperm.slane %v790, 0
        %v891 = vmul.f32 %v884, %v889
        %v892 = vmul.f32 %v885, %v889
        %v893 = vmul.f32 %v886, %v889
        %v894 = vmul.f32 %v887, %v889
        %v896 = vperm.slane %v791, 0
        %v898 = vadd.f32 %v891, %v896
        %v899 = vadd.f32 %v892, %v896
        %v900 = vadd.f32 %v893, %v896
        %v901 = vadd.f32 %v894, %v896
        %v902 = vld [vmem:[%s738] sm:$0xff]
        %v903 = vld [vmem:[%s738 + $0x8] sm:$0xff]
        %v904 = vld [vmem:[%s738 + $0x10] sm:$0xff]
        %v905 = vld [vmem:[%s738 + $0x18] sm:$0xff]
        %v906 = vld [vmem:[%s741] sm:$0x1]
        %v908 = vperm.slane %v906, 0
        %v911 = vsel %vm792, %v898, 0
        %v914 = vsel %vm792, %v899, 0
        %v917 = vsel %vm792, %v900, 0
        %v920 = vsel %vm792, %v901, 0
        %922 = vmatpush.msra.mxu0 0.0
        %923 = vmatpush.msra.mxu0 0.0
        %924 = vmatpush.msra.mxu0 0.0
        %925 = vmatpush.msra.mxu0 0.0
        %926 = vmatpush.msra.mxu0 0.0
        %927 = vmatpush.msra.mxu0 0.0
        %928 = vmatpush.msra.mxu0 0.0
        %929 = vmatpush.msra.mxu0 0.0
        %930 = vmatpush.msra.mxu0 0.0
        %931 = vmatpush.msra.mxu0 0.0
        %932 = vmatpush.msra.mxu0 0.0
        %933 = vmatpush.msra.mxu0 0.0
        %934 = vmatpush.msra.mxu0 %v905
        %935 = vmatpush.msra.mxu0 %v904
        %936 = vmatpush.msra.mxu0 %v903
        %937 = vmatpush.msra.mxu0 %v902
        %938 = vmatmul.f32.gmra.mxu0 %v911
        %v939 = vpop.f32.mrf.mxu0
        %v940 = vadd.f32 %v908, %v939
        %941 = vmatmul.f32.gmra.mxu0 %v914
        %v942 = vpop.f32.mrf.mxu0
        %v943 = vadd.f32 %v908, %v942
        %944 = vmatmul.f32.gmra.mxu0 %v917
        %v945 = vpop.f32.mrf.mxu0
        %v946 = vadd.f32 %v908, %v945
        %947 = vmatmul.f32.gmra.mxu0 %v920
        %v948 = vpop.f32.mrf.mxu0
        %v949 = vadd.f32 %v908, %v948
        %950 = vdwg.mxu0
        %v951 = vld [vmem:[%s3] sm:$0xff]
        %v952 = vld [vmem:[%s3 + $0x8] sm:$0xff]
        %v953 = vld [vmem:[%s3 + $0x10] sm:$0xff]
        %v954 = vld [vmem:[%s3 + $0x18] sm:$0xff]
        %v955 = vld [vmem:[%s3 + $0x20] sm:$0xff]
        %v956 = vld [vmem:[%s3 + $0x28] sm:$0xff]
        %v957 = vld [vmem:[%s3 + $0x30] sm:$0xff]
        %v958 = vld [vmem:[%s3 + $0x38] sm:$0xff]
        %v959 = vld [vmem:[%s3 + $0x40] sm:$0xff]
        %v960 = vld [vmem:[%s3 + $0x48] sm:$0xff]
        %v961 = vld [vmem:[%s3 + $0x50] sm:$0xff]
        %v962 = vld [vmem:[%s3 + $0x58] sm:$0xff]
        %vm963 = vcmask 785408
        %v965 = vsel %vm963, %v940, 0
        %v968 = vsel %vm963, %v943, 0
        %v971 = vsel %vm963, %v946, 0
        %v974 = vsel %vm963, %v949, 0
        %976 = vmatpush.msra.mxu0 0.0
        %977 = vmatpush.msra.mxu0 0.0
        %978 = vmatpush.msra.mxu0 0.0
        %979 = vmatpush.msra.mxu0 0.0
        %980 = vmatpush.msra.mxu0 %v962
        %981 = vmatpush.msra.mxu0 %v961
        %982 = vmatpush.msra.mxu0 %v960
        %983 = vmatpush.msra.mxu0 %v959
        %984 = vmatpush.msra.mxu0 %v958
        %985 = vmatpush.msra.mxu0 %v957
        %986 = vmatpush.msra.mxu0 %v956
        %987 = vmatpush.msra.mxu0 %v955
        %988 = vmatpush.msra.mxu0 %v954
        %989 = vmatpush.msra.mxu0 %v953
        %990 = vmatpush.msra.mxu0 %v952
        %991 = vmatpush.msra.mxu0 %v951
        %992 = vmatmul.f32.gmra.mxu0 %v965
        %v993 = vpop.f32.mrf.mxu0
        %v994 = vadd.f32 0.0, %v993
        %995 = vmatmul.f32.gmra.mxu0 %v968
        %v996 = vpop.f32.mrf.mxu0
        %v997 = vadd.f32 0.0, %v996
        %998 = vmatmul.f32.gmra.mxu0 %v971
        %v999 = vpop.f32.mrf.mxu0
        %v1000 = vadd.f32 0.0, %v999
        %1001 = vmatmul.f32.gmra.mxu0 %v974
        %v1002 = vpop.f32.mrf.mxu0
        %v1003 = vadd.f32 0.0, %v1002
        %1004 = vdwg.mxu0
        %v1005 = vld [vmem:[%s1] sm:$0xff]
        %v1006 = vld [vmem:[%s1 + $0x8] sm:$0xff]
        %v1007 = vld [vmem:[%s1 + $0x10] sm:$0xff]
        %v1008 = vld [vmem:[%s1 + $0x18] sm:$0xff]
        %v1009 = vmul.f32 %v940, %v1005
        %v1010 = vmul.f32 %v943, %v1006
        %v1011 = vmul.f32 %v946, %v1007
        %v1012 = vmul.f32 %v949, %v1008
        %v1013 = vld [vmem:[%s2] sm:$0xff]
        %v1014 = vld [vmem:[%s2 + $0x8] sm:$0xff]
        %v1015 = vld [vmem:[%s2 + $0x10] sm:$0xff]
        %v1016 = vld [vmem:[%s2 + $0x18] sm:$0xff]
        %v1017 = vmul.f32 %v994, %v1013
        %v1018 = vmul.f32 %v997, %v1014
        %v1019 = vmul.f32 %v1000, %v1015
        %v1020 = vmul.f32 %v1003, %v1016
        %v1021 = vadd.f32 %v1009, %v1017
        %v1022 = vadd.f32 %v1010, %v1018
        %v1023 = vadd.f32 %v1011, %v1019
        %v1024 = vadd.f32 %v1012, %v1020
        %1025 = vst.msk [vmem:[#allocation3] sm:$0xff] %vm963, %v1021
        %1026 = vst.msk [vmem:[#allocation3 + $0x8] sm:$0xff] %vm963, %v1022
        %1027 = vst.msk [vmem:[#allocation3 + $0x10] sm:$0xff] %vm963, %v1023
        %1028 = vst.msk [vmem:[#allocation3 + $0x18] sm:$0xff] %vm963, %v1024
        %v1029 = vlaneseq
        %v1030 = vand.u32 %v1029, 127
        %vm1031 = vcmp.lt.s32.totalorder %v1030, 10
        %v1032 = vsel %vm1031, 0.0, -1e+30
        %vm1033 = vcmask 130048
        %1034 = vst.msk [vmem:[%s725] sm:$0xff] %vm1033, 0.0
        %1035 = vst.msk [vmem:[%s725 + $0x8] sm:$0xff] %vm1033, 0.0
        %1036 = vst.msk [vmem:[%s725 + $0x10] sm:$0xff] %vm1033, 0.0
        %1037 = vst.msk [vmem:[%s725 + $0x18] sm:$0xff] %vm1033, 0.0
        %1038 = vst.msk [vmem:[%s725 + $0x20] sm:$0xff] %vm1033, 0.0
        %1039 = vst.msk [vmem:[%s725 + $0x28] sm:$0xff] %vm1033, 0.0
        %1040 = vst.msk [vmem:[%s725 + $0x30] sm:$0xff] %vm1033, 0.0
        %1041 = vst.msk [vmem:[%s725 + $0x38] sm:$0xff] %vm1033, 0.0
        %1042 = vst.msk [vmem:[%s725 + $0x40] sm:$0xff] %vm1033, 0.0
        %1043 = vst.msk [vmem:[%s725 + $0x48] sm:$0xff] %vm1033, 0.0
        %1044 = vst.msk [vmem:[%s725 + $0x50] sm:$0xff] %vm1033, 0.0
        %1045 = vst.msk [vmem:[%s725 + $0x58] sm:$0xff] %vm1033, 0.0
        %1046 = vst.msk [vmem:[%s725 + $0x60] sm:$0xff] %vm1033, 0.0
        %1047 = vst.msk [vmem:[%s725 + $0x68] sm:$0xff] %vm1033, 0.0
        %1048 = vst.msk [vmem:[%s725 + $0x70] sm:$0xff] %vm1033, 0.0
        %1049 = vst.msk [vmem:[%s725 + $0x78] sm:$0xff] %vm1033, 0.0
        %v1050 = vld [vmem:[#allocation3] sm:$0xff]
        %v1051 = vld [vmem:[#allocation3 + $0x8] sm:$0xff]
        %v1052 = vld [vmem:[#allocation3 + $0x10] sm:$0xff]
        %v1053 = vld [vmem:[#allocation3 + $0x18] sm:$0xff]
        %1056 = vrot.lane.b32.xlu0 %v1050, 96
        %v1057 = vpop.permute.xlu0 %1056
        %1058 = vrot.lane.b32.xlu0 %v1051, 96
        %v1059 = vpop.permute.xlu0 %1058
        %vm1060 = vcmask 64512
        %v1061 = vsel %vm1060, %v1050, 0
        %v1063 = vsel %vm1060, %v1051, 0
        %v1065 = vsel %vm1060, %v1057, 0
        %v1067 = vsel %vm1060, %v1059, 0
        %1069 = vmatpush.xpose.msra.mxu0 0.0
        %1070 = vmatpush.xpose.msra.mxu0 0.0
        %1071 = vmatpush.xpose.msra.mxu0 0.0
        %1072 = vmatpush.xpose.msra.mxu0 0.0
        %1073 = vmatpush.xpose.msra.mxu0 0.0
        %1074 = vmatpush.xpose.msra.mxu0 0.0
        %1075 = vmatpush.xpose.msra.mxu0 0.0
        %1076 = vmatpush.xpose.msra.mxu0 0.0
        %1077 = vmatpush.xpose.msra.mxu0 0.0
        %1078 = vmatpush.xpose.msra.mxu0 0.0
        %1079 = vmatpush.xpose.msra.mxu0 0.0
        %1080 = vmatpush.xpose.msra.mxu0 0.0
        %1081 = vmatpush.xpose.msra.mxu0 0.0
        %1082 = vmatpush.xpose.msra.mxu0 0.0
        %1083 = vmatpush.xpose.msra.mxu0 %v1067
        %1084 = vmatpush.xpose.msra.mxu0 %v1065
        %1085 = vmatmul.f32.gmra.mxu0 %v1061
        %v1086 = vpop.f32.mrf.mxu0
        %v1087 = vadd.f32 %v1032, %v1086
        %1088 = vmatmul.f32.gmra.mxu0 %v1063
        %v1089 = vpop.f32.mrf.mxu0
        %v1090 = vadd.f32 %v1032, %v1089
        %1091 = vdwg.mxu0
        %1094 = vrot.lane.b32.xlu0 %v1052, 96
        %v1095 = vpop.permute.xlu0 %1094
        %1096 = vrot.lane.b32.xlu0 %v1053, 96
        %v1097 = vpop.permute.xlu0 %1096
        %v1098 = vsel %vm1060, %v1052, 0
        %v1100 = vsel %vm1060, %v1053, 0
        %v1102 = vsel %vm1060, %v1095, 0
        %v1104 = vsel %vm1060, %v1097, 0
        %1106 = vmatpush.xpose.msra.mxu0 0.0
        %1107 = vmatpush.xpose.msra.mxu0 0.0
        %1108 = vmatpush.xpose.msra.mxu0 0.0
        %1109 = vmatpush.xpose.msra.mxu0 0.0
        %1110 = vmatpush.xpose.msra.mxu0 0.0
        %1111 = vmatpush.xpose.msra.mxu0 0.0
        %1112 = vmatpush.xpose.msra.mxu0 0.0
        %1113 = vmatpush.xpose.msra.mxu0 0.0
        %1114 = vmatpush.xpose.msra.mxu0 0.0
        %1115 = vmatpush.xpose.msra.mxu0 0.0
        %1116 = vmatpush.xpose.msra.mxu0 0.0
        %1117 = vmatpush.xpose.msra.mxu0 0.0
        %1118 = vmatpush.xpose.msra.mxu0 0.0
        %1119 = vmatpush.xpose.msra.mxu0 0.0
        %1120 = vmatpush.xpose.msra.mxu0 %v1104
        %1121 = vmatpush.xpose.msra.mxu0 %v1102
        %1122 = vmatmul.f32.gmra.mxu0 %v1098
        %v1123 = vpop.f32.mrf.mxu0
        %v1124 = vadd.f32 %v1032, %v1123
        %1125 = vmatmul.f32.gmra.mxu0 %v1100
        %v1126 = vpop.f32.mrf.mxu0
        %v1127 = vadd.f32 %v1032, %v1126
        %1128 = vdwg.mxu0
        %v1129 = vsel %vm1033, %v1087, -inf
        %1130 = vmax.xlane.f32.xlu0 %v1129
        %v1131 = vpop.xlane.xlu0 %1130
        %v1132 = vsel %vm1033, %v1090, -inf
        %1133 = vmax.xlane.f32.xlu0 %v1132
        %v1134 = vpop.xlane.xlu0 %1133
        %v1135 = vsel %vm1033, %v1124, -inf
        %1136 = vmax.xlane.f32.xlu0 %v1135
        %v1137 = vpop.xlane.xlu0 %1136
        %v1138 = vsel %vm1033, %v1127, -inf
        %1139 = vmax.xlane.f32.xlu0 %v1138
        %v1140 = vpop.xlane.xlu0 %1139
        %v1141 = vsub.f32 %v1087, %v1131
        %v1142 = vsub.f32 %v1090, %v1134
        %v1143 = vsub.f32 %v1124, %v1137
        %v1144 = vsub.f32 %v1127, %v1140
        %v1145 = vmul.f32 %v1141, 1.442695
        %v1146 = vpow.pop %v1145
        %v1147 = vmul.f32 %v1142, 1.442695
        %v1148 = vpow.pop %v1147
        %v1149 = vmul.f32 %v1143, 1.442695
        %v1150 = vpow.pop %v1149
        %v1151 = vmul.f32 %v1144, 1.442695
        %v1152 = vpow.pop %v1151
        %v1153 = vsel %vm1033, %v1146, 0.0
        %1154 = vadd.xlane.f32.xlu0 %v1153
        %v1155 = vpop.xlane.xlu0 %1154
        %v1156 = vsel %vm1033, %v1148, 0.0
        %1157 = vadd.xlane.f32.xlu0 %v1156
        %v1158 = vpop.xlane.xlu0 %1157
        %v1159 = vsel %vm1033, %v1150, 0.0
        %1160 = vadd.xlane.f32.xlu0 %v1159
        %v1161 = vpop.xlane.xlu0 %1160
        %v1162 = vsel %vm1033, %v1152, 0.0
        %1163 = vadd.xlane.f32.xlu0 %v1162
        %v1164 = vpop.xlane.xlu0 %1163
        %v1165 = vrcp.pop %v1155
        %v1166 = vrcp.pop %v1158
        %v1167 = vrcp.pop %v1161
        %v1168 = vrcp.pop %v1164
        %v1169 = vmul.f32 %v1146, %v1165
        %v1170 = vmul.f32 %v1148, %v1166
        %v1171 = vmul.f32 %v1150, %v1167
        %v1172 = vmul.f32 %v1152, %v1168
        %1173 = vst.msk [vmem:[#allocation5] sm:$0xff] %vm1033, %v1169
        %1174 = vst.msk [vmem:[#allocation5 + $0x8] sm:$0xff] %vm1033, %v1170
        %1175 = vst.msk [vmem:[#allocation5 + $0x10] sm:$0xff] %vm1033, %v1171
        %1176 = vst.msk [vmem:[#allocation5 + $0x18] sm:$0xff] %vm1033, %v1172
        %v1177 = vld [vmem:[#allocation5 + $0x1] sm:$0xff]
        %v1178 = vld [vmem:[#allocation5 + $0x11] sm:$0xff]
        %1181 = vrot.lane.b32.xlu0 %v1177, 127
        %v1182 = vpop.permute.xlu0 %1181
        %1183 = vrot.lane.b32.xlu0 %v1178, 127
        %v1184 = vpop.permute.xlu0 %1183
        %1187 = vst.msk [vmem:[%s725] sm:$0xff] %vm1060, %v1182
        %1188 = vst.msk [vmem:[%s725 + $0x40] sm:$0xff] %vm1060, %v1184
        %1189 = vrot.lane.b32.xlu0 %v1050, 64
        %v1190 = vpop.permute.xlu0 %1189
        %1191 = vrot.lane.b32.xlu0 %v1051, 64
        %v1192 = vpop.permute.xlu0 %1191
        %v1196 = vsel %vm1033, %v1169, 0
        %v1199 = vsel %vm1033, %v1170, 0
        %1201 = vmatpush.msra.mxu0 0.0
        %1202 = vmatpush.msra.mxu0 0.0
        %1203 = vmatpush.msra.mxu0 0.0
        %1204 = vmatpush.msra.mxu0 0.0
        %1205 = vmatpush.msra.mxu0 0.0
        %1206 = vmatpush.msra.mxu0 0.0
        %1207 = vmatpush.msra.mxu0 0.0
        %1208 = vmatpush.msra.mxu0 0.0
        %1209 = vmatpush.msra.mxu0 0.0
        %1210 = vmatpush.msra.mxu0 0.0
        %1211 = vmatpush.msra.mxu0 0.0
        %1212 = vmatpush.msra.mxu0 0.0
        %1213 = vmatpush.msra.mxu0 0.0
        %1214 = vmatpush.msra.mxu0 0.0
        %1215 = vmatpush.msra.mxu0 %v1192
        %1216 = vmatpush.msra.mxu0 %v1190
        %1217 = vmatmul.f32.gmra.mxu0 %v1196
        %v1218 = vpop.f32.mrf.mxu0
        %v1219 = vadd.f32 0.0, %v1218
        %1220 = vmatmul.f32.gmra.mxu0 %v1199
        %v1221 = vpop.f32.mrf.mxu0
        %v1222 = vadd.f32 0.0, %v1221
        %1223 = vdwg.mxu0
        %1224 = vrot.lane.b32.xlu0 %v1052, 64
        %v1225 = vpop.permute.xlu0 %1224
        %1226 = vrot.lane.b32.xlu0 %v1053, 64
        %v1227 = vpop.permute.xlu0 %1226
        %v1231 = vsel %vm1033, %v1171, 0
        %v1234 = vsel %vm1033, %v1172, 0
        %1236 = vmatpush.msra.mxu0 0.0
        %1237 = vmatpush.msra.mxu0 0.0
        %1238 = vmatpush.msra.mxu0 0.0
        %1239 = vmatpush.msra.mxu0 0.0
        %1240 = vmatpush.msra.mxu0 0.0
        %1241 = vmatpush.msra.mxu0 0.0
        %1242 = vmatpush.msra.mxu0 0.0
        %1243 = vmatpush.msra.mxu0 0.0
        %1244 = vmatpush.msra.mxu0 0.0
        %1245 = vmatpush.msra.mxu0 0.0
        %1246 = vmatpush.msra.mxu0 0.0
        %1247 = vmatpush.msra.mxu0 0.0
        %1248 = vmatpush.msra.mxu0 0.0
        %1249 = vmatpush.msra.mxu0 0.0
        %1250 = vmatpush.msra.mxu0 %v1227
        %1251 = vmatpush.msra.mxu0 %v1225
        %1252 = vmatmul.f32.gmra.mxu0 %v1231
        %v1253 = vpop.f32.mrf.mxu0
        %v1254 = vadd.f32 0.0, %v1253
        %1255 = vmatmul.f32.gmra.mxu0 %v1234
        %v1256 = vpop.f32.mrf.mxu0
        %v1257 = vadd.f32 0.0, %v1256
        %1258 = vdwg.mxu0
        %1259 = vst.msk [vmem:[#allocation4] sm:$0xff] %vm1060, %v1219
        %1260 = vst.msk [vmem:[#allocation4 + $0x8] sm:$0xff] %vm1060, %v1222
        %1261 = vst.msk [vmem:[#allocation4 + $0x10] sm:$0xff] %vm1060, %v1254
        %1262 = vst.msk [vmem:[#allocation4 + $0x18] sm:$0xff] %vm1060, %v1257
        %v1263 = vld [vmem:[#allocation3] sm:$0xff]
        %v1264 = vld [vmem:[#allocation3 + $0x8] sm:$0xff]
        %v1265 = vld [vmem:[#allocation3 + $0x10] sm:$0xff]
        %v1266 = vld [vmem:[#allocation3 + $0x18] sm:$0xff]
        %1269 = vrot.lane.b32.xlu0 %v1263, 120
        %v1270 = vpop.permute.xlu0 %1269
        %1271 = vrot.lane.b32.xlu0 %v1264, 120
        %v1272 = vpop.permute.xlu0 %1271
        %1273 = vrot.lane.b32.xlu0 %v1263, 88
        %v1274 = vpop.permute.xlu0 %1273
        %1275 = vrot.lane.b32.xlu0 %v1264, 88
        %v1276 = vpop.permute.xlu0 %1275
        %v1277 = vsel %vm1060, %v1270, 0
        %v1279 = vsel %vm1060, %v1272, 0
        %v1281 = vsel %vm1060, %v1274, 0
        %v1283 = vsel %vm1060, %v1276, 0
        %1285 = vmatpush.xpose.msra.mxu0 0.0
        %1286 = vmatpush.xpose.msra.mxu0 0.0
        %1287 = vmatpush.xpose.msra.mxu0 0.0
        %1288 = vmatpush.xpose.msra.mxu0 0.0
        %1289 = vmatpush.xpose.msra.mxu0 0.0
        %1290 = vmatpush.xpose.msra.mxu0 0.0
        %1291 = vmatpush.xpose.msra.mxu0 0.0
        %1292 = vmatpush.xpose.msra.mxu0 0.0
        %1293 = vmatpush.xpose.msra.mxu0 0.0
        %1294 = vmatpush.xpose.msra.mxu0 0.0
        %1295 = vmatpush.xpose.msra.mxu0 0.0
        %1296 = vmatpush.xpose.msra.mxu0 0.0
        %1297 = vmatpush.xpose.msra.mxu0 0.0
        %1298 = vmatpush.xpose.msra.mxu0 0.0
        %1299 = vmatpush.xpose.msra.mxu0 %v1283
        %1300 = vmatpush.xpose.msra.mxu0 %v1281
        %1301 = vmatmul.f32.gmra.mxu0 %v1277
        %v1302 = vpop.f32.mrf.mxu0
        %v1303 = vadd.f32 %v1032, %v1302
        %1304 = vmatmul.f32.gmra.mxu0 %v1279
        %v1305 = vpop.f32.mrf.mxu0
        %v1306 = vadd.f32 %v1032, %v1305
        %1307 = vdwg.mxu0
        %1310 = vrot.lane.b32.xlu0 %v1265, 120
        %v1311 = vpop.permute.xlu0 %1310
        %1312 = vrot.lane.b32.xlu0 %v1266, 120
        %v1313 = vpop.permute.xlu0 %1312
        %1314 = vrot.lane.b32.xlu0 %v1265, 88
        %v1315 = vpop.permute.xlu0 %1314
        %1316 = vrot.lane.b32.xlu0 %v1266, 88
        %v1317 = vpop.permute.xlu0 %1316
        %v1318 = vsel %vm1060, %v1311, 0
        %v1320 = vsel %vm1060, %v1313, 0
        %v1322 = vsel %vm1060, %v1315, 0
        %v1324 = vsel %vm1060, %v1317, 0
        %1326 = vmatpush.xpose.msra.mxu0 0.0
        %1327 = vmatpush.xpose.msra.mxu0 0.0
        %1328 = vmatpush.xpose.msra.mxu0 0.0
        %1329 = vmatpush.xpose.msra.mxu0 0.0
        %1330 = vmatpush.xpose.msra.mxu0 0.0
        %1331 = vmatpush.xpose.msra.mxu0 0.0
        %1332 = vmatpush.xpose.msra.mxu0 0.0
        %1333 = vmatpush.xpose.msra.mxu0 0.0
        %1334 = vmatpush.xpose.msra.mxu0 0.0
        %1335 = vmatpush.xpose.msra.mxu0 0.0
        %1336 = vmatpush.xpose.msra.mxu0 0.0
        %1337 = vmatpush.xpose.msra.mxu0 0.0
        %1338 = vmatpush.xpose.msra.mxu0 0.0
        %1339 = vmatpush.xpose.msra.mxu0 0.0
        %1340 = vmatpush.xpose.msra.mxu0 %v1324
        %1341 = vmatpush.xpose.msra.mxu0 %v1322
        %1342 = vmatmul.f32.gmra.mxu0 %v1318
        %v1343 = vpop.f32.mrf.mxu0
        %v1344 = vadd.f32 %v1032, %v1343
        %1345 = vmatmul.f32.gmra.mxu0 %v1320
        %v1346 = vpop.f32.mrf.mxu0
        %v1347 = vadd.f32 %v1032, %v1346
        %1348 = vdwg.mxu0
        %v1349 = vsel %vm1033, %v1303, -inf
        %1350 = vmax.xlane.f32.xlu0 %v1349
        %v1351 = vpop.xlane.xlu0 %1350
        %v1352 = vsel %vm1033, %v1306, -inf
        %1353 = vmax.xlane.f32.xlu0 %v1352
        %v1354 = vpop.xlane.xlu0 %1353
        %v1355 = vsel %vm1033, %v1344, -inf
        %1356 = vmax.xlane.f32.xlu0 %v1355
        %v1357 = vpop.xlane.xlu0 %1356
        %v1358 = vsel %vm1033, %v1347, -inf
        %1359 = vmax.xlane.f32.xlu0 %v1358
        %v1360 = vpop.xlane.xlu0 %1359
        %v1361 = vsub.f32 %v1303, %v1351
        %v1362 = vsub.f32 %v1306, %v1354
        %v1363 = vsub.f32 %v1344, %v1357
        %v1364 = vsub.f32 %v1347, %v1360
        %v1365 = vmul.f32 %v1361, 1.442695
        %v1366 = vpow.pop %v1365
        %v1367 = vmul.f32 %v1362, 1.442695
        %v1368 = vpow.pop %v1367
        %v1369 = vmul.f32 %v1363, 1.442695
        %v1370 = vpow.pop %v1369
        %v1371 = vmul.f32 %v1364, 1.442695
        %v1372 = vpow.pop %v1371
        %v1373 = vsel %vm1033, %v1366, 0.0
        %1374 = vadd.xlane.f32.xlu0 %v1373
        %v1375 = vpop.xlane.xlu0 %1374
        %v1376 = vsel %vm1033, %v1368, 0.0
        %1377 = vadd.xlane.f32.xlu0 %v1376
        %v1378 = vpop.xlane.xlu0 %1377
        %v1379 = vsel %vm1033, %v1370, 0.0
        %1380 = vadd.xlane.f32.xlu0 %v1379
        %v1381 = vpop.xlane.xlu0 %1380
        %v1382 = vsel %vm1033, %v1372, 0.0
        %1383 = vadd.xlane.f32.xlu0 %v1382
        %v1384 = vpop.xlane.xlu0 %1383
        %v1385 = vrcp.pop %v1375
        %v1386 = vrcp.pop %v1378
        %v1387 = vrcp.pop %v1381
        %v1388 = vrcp.pop %v1384
        %v1389 = vmul.f32 %v1366, %v1385
        %v1390 = vmul.f32 %v1368, %v1386
        %v1391 = vmul.f32 %v1370, %v1387
        %v1392 = vmul.f32 %v1372, %v1388
        %1393 = vst.msk [vmem:[#allocation5] sm:$0xff] %vm1033, %v1389
        %1394 = vst.msk [vmem:[#allocation5 + $0x8] sm:$0xff] %vm1033, %v1390
        %1395 = vst.msk [vmem:[#allocation5 + $0x10] sm:$0xff] %vm1033, %v1391
        %1396 = vst.msk [vmem:[#allocation5 + $0x18] sm:$0xff] %vm1033, %v1392
        %v1397 = vld [vmem:[#allocation5 + $0x1] sm:$0xff]
        %v1398 = vld [vmem:[#allocation5 + $0x11] sm:$0xff]
        %1401 = vrot.lane.b32.xlu0 %v1397, 127
        %v1402 = vpop.permute.xlu0 %1401
        %1403 = vrot.lane.b32.xlu0 %v1398, 127
        %v1404 = vpop.permute.xlu0 %1403
        %s1407 = scalar_lea.vmem %s725, 16 [#allocation7]
        %1408 = vst.msk [vmem:[%s1407] sm:$0xff] %vm1060, %v1402
        %1409 = vst.msk [vmem:[%s1407 + $0x40] sm:$0xff] %vm1060, %v1404
        %1410 = vrot.lane.b32.xlu0 %v1263, 56
        %v1411 = vpop.permute.xlu0 %1410
        %1412 = vrot.lane.b32.xlu0 %v1264, 56
        %v1413 = vpop.permute.xlu0 %1412
        %v1417 = vsel %vm1033, %v1389, 0
        %v1420 = vsel %vm1033, %v1390, 0
        %1422 = vmatpush.msra.mxu0 0.0
        %1423 = vmatpush.msra.mxu0 0.0
        %1424 = vmatpush.msra.mxu0 0.0
        %1425 = vmatpush.msra.mxu0 0.0
        %1426 = vmatpush.msra.mxu0 0.0
        %1427 = vmatpush.msra.mxu0 0.0
        %1428 = vmatpush.msra.mxu0 0.0
        %1429 = vmatpush.msra.mxu0 0.0
        %1430 = vmatpush.msra.mxu0 0.0
        %1431 = vmatpush.msra.mxu0 0.0
        %1432 = vmatpush.msra.mxu0 0.0
        %1433 = vmatpush.msra.mxu0 0.0
        %1434 = vmatpush.msra.mxu0 0.0
        %1435 = vmatpush.msra.mxu0 0.0
        %1436 = vmatpush.msra.mxu0 %v1413
        %1437 = vmatpush.msra.mxu0 %v1411
        %1438 = vmatmul.f32.gmra.mxu0 %v1417
        %v1439 = vpop.f32.mrf.mxu0
        %v1440 = vadd.f32 0.0, %v1439
        %1441 = vmatmul.f32.gmra.mxu0 %v1420
        %v1442 = vpop.f32.mrf.mxu0
        %v1443 = vadd.f32 0.0, %v1442
        %1444 = vdwg.mxu0
        %1445 = vrot.lane.b32.xlu0 %v1265, 56
        %v1446 = vpop.permute.xlu0 %1445
        %1447 = vrot.lane.b32.xlu0 %v1266, 56
        %v1448 = vpop.permute.xlu0 %1447
        %v1452 = vsel %vm1033, %v1391, 0
        %v1455 = vsel %vm1033, %v1392, 0
        %1457 = vmatpush.msra.mxu0 0.0
        %1458 = vmatpush.msra.mxu0 0.0
        %1459 = vmatpush.msra.mxu0 0.0
        %1460 = vmatpush.msra.mxu0 0.0
        %1461 = vmatpush.msra.mxu0 0.0
        %1462 = vmatpush.msra.mxu0 0.0
        %1463 = vmatpush.msra.mxu0 0.0
        %1464 = vmatpush.msra.mxu0 0.0
        %1465 = vmatpush.msra.mxu0 0.0
        %1466 = vmatpush.msra.mxu0 0.0
        %1467 = vmatpush.msra.mxu0 0.0
        %1468 = vmatpush.msra.mxu0 0.0
        %1469 = vmatpush.msra.mxu0 0.0
        %1470 = vmatpush.msra.mxu0 0.0
        %1471 = vmatpush.msra.mxu0 %v1448
        %1472 = vmatpush.msra.mxu0 %v1446
        %1473 = vmatmul.f32.gmra.mxu0 %v1452
        %v1474 = vpop.f32.mrf.mxu0
        %v1475 = vadd.f32 0.0, %v1474
        %1476 = vmatmul.f32.gmra.mxu0 %v1455
        %v1477 = vpop.f32.mrf.mxu0
        %v1478 = vadd.f32 0.0, %v1477
        %1479 = vdwg.mxu0
        %1484 = vrot.lane.b32.xlu0 %v1440, 8
        %v1485 = vpop.permute.xlu0 %1484
        %1486 = vrot.lane.b32.xlu0 %v1443, 8
        %v1487 = vpop.permute.xlu0 %1486
        %1488 = vrot.lane.b32.xlu0 %v1475, 8
        %v1489 = vpop.permute.xlu0 %1488
        %1490 = vrot.lane.b32.xlu0 %v1478, 8
        %v1491 = vpop.permute.xlu0 %1490
        %vm1496 = vcmask 130112
        %1497 = vst.msk [vmem:[#allocation4] sm:$0xff] %vm1496, %v1485
        %1498 = vst.msk [vmem:[#allocation4 + $0x8] sm:$0xff] %vm1496, %v1487
        %1499 = vst.msk [vmem:[#allocation4 + $0x10] sm:$0xff] %vm1496, %v1489
        %1500 = vst.msk [vmem:[#allocation4 + $0x18] sm:$0xff] %vm1496, %v1491
        %v1501 = vld [vmem:[#allocation3] sm:$0xff]
        %v1502 = vld [vmem:[#allocation3 + $0x8] sm:$0xff]
        %v1503 = vld [vmem:[#allocation3 + $0x10] sm:$0xff]
        %v1504 = vld [vmem:[#allocation3 + $0x18] sm:$0xff]
        %1507 = vrot.lane.b32.xlu0 %v1501, 112
        %v1508 = vpop.permute.xlu0 %1507
        %1509 = vrot.lane.b32.xlu0 %v1502, 112
        %v1510 = vpop.permute.xlu0 %1509
        %1511 = vrot.lane.b32.xlu0 %v1501, 80
        %v1512 = vpop.permute.xlu0 %1511
        %1513 = vrot.lane.b32.xlu0 %v1502, 80
        %v1514 = vpop.permute.xlu0 %1513
        %v1515 = vsel %vm1060, %v1508, 0
        %v1517 = vsel %vm1060, %v1510, 0
        %v1519 = vsel %vm1060, %v1512, 0
        %v1521 = vsel %vm1060, %v1514, 0
        %1523 = vmatpush.xpose.msra.mxu0 0.0
        %1524 = vmatpush.xpose.msra.mxu0 0.0
        %1525 = vmatpush.xpose.msra.mxu0 0.0
        %1526 = vmatpush.xpose.msra.mxu0 0.0
        %1527 = vmatpush.xpose.msra.mxu0 0.0
        %1528 = vmatpush.xpose.msra.mxu0 0.0
        %1529 = vmatpush.xpose.msra.mxu0 0.0
        %1530 = vmatpush.xpose.msra.mxu0 0.0
        %1531 = vmatpush.xpose.msra.mxu0 0.0
        %1532 = vmatpush.xpose.msra.mxu0 0.0
        %1533 = vmatpush.xpose.msra.mxu0 0.0
        %1534 = vmatpush.xpose.msra.mxu0 0.0
        %1535 = vmatpush.xpose.msra.mxu0 0.0
        %1536 = vmatpush.xpose.msra.mxu0 0.0
        %1537 = vmatpush.xpose.msra.mxu0 %v1521
        %1538 = vmatpush.xpose.msra.mxu0 %v1519
        %1539 = vmatmul.f32.gmra.mxu0 %v1515
        %v1540 = vpop.f32.mrf.mxu0
        %v1541 = vadd.f32 %v1032, %v1540
        %1542 = vmatmul.f32.gmra.mxu0 %v1517
        %v1543 = vpop.f32.mrf.mxu0
        %v1544 = vadd.f32 %v1032, %v1543
        %1545 = vdwg.mxu0
        %1548 = vrot.lane.b32.xlu0 %v1503, 112
        %v1549 = vpop.permute.xlu0 %1548
        %1550 = vrot.lane.b32.xlu0 %v1504, 112
        %v1551 = vpop.permute.xlu0 %1550
        %1552 = vrot.lane.b32.xlu0 %v1503, 80
        %v1553 = vpop.permute.xlu0 %1552
        %1554 = vrot.lane.b32.xlu0 %v1504, 80
        %v1555 = vpop.permute.xlu0 %1554
        %v1556 = vsel %vm1060, %v1549, 0
        %v1558 = vsel %vm1060, %v1551, 0
        %v1560 = vsel %vm1060, %v1553, 0
        %v1562 = vsel %vm1060, %v1555, 0
        %1564 = vmatpush.xpose.msra.mxu0 0.0
        %1565 = vmatpush.xpose.msra.mxu0 0.0
        %1566 = vmatpush.xpose.msra.mxu0 0.0
        %1567 = vmatpush.xpose.msra.mxu0 0.0
        %1568 = vmatpush.xpose.msra.mxu0 0.0
        %1569 = vmatpush.xpose.msra.mxu0 0.0
        %1570 = vmatpush.xpose.msra.mxu0 0.0
        %1571 = vmatpush.xpose.msra.mxu0 0.0
        %1572 = vmatpush.xpose.msra.mxu0 0.0
        %1573 = vmatpush.xpose.msra.mxu0 0.0
        %1574 = vmatpush.xpose.msra.mxu0 0.0
        %1575 = vmatpush.xpose.msra.mxu0 0.0
        %1576 = vmatpush.xpose.msra.mxu0 0.0
        %1577 = vmatpush.xpose.msra.mxu0 0.0
        %1578 = vmatpush.xpose.msra.mxu0 %v1562
        %1579 = vmatpush.xpose.msra.mxu0 %v1560
        %1580 = vmatmul.f32.gmra.mxu0 %v1556
        %v1581 = vpop.f32.mrf.mxu0
        %v1582 = vadd.f32 %v1032, %v1581
        %1583 = vmatmul.f32.gmra.mxu0 %v1558
        %v1584 = vpop.f32.mrf.mxu0
        %v1585 = vadd.f32 %v1032, %v1584
        %1586 = vdwg.mxu0
        %v1587 = vsel %vm1033, %v1541, -inf
        %1588 = vmax.xlane.f32.xlu0 %v1587
        %v1589 = vpop.xlane.xlu0 %1588
        %v1590 = vsel %vm1033, %v1544, -inf
        %1591 = vmax.xlane.f32.xlu0 %v1590
        %v1592 = vpop.xlane.xlu0 %1591
        %v1593 = vsel %vm1033, %v1582, -inf
        %1594 = vmax.xlane.f32.xlu0 %v1593
        %v1595 = vpop.xlane.xlu0 %1594
        %v1596 = vsel %vm1033, %v1585, -inf
        %1597 = vmax.xlane.f32.xlu0 %v1596
        %v1598 = vpop.xlane.xlu0 %1597
        %v1599 = vsub.f32 %v1541, %v1589
        %v1600 = vsub.f32 %v1544, %v1592
        %v1601 = vsub.f32 %v1582, %v1595
        %v1602 = vsub.f32 %v1585, %v1598
        %v1603 = vmul.f32 %v1599, 1.442695
        %v1604 = vpow.pop %v1603
        %v1605 = vmul.f32 %v1600, 1.442695
        %v1606 = vpow.pop %v1605
        %v1607 = vmul.f32 %v1601, 1.442695
        %v1608 = vpow.pop %v1607
        %v1609 = vmul.f32 %v1602, 1.442695
        %v1610 = vpow.pop %v1609
        %v1611 = vsel %vm1033, %v1604, 0.0
        %1612 = vadd.xlane.f32.xlu0 %v1611
        %v1613 = vpop.xlane.xlu0 %1612
        %v1614 = vsel %vm1033, %v1606, 0.0
        %1615 = vadd.xlane.f32.xlu0 %v1614
        %v1616 = vpop.xlane.xlu0 %1615
        %v1617 = vsel %vm1033, %v1608, 0.0
        %1618 = vadd.xlane.f32.xlu0 %v1617
        %v1619 = vpop.xlane.xlu0 %1618
        %v1620 = vsel %vm1033, %v1610, 0.0
        %1621 = vadd.xlane.f32.xlu0 %v1620
        %v1622 = vpop.xlane.xlu0 %1621
        %v1623 = vrcp.pop %v1613
        %v1624 = vrcp.pop %v1616
        %v1625 = vrcp.pop %v1619
        %v1626 = vrcp.pop %v1622
        %v1627 = vmul.f32 %v1604, %v1623
        %v1628 = vmul.f32 %v1606, %v1624
        %v1629 = vmul.f32 %v1608, %v1625
        %v1630 = vmul.f32 %v1610, %v1626
        %1631 = vst.msk [vmem:[#allocation5] sm:$0xff] %vm1033, %v1627
        %1632 = vst.msk [vmem:[#allocation5 + $0x8] sm:$0xff] %vm1033, %v1628
        %1633 = vst.msk [vmem:[#allocation5 + $0x10] sm:$0xff] %vm1033, %v1629
        %1634 = vst.msk [vmem:[#allocation5 + $0x18] sm:$0xff] %vm1033, %v1630
        %v1635 = vld [vmem:[#allocation5 + $0x1] sm:$0xff]
        %v1636 = vld [vmem:[#allocation5 + $0x11] sm:$0xff]
        %1639 = vrot.lane.b32.xlu0 %v1635, 127
        %v1640 = vpop.permute.xlu0 %1639
        %1641 = vrot.lane.b32.xlu0 %v1636, 127
        %v1642 = vpop.permute.xlu0 %1641
        %s1645 = scalar_lea.vmem %s725, 32 [#allocation7]
        %1646 = vst.msk [vmem:[%s1645] sm:$0xff] %vm1060, %v1640
        %1647 = vst.msk [vmem:[%s1645 + $0x40] sm:$0xff] %vm1060, %v1642
        %1648 = vrot.lane.b32.xlu0 %v1501, 48
        %v1649 = vpop.permute.xlu0 %1648
        %1650 = vrot.lane.b32.xlu0 %v1502, 48
        %v1651 = vpop.permute.xlu0 %1650
        %v1655 = vsel %vm1033, %v1627, 0
        %v1658 = vsel %vm1033, %v1628, 0
        %1660 = vmatpush.msra.mxu0 0.0
        %1661 = vmatpush.msra.mxu0 0.0
        %1662 = vmatpush.msra.mxu0 0.0
        %1663 = vmatpush.msra.mxu0 0.0
        %1664 = vmatpush.msra.mxu0 0.0
        %1665 = vmatpush.msra.mxu0 0.0
        %1666 = vmatpush.msra.mxu0 0.0
        %1667 = vmatpush.msra.mxu0 0.0
        %1668 = vmatpush.msra.mxu0 0.0
        %1669 = vmatpush.msra.mxu0 0.0
        %1670 = vmatpush.msra.mxu0 0.0
        %1671 = vmatpush.msra.mxu0 0.0
        %1672 = vmatpush.msra.mxu0 0.0
        %1673 = vmatpush.msra.mxu0 0.0
        %1674 = vmatpush.msra.mxu0 %v1651
        %1675 = vmatpush.msra.mxu0 %v1649
        %1676 = vmatmul.f32.gmra.mxu0 %v1655
        %v1677 = vpop.f32.mrf.mxu0
        %v1678 = vadd.f32 0.0, %v1677
        %1679 = vmatmul.f32.gmra.mxu0 %v1658
        %v1680 = vpop.f32.mrf.mxu0
        %v1681 = vadd.f32 0.0, %v1680
        %1682 = vdwg.mxu0
        %1683 = vrot.lane.b32.xlu0 %v1503, 48
        %v1684 = vpop.permute.xlu0 %1683
        %1685 = vrot.lane.b32.xlu0 %v1504, 48
        %v1686 = vpop.permute.xlu0 %1685
        %v1690 = vsel %vm1033, %v1629, 0
        %v1693 = vsel %vm1033, %v1630, 0
        %1695 = vmatpush.msra.mxu0 0.0
        %1696 = vmatpush.msra.mxu0 0.0
        %1697 = vmatpush.msra.mxu0 0.0
        %1698 = vmatpush.msra.mxu0 0.0
        %1699 = vmatpush.msra.mxu0 0.0
        %1700 = vmatpush.msra.mxu0 0.0
        %1701 = vmatpush.msra.mxu0 0.0
        %1702 = vmatpush.msra.mxu0 0.0
        %1703 = vmatpush.msra.mxu0 0.0
        %1704 = vmatpush.msra.mxu0 0.0
        %1705 = vmatpush.msra.mxu0 0.0
        %1706 = vmatpush.msra.mxu0 0.0
        %1707 = vmatpush.msra.mxu0 0.0
        %1708 = vmatpush.msra.mxu0 0.0
        %1709 = vmatpush.msra.mxu0 %v1686
        %1710 = vmatpush.msra.mxu0 %v1684
        %1711 = vmatmul.f32.gmra.mxu0 %v1690
        %v1712 = vpop.f32.mrf.mxu0
        %v1713 = vadd.f32 0.0, %v1712
        %1714 = vmatmul.f32.gmra.mxu0 %v1693
        %v1715 = vpop.f32.mrf.mxu0
        %v1716 = vadd.f32 0.0, %v1715
        %1717 = vdwg.mxu0
        %1722 = vrot.lane.b32.xlu0 %v1678, 16
        %v1723 = vpop.permute.xlu0 %1722
        %1724 = vrot.lane.b32.xlu0 %v1681, 16
        %v1725 = vpop.permute.xlu0 %1724
        %1726 = vrot.lane.b32.xlu0 %v1713, 16
        %v1727 = vpop.permute.xlu0 %1726
        %1728 = vrot.lane.b32.xlu0 %v1716, 16
        %v1729 = vpop.permute.xlu0 %1728
        %vm1734 = vcmask 195712
        %1735 = vst.msk [vmem:[#allocation4] sm:$0xff] %vm1734, %v1723
        %1736 = vst.msk [vmem:[#allocation4 + $0x8] sm:$0xff] %vm1734, %v1725
        %1737 = vst.msk [vmem:[#allocation4 + $0x10] sm:$0xff] %vm1734, %v1727
        %1738 = vst.msk [vmem:[#allocation4 + $0x18] sm:$0xff] %vm1734, %v1729
        %v1739 = vld [vmem:[#allocation3] sm:$0xff]
        %v1740 = vld [vmem:[#allocation3 + $0x8] sm:$0xff]
        %v1741 = vld [vmem:[#allocation3 + $0x10] sm:$0xff]
        %v1742 = vld [vmem:[#allocation3 + $0x18] sm:$0xff]
        %1745 = vrot.lane.b32.xlu0 %v1739, 104
        %v1746 = vpop.permute.xlu0 %1745
        %1747 = vrot.lane.b32.xlu0 %v1740, 104
        %v1748 = vpop.permute.xlu0 %1747
        %1749 = vrot.lane.b32.xlu0 %v1739, 72
        %v1750 = vpop.permute.xlu0 %1749
        %1751 = vrot.lane.b32.xlu0 %v1740, 72
        %v1752 = vpop.permute.xlu0 %1751
        %v1753 = vsel %vm1060, %v1746, 0
        %v1755 = vsel %vm1060, %v1748, 0
        %v1757 = vsel %vm1060, %v1750, 0
        %v1759 = vsel %vm1060, %v1752, 0
        %1761 = vmatpush.xpose.msra.mxu0 0.0
        %1762 = vmatpush.xpose.msra.mxu0 0.0
        %1763 = vmatpush.xpose.msra.mxu0 0.0
        %1764 = vmatpush.xpose.msra.mxu0 0.0
        %1765 = vmatpush.xpose.msra.mxu0 0.0
        %1766 = vmatpush.xpose.msra.mxu0 0.0
        %1767 = vmatpush.xpose.msra.mxu0 0.0
        %1768 = vmatpush.xpose.msra.mxu0 0.0
        %1769 = vmatpush.xpose.msra.mxu0 0.0
        %1770 = vmatpush.xpose.msra.mxu0 0.0
        %1771 = vmatpush.xpose.msra.mxu0 0.0
        %1772 = vmatpush.xpose.msra.mxu0 0.0
        %1773 = vmatpush.xpose.msra.mxu0 0.0
        %1774 = vmatpush.xpose.msra.mxu0 0.0
        %1775 = vmatpush.xpose.msra.mxu0 %v1759
        %1776 = vmatpush.xpose.msra.mxu0 %v1757
        %1777 = vmatmul.f32.gmra.mxu0 %v1753
        %v1778 = vpop.f32.mrf.mxu0
        %v1779 = vadd.f32 %v1032, %v1778
        %1780 = vmatmul.f32.gmra.mxu0 %v1755
        %v1781 = vpop.f32.mrf.mxu0
        %v1782 = vadd.f32 %v1032, %v1781
        %1783 = vdwg.mxu0
        %1786 = vrot.lane.b32.xlu0 %v1741, 104
        %v1787 = vpop.permute.xlu0 %1786
        %1788 = vrot.lane.b32.xlu0 %v1742, 104
        %v1789 = vpop.permute.xlu0 %1788
        %1790 = vrot.lane.b32.xlu0 %v1741, 72
        %v1791 = vpop.permute.xlu0 %1790
        %1792 = vrot.lane.b32.xlu0 %v1742, 72
        %v1793 = vpop.permute.xlu0 %1792
        %v1794 = vsel %vm1060, %v1787, 0
        %v1796 = vsel %vm1060, %v1789, 0
        %v1798 = vsel %vm1060, %v1791, 0
        %v1800 = vsel %vm1060, %v1793, 0
        %1802 = vmatpush.xpose.msra.mxu0 0.0
        %1803 = vmatpush.xpose.msra.mxu0 0.0
        %1804 = vmatpush.xpose.msra.mxu0 0.0
        %1805 = vmatpush.xpose.msra.mxu0 0.0
        %1806 = vmatpush.xpose.msra.mxu0 0.0
        %1807 = vmatpush.xpose.msra.mxu0 0.0
        %1808 = vmatpush.xpose.msra.mxu0 0.0
        %1809 = vmatpush.xpose.msra.mxu0 0.0
        %1810 = vmatpush.xpose.msra.mxu0 0.0
        %1811 = vmatpush.xpose.msra.mxu0 0.0
        %1812 = vmatpush.xpose.msra.mxu0 0.0
        %1813 = vmatpush.xpose.msra.mxu0 0.0
        %1814 = vmatpush.xpose.msra.mxu0 0.0
        %1815 = vmatpush.xpose.msra.mxu0 0.0
        %1816 = vmatpush.xpose.msra.mxu0 %v1800
        %1817 = vmatpush.xpose.msra.mxu0 %v1798
        %1818 = vmatmul.f32.gmra.mxu0 %v1794
        %v1819 = vpop.f32.mrf.mxu0
        %v1820 = vadd.f32 %v1032, %v1819
        %1821 = vmatmul.f32.gmra.mxu0 %v1796
        %v1822 = vpop.f32.mrf.mxu0
        %v1823 = vadd.f32 %v1032, %v1822
        %1824 = vdwg.mxu0
        %v1825 = vsel %vm1033, %v1779, -inf
        %1826 = vmax.xlane.f32.xlu0 %v1825
        %v1827 = vpop.xlane.xlu0 %1826
        %v1828 = vsel %vm1033, %v1782, -inf
        %1829 = vmax.xlane.f32.xlu0 %v1828
        %v1830 = vpop.xlane.xlu0 %1829
        %v1831 = vsel %vm1033, %v1820, -inf
        %1832 = vmax.xlane.f32.xlu0 %v1831
        %v1833 = vpop.xlane.xlu0 %1832
        %v1834 = vsel %vm1033, %v1823, -inf
        %1835 = vmax.xlane.f32.xlu0 %v1834
        %v1836 = vpop.xlane.xlu0 %1835
        %v1837 = vsub.f32 %v1779, %v1827
        %v1838 = vsub.f32 %v1782, %v1830
        %v1839 = vsub.f32 %v1820, %v1833
        %v1840 = vsub.f32 %v1823, %v1836
        %v1841 = vmul.f32 %v1837, 1.442695
        %v1842 = vpow.pop %v1841
        %v1843 = vmul.f32 %v1838, 1.442695
        %v1844 = vpow.pop %v1843
        %v1845 = vmul.f32 %v1839, 1.442695
        %v1846 = vpow.pop %v1845
        %v1847 = vmul.f32 %v1840, 1.442695
        %v1848 = vpow.pop %v1847
        %v1849 = vsel %vm1033, %v1842, 0.0
        %1850 = vadd.xlane.f32.xlu0 %v1849
        %v1851 = vpop.xlane.xlu0 %1850
        %v1852 = vsel %vm1033, %v1844, 0.0
        %1853 = vadd.xlane.f32.xlu0 %v1852
        %v1854 = vpop.xlane.xlu0 %1853
        %v1855 = vsel %vm1033, %v1846, 0.0
        %1856 = vadd.xlane.f32.xlu0 %v1855
        %v1857 = vpop.xlane.xlu0 %1856
        %v1858 = vsel %vm1033, %v1848, 0.0
        %1859 = vadd.xlane.f32.xlu0 %v1858
        %v1860 = vpop.xlane.xlu0 %1859
        %v1861 = vrcp.pop %v1851
        %v1862 = vrcp.pop %v1854
        %v1863 = vrcp.pop %v1857
        %v1864 = vrcp.pop %v1860
        %v1865 = vmul.f32 %v1842, %v1861
        %v1866 = vmul.f32 %v1844, %v1862
        %v1867 = vmul.f32 %v1846, %v1863
        %v1868 = vmul.f32 %v1848, %v1864
        %1869 = vst.msk [vmem:[#allocation5] sm:$0xff] %vm1033, %v1865
        %1870 = vst.msk [vmem:[#allocation5 + $0x8] sm:$0xff] %vm1033, %v1866
        %1871 = vst.msk [vmem:[#allocation5 + $0x10] sm:$0xff] %vm1033, %v1867
        %1872 = vst.msk [vmem:[#allocation5 + $0x18] sm:$0xff] %vm1033, %v1868
        %v1873 = vld [vmem:[#allocation5 + $0x1] sm:$0xff]
        %v1874 = vld [vmem:[#allocation5 + $0x11] sm:$0xff]
        %1877 = vrot.lane.b32.xlu0 %v1873, 127
        %v1878 = vpop.permute.xlu0 %1877
        %1879 = vrot.lane.b32.xlu0 %v1874, 127
        %v1880 = vpop.permute.xlu0 %1879
        %s1883 = scalar_lea.vmem %s725, 48 [#allocation7]
        %1884 = vst.msk [vmem:[%s1883] sm:$0xff] %vm1060, %v1878
        %1885 = vst.msk [vmem:[%s1883 + $0x40] sm:$0xff] %vm1060, %v1880
        %1886 = vrot.lane.b32.xlu0 %v1739, 40
        %v1887 = vpop.permute.xlu0 %1886
        %1888 = vrot.lane.b32.xlu0 %v1740, 40
        %v1889 = vpop.permute.xlu0 %1888
        %v1893 = vsel %vm1033, %v1865, 0
        %v1896 = vsel %vm1033, %v1866, 0
        %1898 = vmatpush.msra.mxu0 0.0
        %1899 = vmatpush.msra.mxu0 0.0
        %1900 = vmatpush.msra.mxu0 0.0
        %1901 = vmatpush.msra.mxu0 0.0
        %1902 = vmatpush.msra.mxu0 0.0
        %1903 = vmatpush.msra.mxu0 0.0
        %1904 = vmatpush.msra.mxu0 0.0
        %1905 = vmatpush.msra.mxu0 0.0
        %1906 = vmatpush.msra.mxu0 0.0
        %1907 = vmatpush.msra.mxu0 0.0
        %1908 = vmatpush.msra.mxu0 0.0
        %1909 = vmatpush.msra.mxu0 0.0
        %1910 = vmatpush.msra.mxu0 0.0
        %1911 = vmatpush.msra.mxu0 0.0
        %1912 = vmatpush.msra.mxu0 %v1889
        %1913 = vmatpush.msra.mxu0 %v1887
        %1914 = vmatmul.f32.gmra.mxu0 %v1893
        %v1915 = vpop.f32.mrf.mxu0
        %v1916 = vadd.f32 0.0, %v1915
        %1917 = vmatmul.f32.gmra.mxu0 %v1896
        %v1918 = vpop.f32.mrf.mxu0
        %v1919 = vadd.f32 0.0, %v1918
        %1920 = vdwg.mxu0
        %1921 = vrot.lane.b32.xlu0 %v1741, 40
        %v1922 = vpop.permute.xlu0 %1921
        %1923 = vrot.lane.b32.xlu0 %v1742, 40
        %v1924 = vpop.permute.xlu0 %1923
        %v1928 = vsel %vm1033, %v1867, 0
        %v1931 = vsel %vm1033, %v1868, 0
        %1933 = vmatpush.msra.mxu0 0.0
        %1934 = vmatpush.msra.mxu0 0.0
        %1935 = vmatpush.msra.mxu0 0.0
        %1936 = vmatpush.msra.mxu0 0.0
        %1937 = vmatpush.msra.mxu0 0.0
        %1938 = vmatpush.msra.mxu0 0.0
        %1939 = vmatpush.msra.mxu0 0.0
        %1940 = vmatpush.msra.mxu0 0.0
        %1941 = vmatpush.msra.mxu0 0.0
        %1942 = vmatpush.msra.mxu0 0.0
        %1943 = vmatpush.msra.mxu0 0.0
        %1944 = vmatpush.msra.mxu0 0.0
        %1945 = vmatpush.msra.mxu0 0.0
        %1946 = vmatpush.msra.mxu0 0.0
        %1947 = vmatpush.msra.mxu0 %v1924
        %1948 = vmatpush.msra.mxu0 %v1922
        %1949 = vmatmul.f32.gmra.mxu0 %v1928
        %v1950 = vpop.f32.mrf.mxu0
        %v1951 = vadd.f32 0.0, %v1950
        %1952 = vmatmul.f32.gmra.mxu0 %v1931
        %v1953 = vpop.f32.mrf.mxu0
        %v1954 = vadd.f32 0.0, %v1953
        %1955 = vdwg.mxu0
        %1960 = vrot.lane.b32.xlu0 %v1916, 24
        %v1961 = vpop.permute.xlu0 %1960
        %1962 = vrot.lane.b32.xlu0 %v1919, 24
        %v1963 = vpop.permute.xlu0 %1962
        %1964 = vrot.lane.b32.xlu0 %v1951, 24
        %v1965 = vpop.permute.xlu0 %1964
        %1966 = vrot.lane.b32.xlu0 %v1954, 24
        %v1967 = vpop.permute.xlu0 %1966
        %vm1972 = vcmask 261312
        %1973 = vst.msk [vmem:[#allocation4] sm:$0xff] %vm1972, %v1961
        %1974 = vst.msk [vmem:[#allocation4 + $0x8] sm:$0xff] %vm1972, %v1963
        %1975 = vst.msk [vmem:[#allocation4 + $0x10] sm:$0xff] %vm1972, %v1965
        %1976 = vst.msk [vmem:[#allocation4 + $0x18] sm:$0xff] %vm1972, %v1967
        %v1977 = vld [vmem:[#allocation4] sm:$0xff]
        %v1978 = vld [vmem:[#allocation4 + $0x8] sm:$0xff]
        %v1979 = vld [vmem:[#allocation4 + $0x10] sm:$0xff]
        %v1980 = vld [vmem:[#allocation4 + $0x18] sm:$0xff]
        %v1981 = vld [vmem:[%s746] sm:$0xff]
        %v1982 = vld [vmem:[%s746 + $0x8] sm:$0xff]
        %v1983 = vld [vmem:[%s746 + $0x10] sm:$0xff]
        %v1984 = vld [vmem:[%s746 + $0x18] sm:$0xff]
        %v1985 = vld [vmem:[%s749] sm:$0x1]
        %v1987 = vperm.slane %v1985, 0
        %v1990 = vsel %vm792, %v1977, 0
        %v1993 = vsel %vm792, %v1978, 0
        %v1996 = vsel %vm792, %v1979, 0
        %v1999 = vsel %vm792, %v1980, 0
        %2001 = vmatpush.msra.mxu0 0.0
        %2002 = vmatpush.msra.mxu0 0.0
        %2003 = vmatpush.msra.mxu0 0.0
        %2004 = vmatpush.msra.mxu0 0.0
        %2005 = vmatpush.msra.mxu0 0.0
        %2006 = vmatpush.msra.mxu0 0.0
        %2007 = vmatpush.msra.mxu0 0.0
        %2008 = vmatpush.msra.mxu0 0.0
        %2009 = vmatpush.msra.mxu0 0.0
        %2010 = vmatpush.msra.mxu0 0.0
        %2011 = vmatpush.msra.mxu0 0.0
        %2012 = vmatpush.msra.mxu0 0.0
        %2013 = vmatpush.msra.mxu0 %v1984
        %2014 = vmatpush.msra.mxu0 %v1983
        %2015 = vmatpush.msra.mxu0 %v1982
        %2016 = vmatpush.msra.mxu0 %v1981
        %2017 = vmatmul.f32.gmra.mxu0 %v1990
        %v2018 = vpop.f32.mrf.mxu0
        %v2019 = vadd.f32 %v1987, %v2018
        %2020 = vmatmul.f32.gmra.mxu0 %v1993
        %v2021 = vpop.f32.mrf.mxu0
        %v2022 = vadd.f32 %v1987, %v2021
        %2023 = vmatmul.f32.gmra.mxu0 %v1996
        %v2024 = vpop.f32.mrf.mxu0
        %v2025 = vadd.f32 %v1987, %v2024
        %2026 = vmatmul.f32.gmra.mxu0 %v1999
        %v2027 = vpop.f32.mrf.mxu0
        %v2028 = vadd.f32 %v1987, %v2027
        %2029 = vdwg.mxu0
        %v2030 = vadd.f32 %v786, %v2019
        %v2031 = vadd.f32 %v787, %v2022
        %v2032 = vadd.f32 %v788, %v2025
        %v2033 = vadd.f32 %v789, %v2028
        %v2034 = vld [vmem:[%s752] sm:$0x1]
        %v2035 = vld [vmem:[%s755] sm:$0x1]
        %v2036 = vsel %vm792, %v2030, 0.0
        %2037 = vadd.xlane.f32.xlu0 %v2036
        %v2038 = vpop.xlane.xlu0 %2037
        %v2039 = vsel %vm792, %v2031, 0.0
        %2040 = vadd.xlane.f32.xlu0 %v2039
        %v2041 = vpop.xlane.xlu0 %2040
        %v2042 = vsel %vm792, %v2032, 0.0
        %2043 = vadd.xlane.f32.xlu0 %v2042
        %v2044 = vpop.xlane.xlu0 %2043
        %v2045 = vsel %vm792, %v2033, 0.0
        %2046 = vadd.xlane.f32.xlu0 %v2045
        %v2047 = vpop.xlane.xlu0 %2046
        %v2048 = vmul.f32 %v2038, %v811
        %v2049 = vmul.f32 %v2041, %v811
        %v2050 = vmul.f32 %v2044, %v811
        %v2051 = vmul.f32 %v2047, %v811
        %v2052 = vsub.f32 %v2030, %v2048
        %v2053 = vsub.f32 %v2031, %v2049
        %v2054 = vsub.f32 %v2032, %v2050
        %v2055 = vsub.f32 %v2033, %v2051
        %v2056 = vmul.f32 %v2052, %v2052
        %v2057 = vmul.f32 %v2053, %v2053
        %v2058 = vmul.f32 %v2054, %v2054
        %v2059 = vmul.f32 %v2055, %v2055
        %v2060 = vsel %vm792, %v2056, 0.0
        %2061 = vadd.xlane.f32.xlu0 %v2060
        %v2062 = vpop.xlane.xlu0 %2061
        %v2063 = vsel %vm792, %v2057, 0.0
        %2064 = vadd.xlane.f32.xlu0 %v2063
        %v2065 = vpop.xlane.xlu0 %2064
        %v2066 = vsel %vm792, %v2058, 0.0
        %2067 = vadd.xlane.f32.xlu0 %v2066
        %v2068 = vpop.xlane.xlu0 %2067
        %v2069 = vsel %vm792, %v2059, 0.0
        %2070 = vadd.xlane.f32.xlu0 %v2069
        %v2071 = vpop.xlane.xlu0 %2070
        %v2072 = vmul.f32 %v2062, %v811
        %v2073 = vmul.f32 %v2065, %v811
        %v2074 = vmul.f32 %v2068, %v811
        %v2075 = vmul.f32 %v2071, %v811
        %v2076 = vadd.f32 %v2072, 1e-05
        %v2077 = vadd.f32 %v2073, 1e-05
        %v2078 = vadd.f32 %v2074, 1e-05
        %v2079 = vadd.f32 %v2075, 1e-05
        %v2080 = vrsqrt.pop %v2076
        %v2081 = vmul.f32 %v2080, %v2076
        %v2082 = vmul.f32 %v2081, %v2080
        %v2083 = vmul.f32 0.5, %v2082
        %v2084 = vsub.f32 1.5, %v2083
        %v2085 = vmul.f32 %v2080, %v2084
        %vm2086 = vweird.f32 %v2076
        %vm2087 = vweird.f32 %v2080
        %vm2088 = vmor %vm2086, %vm2087
        %v2089 = vsel %vm2088, %v2080, %v2085
        %v2090 = vrsqrt.pop %v2077
        %v2091 = vmul.f32 %v2090, %v2077
        %v2092 = vmul.f32 %v2091, %v2090
        %v2093 = vmul.f32 0.5, %v2092
        %v2094 = vsub.f32 1.5, %v2093
        %v2095 = vmul.f32 %v2090, %v2094
        %vm2096 = vweird.f32 %v2077
        %vm2097 = vweird.f32 %v2090
        %vm2098 = vmor %vm2096, %vm2097
        %v2099 = vsel %vm2098, %v2090, %v2095
        %v2100 = vrsqrt.pop %v2078
        %v2101 = vmul.f32 %v2100, %v2078
        %v2102 = vmul.f32 %v2101, %v2100
        %v2103 = vmul.f32 0.5, %v2102
        %v2104 = vsub.f32 1.5, %v2103
        %v2105 = vmul.f32 %v2100, %v2104
        %vm2106 = vweird.f32 %v2078
        %vm2107 = vweird.f32 %v2100
        %vm2108 = vmor %vm2106, %vm2107
        %v2109 = vsel %vm2108, %v2100, %v2105
        %v2110 = vrsqrt.pop %v2079
        %v2111 = vmul.f32 %v2110, %v2079
        %v2112 = vmul.f32 %v2111, %v2110
        %v2113 = vmul.f32 0.5, %v2112
        %v2114 = vsub.f32 1.5, %v2113
        %v2115 = vmul.f32 %v2110, %v2114
        %vm2116 = vweird.f32 %v2079
        %vm2117 = vweird.f32 %v2110
        %vm2118 = vmor %vm2116, %vm2117
        %v2119 = vsel %vm2118, %v2110, %v2115
        %v2120 = vmul.f32 %v2052, %v2089
        %v2121 = vmul.f32 %v2053, %v2099
        %v2122 = vmul.f32 %v2054, %v2109
        %v2123 = vmul.f32 %v2055, %v2119
        %v2125 = vperm.slane %v2034, 0
        %v2127 = vmul.f32 %v2120, %v2125
        %v2128 = vmul.f32 %v2121, %v2125
        %v2129 = vmul.f32 %v2122, %v2125
        %v2130 = vmul.f32 %v2123, %v2125
        %v2132 = vperm.slane %v2035, 0
        %v2134 = vadd.f32 %v2127, %v2132
        %v2135 = vadd.f32 %v2128, %v2132
        %v2136 = vadd.f32 %v2129, %v2132
        %v2137 = vadd.f32 %v2130, %v2132
        %v2138 = vld [vmem:[%s760] sm:$0xff]
        %v2139 = vld [vmem:[%s760 + $0x8] sm:$0xff]
        %v2140 = vld [vmem:[%s760 + $0x10] sm:$0xff]
        %v2141 = vld [vmem:[%s760 + $0x18] sm:$0xff]
        %v2142 = vld [vmem:[%s763] sm:$0x1]
        %v2144 = vperm.slane %v2142, 0
        %v2147 = vsel %vm792, %v2134, 0
        %v2150 = vsel %vm792, %v2135, 0
        %v2153 = vsel %vm792, %v2136, 0
        %v2156 = vsel %vm792, %v2137, 0
        %2158 = vmatpush.msra.mxu0 0.0
        %2159 = vmatpush.msra.mxu0 0.0
        %2160 = vmatpush.msra.mxu0 0.0
        %2161 = vmatpush.msra.mxu0 0.0
        %2162 = vmatpush.msra.mxu0 0.0
        %2163 = vmatpush.msra.mxu0 0.0
        %2164 = vmatpush.msra.mxu0 0.0
        %2165 = vmatpush.msra.mxu0 0.0
        %2166 = vmatpush.msra.mxu0 0.0
        %2167 = vmatpush.msra.mxu0 0.0
        %2168 = vmatpush.msra.mxu0 0.0
        %2169 = vmatpush.msra.mxu0 0.0
        %2170 = vmatpush.msra.mxu0 %v2141
        %2171 = vmatpush.msra.mxu0 %v2140
        %2172 = vmatpush.msra.mxu0 %v2139
        %2173 = vmatpush.msra.mxu0 %v2138
        %2174 = vmatmul.f32.gmra.mxu0 %v2147
        %v2175 = vpop.f32.mrf.mxu0
        %v2176 = vadd.f32 %v2144, %v2175
        %2177 = vmatmul.f32.gmra.mxu0 %v2150
        %v2178 = vpop.f32.mrf.mxu0
        %v2179 = vadd.f32 %v2144, %v2178
        %2180 = vmatmul.f32.gmra.mxu0 %v2153
        %v2181 = vpop.f32.mrf.mxu0
        %v2182 = vadd.f32 %v2144, %v2181
        %2183 = vmatmul.f32.gmra.mxu0 %v2156
        %v2184 = vpop.f32.mrf.mxu0
        %v2185 = vadd.f32 %v2144, %v2184
        %2186 = vdwg.mxu0
        %v2187 = vmul.f32 %v2176, 0.5
        %v2188 = vmul.f32 %v2179, 0.5
        %v2189 = vmul.f32 %v2182, 0.5
        %v2190 = vmul.f32 %v2185, 0.5
        %v2191 = vmul.f32 %v2176, 0.044715
        %v2192 = vmul.f32 %v2179, 0.044715
        %v2193 = vmul.f32 %v2182, 0.044715
        %v2194 = vmul.f32 %v2185, 0.044715
        %v2195 = vmul.f32 %v2191, %v2176
        %v2196 = vmul.f32 %v2192, %v2179
        %v2197 = vmul.f32 %v2193, %v2182
        %v2198 = vmul.f32 %v2194, %v2185
        %v2199 = vmul.f32 %v2195, %v2176
        %v2200 = vmul.f32 %v2196, %v2179
        %v2201 = vmul.f32 %v2197, %v2182
        %v2202 = vmul.f32 %v2198, %v2185
        %v2203 = vadd.f32 %v2176, %v2199
        %v2204 = vadd.f32 %v2179, %v2200
        %v2205 = vadd.f32 %v2182, %v2201
        %v2206 = vadd.f32 %v2185, %v2202
        %v2207 = vmul.f32 %v2203, 0.7978846
        %v2208 = vmul.f32 %v2204, 0.7978846
        %v2209 = vmul.f32 %v2205, 0.7978846
        %v2210 = vmul.f32 %v2206, 0.7978846
        %v2211 = vtanh.pop %v2207
        %v2212 = vtanh.pop %v2208
        %v2213 = vtanh.pop %v2209
        %v2214 = vtanh.pop %v2210
        %v2215 = vadd.f32 %v2211, 1.0
        %v2216 = vadd.f32 %v2212, 1.0
        %v2217 = vadd.f32 %v2213, 1.0
        %v2218 = vadd.f32 %v2214, 1.0
        %v2219 = vmul.f32 %v2187, %v2215
        %v2220 = vmul.f32 %v2188, %v2216
        %v2221 = vmul.f32 %v2189, %v2217
        %v2222 = vmul.f32 %v2190, %v2218
        %v2223 = vld [vmem:[%s768] sm:$0xff]
        %v2224 = vld [vmem:[%s768 + $0x8] sm:$0xff]
        %v2225 = vld [vmem:[%s768 + $0x10] sm:$0xff]
        %v2226 = vld [vmem:[%s768 + $0x18] sm:$0xff]
        %v2227 = vld [vmem:[%s768 + $0x20] sm:$0xff]
        %v2228 = vld [vmem:[%s768 + $0x28] sm:$0xff]
        %v2229 = vld [vmem:[%s768 + $0x30] sm:$0xff]
        %v2230 = vld [vmem:[%s768 + $0x38] sm:$0xff]
        %v2231 = vld [vmem:[%s771] sm:$0x1]
        %v2233 = vperm.slane %v2231, 0
        %vm2235 = vcmask 523264
        %v2237 = vsel %vm2235, %v2219, 0
        %v2240 = vsel %vm2235, %v2220, 0
        %v2243 = vsel %vm2235, %v2221, 0
        %v2246 = vsel %vm2235, %v2222, 0
        %2248 = vmatpush.msra.mxu0 0.0
        %2249 = vmatpush.msra.mxu0 0.0
        %2250 = vmatpush.msra.mxu0 0.0
        %2251 = vmatpush.msra.mxu0 0.0
        %2252 = vmatpush.msra.mxu0 0.0
        %2253 = vmatpush.msra.mxu0 0.0
        %2254 = vmatpush.msra.mxu0 0.0
        %2255 = vmatpush.msra.mxu0 0.0
        %2256 = vmatpush.msra.mxu0 %v2230
        %2257 = vmatpush.msra.mxu0 %v2229
        %2258 = vmatpush.msra.mxu0 %v2228
        %2259 = vmatpush.msra.mxu0 %v2227
        %2260 = vmatpush.msra.mxu0 %v2226
        %2261 = vmatpush.msra.mxu0 %v2225
        %2262 = vmatpush.msra.mxu0 %v2224
        %2263 = vmatpush.msra.mxu0 %v2223
        %2264 = vmatmul.f32.gmra.mxu0 %v2237
        %v2265 = vpop.f32.mrf.mxu0
        %v2266 = vadd.f32 %v2233, %v2265
        %2267 = vmatmul.f32.gmra.mxu0 %v2240
        %v2268 = vpop.f32.mrf.mxu0
        %v2269 = vadd.f32 %v2233, %v2268
        %2270 = vmatmul.f32.gmra.mxu0 %v2243
        %v2271 = vpop.f32.mrf.mxu0
        %v2272 = vadd.f32 %v2233, %v2271
        %2273 = vmatmul.f32.gmra.mxu0 %v2246
        %v2274 = vpop.f32.mrf.mxu0
        %v2275 = vadd.f32 %v2233, %v2274
        %2276 = vdwg.mxu0
        %v2277 = vadd.f32 %v2030, %v2266
        %v2278 = vadd.f32 %v2031, %v2269
        %v2279 = vadd.f32 %v2032, %v2272
        %v2280 = vadd.f32 %v2033, %v2275
        %2281 = vst.msk [vmem:[#allocation2] sm:$0xff] %vm792, %v2277
        %2282 = vst.msk [vmem:[#allocation2 + $0x8] sm:$0xff] %vm792, %v2278
        %2283 = vst.msk [vmem:[#allocation2 + $0x10] sm:$0xff] %vm792, %v2279
        %2284 = vst.msk [vmem:[#allocation2 + $0x18] sm:$0xff] %vm792, %v2280
        %p2285 = scmp.eq.s32.totalorder %s35, 1
        // Predicated region
        $region97: #{rna_esm2_forward.1} parent=91 // pred_check
          %p2286 = pneg %p2285
        $region98: #{rna_esm2_forward.1} parent=91 // pred_check_branch
          %2288 = sbr.rel (%p2286) target = $region100
        $region99: #{rna_esm2_forward.1} parent=91 // pred_region
          %v2289 = vld [vmem:[%s16] sm:$0x1]
          %v2290 = vld [vmem:[%s17] sm:$0x1]
          %v2291 = vsel %vm792, %v2277, 0.0
          %2292 = vadd.xlane.f32.xlu0 %v2291
          %v2293 = vpop.xlane.xlu0 %2292
          %v2294 = vsel %vm792, %v2278, 0.0
          %2295 = vadd.xlane.f32.xlu0 %v2294
          %v2296 = vpop.xlane.xlu0 %2295
          %v2297 = vsel %vm792, %v2279, 0.0
          %2298 = vadd.xlane.f32.xlu0 %v2297
          %v2299 = vpop.xlane.xlu0 %2298
          %v2300 = vsel %vm792, %v2280, 0.0
          %2301 = vadd.xlane.f32.xlu0 %v2300
          %v2302 = vpop.xlane.xlu0 %2301
          %v2303 = vmul.f32 %v2293, %v811
          %v2304 = vmul.f32 %v2296, %v811
          %v2305 = vmul.f32 %v2299, %v811
          %v2306 = vmul.f32 %v2302, %v811
          %v2307 = vsub.f32 %v2277, %v2303
          %v2308 = vsub.f32 %v2278, %v2304
          %v2309 = vsub.f32 %v2279, %v2305
          %v2310 = vsub.f32 %v2280, %v2306
          %v2311 = vmul.f32 %v2307, %v2307
          %v2312 = vmul.f32 %v2308, %v2308
          %v2313 = vmul.f32 %v2309, %v2309
          %v2314 = vmul.f32 %v2310, %v2310
          %v2315 = vsel %vm792, %v2311, 0.0
          %2316 = vadd.xlane.f32.xlu0 %v2315
          %v2317 = vpop.xlane.xlu0 %2316
          %v2318 = vsel %vm792, %v2312, 0.0
          %2319 = vadd.xlane.f32.xlu0 %v2318
          %v2320 = vpop.xlane.xlu0 %2319
          %v2321 = vsel %vm792, %v2313, 0.0
          %2322 = vadd.xlane.f32.xlu0 %v2321
          %v2323 = vpop.xlane.xlu0 %2322
          %v2324 = vsel %vm792, %v2314, 0.0
          %2325 = vadd.xlane.f32.xlu0 %v2324
          %v2326 = vpop.xlane.xlu0 %2325
          %v2327 = vmul.f32 %v2317, %v811
          %v2328 = vmul.f32 %v2320, %v811
          %v2329 = vmul.f32 %v2323, %v811
          %v2330 = vmul.f32 %v2326, %v811
          %v2331 = vadd.f32 %v2327, 1e-05
          %v2332 = vadd.f32 %v2328, 1e-05
          %v2333 = vadd.f32 %v2329, 1e-05
          %v2334 = vadd.f32 %v2330, 1e-05
          %v2335 = vrsqrt.pop %v2331
          %v2336 = vmul.f32 %v2335, %v2331
          %v2337 = vmul.f32 %v2336, %v2335
          %v2338 = vmul.f32 0.5, %v2337
          %v2339 = vsub.f32 1.5, %v2338
          %v2340 = vmul.f32 %v2335, %v2339
          %vm2341 = vweird.f32 %v2331
          %vm2342 = vweird.f32 %v2335
          %vm2343 = vmor %vm2341, %vm2342
          %v2344 = vsel %vm2343, %v2335, %v2340
          %v2345 = vrsqrt.pop %v2332
          %v2346 = vmul.f32 %v2345, %v2332
          %v2347 = vmul.f32 %v2346, %v2345
          %v2348 = vmul.f32 0.5, %v2347
          %v2349 = vsub.f32 1.5, %v2348
          %v2350 = vmul.f32 %v2345, %v2349
          %vm2351 = vweird.f32 %v2332
          %vm2352 = vweird.f32 %v2345
          %vm2353 = vmor %vm2351, %vm2352
          %v2354 = vsel %vm2353, %v2345, %v2350
          %v2355 = vrsqrt.pop %v2333
          %v2356 = vmul.f32 %v2355, %v2333
          %v2357 = vmul.f32 %v2356, %v2355
          %v2358 = vmul.f32 0.5, %v2357
          %v2359 = vsub.f32 1.5, %v2358
          %v2360 = vmul.f32 %v2355, %v2359
          %vm2361 = vweird.f32 %v2333
          %vm2362 = vweird.f32 %v2355
          %vm2363 = vmor %vm2361, %vm2362
          %v2364 = vsel %vm2363, %v2355, %v2360
          %v2365 = vrsqrt.pop %v2334
          %v2366 = vmul.f32 %v2365, %v2334
          %v2367 = vmul.f32 %v2366, %v2365
          %v2368 = vmul.f32 0.5, %v2367
          %v2369 = vsub.f32 1.5, %v2368
          %v2370 = vmul.f32 %v2365, %v2369
          %vm2371 = vweird.f32 %v2334
          %vm2372 = vweird.f32 %v2365
          %vm2373 = vmor %vm2371, %vm2372
          %v2374 = vsel %vm2373, %v2365, %v2370
          %v2375 = vmul.f32 %v2307, %v2344
          %v2376 = vmul.f32 %v2308, %v2354
          %v2377 = vmul.f32 %v2309, %v2364
          %v2378 = vmul.f32 %v2310, %v2374
          %v2380 = vperm.slane %v2289, 0
          %v2382 = vmul.f32 %v2375, %v2380
          %v2383 = vmul.f32 %v2376, %v2380
          %v2384 = vmul.f32 %v2377, %v2380
          %v2385 = vmul.f32 %v2378, %v2380
          %v2387 = vperm.slane %v2290, 0
          %v2389 = vadd.f32 %v2382, %v2387
          %v2390 = vadd.f32 %v2383, %v2387
          %v2391 = vadd.f32 %v2384, %v2387
          %v2392 = vadd.f32 %v2385, %v2387
          %2393 = vst.msk [vmem:[#allocation6] sm:$0xff] %vm792, %v2389
          %2394 = vst.msk [vmem:[#allocation6 + $0x8] sm:$0xff] %vm792, %v2390
          %2395 = vst.msk [vmem:[#allocation6 + $0x10] sm:$0xff] %vm792, %v2391
          %2396 = vst.msk [vmem:[#allocation6 + $0x18] sm:$0xff] %vm792, %v2392
          %v2397 = vld [vmem:[#allocation6 + $0x1] sm:$0xff]
          %v2398 = vld [vmem:[#allocation6 + $0x11] sm:$0xff]
          %v2399 = vsel %vm792, %v2397, -inf
          %2400 = vmax.xlane.f32.xlu0 %v2399
          %v2401 = vpop.xlane.xlu0 %2400
          %v2402 = vsel %vm792, %v2398, -inf
          %2403 = vmax.xlane.f32.xlu0 %v2402
          %v2404 = vpop.xlane.xlu0 %2403
          %v2405 = vsub.f32 %v2397, %v2401
          %v2406 = vsub.f32 %v2398, %v2404
          %v2407 = vmul.f32 %v2405, 1.442695
          %v2408 = vpow.pop %v2407
          %v2409 = vmul.f32 %v2406, 1.442695
          %v2410 = vpow.pop %v2409
          %v2411 = vsel %vm792, %v2408, 0.0
          %2412 = vadd.xlane.f32.xlu0 %v2411
          %v2413 = vpop.xlane.xlu0 %2412
          %v2414 = vsel %vm792, %v2410, 0.0
          %2415 = vadd.xlane.f32.xlu0 %v2414
          %v2416 = vpop.xlane.xlu0 %2415
          %v2417 = vrcp.pop %v2413
          %v2418 = vrcp.pop %v2416
          %v2419 = vmul.f32 %v2408, %v2417
          %v2420 = vmul.f32 %v2410, %v2418
          %2421 = vst.msk [vmem:[#allocation9] sm:$0xff] %vm792, %v2419
          %2422 = vst.msk [vmem:[#allocation9 + $0x10] sm:$0xff] %vm792, %v2420
          %2423 = vst.msk [vmem:[#allocation9 + $0x8] sm:$0xff] %vm792, 0.03125
          %2424 = vst.msk [vmem:[#allocation9 + $0x18] sm:$0xff] %vm792, 0.03125
        $region100: #{rna_esm2_forward.1} parent=91 // pred_fallthru
          _
        %s2425 = sand.u32 %s481, 1
        %s2426 = scalar_lea.sflag [#allocation8], %s2425
        %s2427 = sand.u32 %s481, 1
        %s2428 = smul.addr %s2427, 128
        %s2429 = scalar_lea.vmem [#allocation7], %s2428
        // Predicated region
        $region101: #{rna_esm2_forward.1} parent=91 // pred_check
          %p2430 = pneg %p491
        $region102: #{rna_esm2_forward.1} parent=91 // pred_check_branch
          %2432 = sbr.rel (%p2430) target = $region104
        $region103: #{rna_esm2_forward.1} parent=91 // pred_region
          #allocation12 [shape = 'u32[6]{0}', space=smem, size = 0x18, scoped, tag = 'DMA stride descriptor']
          %s2433 = smul.u32 4, %s35
          %2435 = vsyncadd %s2426, 0
          %s2436 = smul.addr %s2433, 2
          %s2437 = smul.addr %s2436, 8
          %s2438 = scalar_lea.hbm %s18, %s2437
          %s2440 = sshll.u32 1, 14
          %s2441 = sxor.u32 4294967295, %s2440
          %s2444 = sshll.u32 7, 18
          %s2445 = sxor.u32 4294967295, %s2444
          %s2446 = sand.u32 0, %s2445
          %s2448 = sor.u32 %s2446, 0
          %s2449 = sshll.u32 %s2429, 4
          %s2450 = int_to_ptr.vmem [resolvable:$true] %s2449
          %s2451 = sshll.u32 %s2438, 4
          %s2452 = int_to_ptr.hbm [resolvable:$true] %s2451
          %2458 = sst [smem:[#allocation12]] 1024
          %s2459 = scalar_lea.smem [#allocation12], 1
          %2460 = sst [smem:[%s2459]] 2048
          %s2461 = scalar_lea.smem [#allocation12], 2
          %2462 = sst [smem:[%s2461]] 8
          %s2463 = scalar_lea.smem [#allocation12], 3
          %2464 = sst [smem:[%s2463]] 128
          %s2465 = scalar_lea.smem [#allocation12], 4
          %2466 = sst [smem:[%s2465]] 128
          %s2467 = scalar_lea.smem [#allocation12], 5
          %2468 = sst [smem:[%s2467]] 8
          %2470 = dma.general %s2450, 2048, %s2452, %s2426, [#allocation11], [#allocation12], %s2448, 0
        $region104: #{rna_esm2_forward.1} parent=91 // pred_fallthru
          _
        // Predicated region
        $region105: #{rna_esm2_forward.1} parent=91 // pred_check
          %p2471 = pneg %p512
        $region106: #{rna_esm2_forward.1} parent=91 // pred_check_branch
          %2473 = sbr.rel (%p2471) target = $region108
        $region107: #{rna_esm2_forward.1} parent=91 // pred_region
          %2475 = vsyncadd [#allocation10], 0
          %s2476 = sshll.u32 [#allocation9], 4
          %s2477 = int_to_ptr.vmem [resolvable:$true] %s2476
          %s2478 = sshll.u32 %s19, 4
          %s2479 = int_to_ptr.hbm [resolvable:$true] %s2478
          %2484 = dma.vmem_to_hbm [thread:$0]  %s2477, 512, %s2479, [#allocation10], 128, 128, 8
        $region108: #{rna_esm2_forward.1} parent=91 // pred_fallthru
          _
        // Predicated region
        $region109: #{rna_esm2_forward.1} parent=91 // pred_check
          %p2485 = pneg %p512
        $region110: #{rna_esm2_forward.1} parent=91 // pred_check_branch
          %2487 = sbr.rel (%p2485) target = $region112
        $region111: #{rna_esm2_forward.1} parent=91 // pred_region
          %2489 = dma.done [#allocation10], 512
        $region112: #{rna_esm2_forward.1} parent=91 // pred_fallthru
          _
      $region92: #{rna_esm2_forward.1} parent=5 // pred_fallthru
        _
      %p2490 = scmp.le.s32.totalorder 2, %s30
      // Predicated region
      $region113: #{rna_esm2_forward.1} parent=5 // pred_check
        %p2491 = pneg %p2490
      $region114: #{rna_esm2_forward.1} parent=5 // pred_check_branch
        %2493 = sbr.rel (%p2491) target = $region116
      $region115: #{rna_esm2_forward.1} parent=5 // pred_region
        %s2494 = ssub.s32 %s30, 2
        // Predicated region
        $region117: #{rna_esm2_forward.1} parent=115 // pred_check
          %p2495 = pneg %p497
        $region118: #{rna_esm2_forward.1} parent=115 // pred_check_branch
          %2497 = sbr.rel (%p2495) target = $region120
        $region119: #{rna_esm2_forward.1} parent=115 // pred_region
          %s2498 = sand.u32 %s482, 1
          %s2499 = scalar_lea.sflag [#allocation8], %s2498
          %s2500 = sand.u32 %s482, 1
          %s2501 = smul.addr %s2500, 128
          %s2502 = scalar_lea.vmem [#allocation7], %s2501
          %2504 = dma.done %s2499, 2048
        $region120: #{rna_esm2_forward.1} parent=115 // pred_fallthru
          _
      $region116: #{rna_esm2_forward.1} parent=5 // pred_fallthru
        _
    $region6: #{rna_esm2_forward.1} parent=1 // loop_footer
      %s34 = sadd.s32 1, %s30
    $region7: #{rna_esm2_forward.1} parent=1 // loop_footer_branch
      %29 = sbr.rel target = $region3
    $region8: #{rna_esm2_forward.1} parent=1 // loop_exit
      _
    %2505 = vsyncpa [#allocation8], 1
    %s2506 = scalar_lea.sflag [#allocation8], 1
    %2507 = vsyncpa %s2506, 1
    %2508 = vsyncpa [#allocation10], 1

</llo_original>
